<compile_context>
chip_gen: v7x
topology: tpu7x:2x2x1
jax: 0.10.0
libtpu: 0.0.40
codegen_flags: <defaults>
</compile_context>

<pallas_src>
import jax
import jax.numpy as jnp
from jax.experimental import pallas as pl
from jax.experimental.pallas import tpu as pltpu


# -----------------------------------------------------------------------------
# Group rational activation  y = P(x) / (1 + |Q(x)|)   (degree 5 / degree 4)
# -----------------------------------------------------------------------------
def _rational(x, num, den, *, approx_recip=False):
    """x: (tb, C); num: (6, C) a0..a5; den: (4, C) b1..b4 (no constant term)."""
    # Horner: numerator
    p = num[5:6, :]
    for k in range(4, -1, -1):
        p = p * x + num[k:k + 1, :]
    # Horner: denominator polynomial (no constant term)
    q = den[3:4, :]
    for k in range(2, -1, -1):
        q = q * x + den[k:k + 1, :]
    q = q * x
    d = 1.0 + jnp.abs(q)
    if approx_recip:
        return p * pl.reciprocal(d, approx=True)   # EUP slot, not VALU
    return p / d


# -----------------------------------------------------------------------------
# Fused discriminator kernel (tiled over batch)
# -----------------------------------------------------------------------------
def _discriminator_kernel(x_ref,
                          w1_ref, b1_ref,
                          an_ref, ad_ref,
                          w2_ref, b2_ref,
                          w3_ref, b3_ref,
                          out_ref):
    # fc1: (tb, img_dim) @ (img_dim, 512) on the MXU (bf16 in, f32 accumulate)
    x = x_ref[...].astype(jnp.bfloat16)
    h = jnp.dot(x, w1_ref[...], preferred_element_type=jnp.float32) + b1_ref[...]

    # act1: KAT_Group(mode='identity') is exactly y = x -> folded away.

    # fc2: (tb, 512) @ (512, 256)
    h = jnp.dot(h.astype(jnp.bfloat16), w2_ref[...],
                preferred_element_type=jnp.float32) + b2_ref[...]

    # act2: KAT_Group(mode='gelu') rational activation (f32)
    h = _rational(h, an_ref[...], ad_ref[...], approx_recip=True)

    # fc3: (tb, 256) @ (256, 128)  -- output padded from 1 to 128 lanes
    h = jnp.dot(h.astype(jnp.bfloat16), w3_ref[...],
                preferred_element_type=jnp.float32) + b3_ref[...]

    # Sigmoid
    out_ref[...] = 1.0 / (1.0 + jnp.exp(-h))


def _pick_batch_tile(B, requested):
    bt = min(requested, B)
    while B % bt != 0:          # keep the grid exact
        bt //= 2
    # Prefer >= 2 grid steps so v7x's two TensorCores both get work.
    if B // bt < 2 and bt % 2 == 0 and bt > 8:
        bt //= 2
    return max(bt, 1)


def _vmem_limit_bytes(batch_tile, img_dim, pad_out):
    f32, bf16 = 4, 2
    io = 2 * batch_tile * img_dim * f32 + 2 * batch_tile * pad_out * f32  # dbl-buffered x/out blocks
    w = 2 * (img_dim * 512 + 512 * 256 + 256 * pad_out) * bf16            # resident weights
    misc = 2 * (512 + 256 + pad_out + 10 * 256) * f32                     # biases + rational coeffs
    live = 3 * batch_tile * 512 * f32                                     # intermediates headroom
    est = io + w + misc + live
    return int(min(48 * 2**20, max(2 * est, 16 * 2**20)))


def kan_discriminator_forward(x, kernel_params, *, batch_tile=256):
    """x: (B, img_dim) f32 -> (B, 1) f32 (sigmoid scores)."""
    B, img_dim = x.shape
    (w1, b1, an, ad, w2, b2, w3p, b3p) = kernel_params
    pad_out = w3p.shape[1]

    bt = _pick_batch_tile(B, batch_tile)
    assert B % bt == 0

    def full_spec(arr):
        # Constant block index across the grid -> stays resident in VMEM.
        return pl.BlockSpec(arr.shape, lambda i: (0, 0))

    grid = (B // bt,)
    in_specs = [pl.BlockSpec((bt, img_dim), lambda i: (i, 0))] + \
               [full_spec(a) for a in (w1, b1, an, ad, w2, b2, w3p, b3p)]
    out_spec = pl.BlockSpec((bt, pad_out), lambda i: (i, 0))

    out_padded = pl.pallas_call(
        _discriminator_kernel,
        out_shape=jax.ShapeDtypeStruct((B, pad_out), jnp.float32),
        grid_spec=pltpu.PrefetchScalarGridSpec(
            num_scalar_prefetch=0,
            grid=grid,
            in_specs=in_specs,
            out_specs=out_spec,
        ),
        compiler_params=pltpu.CompilerParams(
            dimension_semantics=("parallel",),
            vmem_limit_bytes=_vmem_limit_bytes(bt, img_dim, pad_out)),
    )(x, w1, b1, an, ad, w2, b2, w3p, b3p)

    return out_padded[:, :1]


# -----------------------------------------------------------------------------
# Deterministic parameter construction
# -----------------------------------------------------------------------------
def _fit_rational_to(fn, x_min=-3.0, x_max=3.0, n=2001):
    """Linearized least-squares fit of a [5/4] rational to fn (deterministic)."""
    x = jnp.linspace(x_min, x_max, n)
    y = fn(x)
    num_cols = jnp.stack([x ** k for k in range(6)], axis=1)             # a0..a5
    den_cols = jnp.stack([-(y) * x ** k for k in range(1, 5)], axis=1)   # b1..b4
    A = jnp.concatenate([num_cols, den_cols], axis=1)
    coef, *_ = jnp.linalg.lstsq(A, y)
    return coef[:6], coef[6:]


def _kat_group_coeffs(mode, channels, num_groups=8):
    """Per-channel (6, C) / (4, C) coefficient arrays expanded from groups."""
    if mode == "identity":
        num_g = jnp.array([0.0, 1.0, 0.0, 0.0, 0.0, 0.0], jnp.float32)
        den_g = jnp.zeros((4,), jnp.float32)
    elif mode == "gelu":
        gelu = lambda t: 0.5 * t * (1.0 + jax.scipy.special.erf(t / jnp.sqrt(2.0)))
        num_g, den_g = _fit_rational_to(gelu)
        num_g = num_g.astype(jnp.float32)
        den_g = den_g.astype(jnp.float32)
    else:
        raise ValueError(mode)
    per_group_num = jnp.tile(num_g[None, :], (num_groups, 1))   # (G, 6)
    per_group_den = jnp.tile(den_g[None, :], (num_groups, 1))   # (G, 4)
    ch_per_group = channels // num_groups
    num_c = jnp.repeat(per_group_num, ch_per_group, axis=0).T   # (6, C)
    den_c = jnp.repeat(per_group_den, ch_per_group, axis=0).T   # (4, C)
    return num_c, den_c


def _init_linear(key, fan_in, fan_out):
    """PyTorch nn.Linear default init; weight returned pre-transposed (in, out)."""
    kw, kb = jax.random.split(key)
    bound = 1.0 / jnp.sqrt(float(fan_in))
    w = jax.random.uniform(kw, (fan_in, fan_out), jnp.float32, -bound, bound)
    b = jax.random.uniform(kb, (1, fan_out), jnp.float32, -bound, bound)
    return w, b


def make_params(key, img_dim, pad_out=128):
    """Returns (kernel_params_bf16, reference_params_f32)."""
    k1, k2, k3 = jax.random.split(key, 3)
    # img_dim should ideally be a multiple of 128 for clean MXU/lane tiling
    # (non-multiples still work since the block covers the full dim).
    w1, b1 = _init_linear(k1, img_dim, 512)
    w2, b2 = _init_linear(k2, 512, 256)
    w3, b3 = _init_linear(k3, 256, 1)
    an, ad = _kat_group_coeffs("gelu", 256)

    # Pad fc3 output from 1 to 128 lanes (full MXU tile, unmasked output store).
    w3p = jnp.zeros((256, pad_out), jnp.float32).at[:, :1].set(w3)
    b3p = jnp.zeros((1, pad_out), jnp.float32).at[:, :1].set(b3)

    kernel_params = (w1.astype(jnp.bfloat16), b1, an, ad,
                     w2.astype(jnp.bfloat16), b2,
                     w3p.astype(jnp.bfloat16), b3p)
    ref_params = (w1, b1, an, ad, w2, b2, w3, b3)
    return kernel_params, ref_params


# -----------------------------------------------------------------------------
# Pure-JAX f32 reference (same math, exact divide) for a sanity check
# -----------------------------------------------------------------------------
def reference_forward(x, ref_params):
    (w1, b1, an, ad, w2, b2, w3, b3) = ref_params
    h = x @ w1 + b1
    # KAT_Group(mode='identity') is exactly identity.
    h = h @ w2 + b2
    h = _rational(h, an, ad, approx_recip=False)
    h = h @ w3 + b3
    return 1.0 / (1.0 + jnp.exp(-h))


if __name__ == "__main__":
    key = jax.random.PRNGKey(0)
    k_params, k_x = jax.random.split(key)

    B, img_dim = 512, 256   # batch_tile=256 -> 2 grid steps (feeds both v7x TCs)
    kernel_params, ref_params = make_params(k_params, img_dim)
    x = jax.random.normal(k_x, (B, img_dim), dtype=jnp.float32)

    out = kan_discriminator_forward(x, kernel_params, batch_tile=256)
    out = jax.block_until_ready(out)

    ref = reference_forward(x, ref_params)
    assert out.shape == (B, 1)
    assert jnp.allclose(out, ref, atol=2e-2, rtol=2e-2), "mismatch vs JAX reference"

    print("KERNEL_OK")
</pallas_src>

<mosaic_0001>
module attributes {stable_mosaic.version = 11 : i64} {
  func.func @_discriminator_kernel(%arg0: i32, %arg1: memref<256x256xf32, #tpu.memory_space<vmem>>, %arg2: memref<256x512xbf16, #tpu.memory_space<vmem>>, %arg3: memref<1x512xf32, #tpu.memory_space<vmem>>, %arg4: memref<6x256xf32, #tpu.memory_space<vmem>>, %arg5: memref<4x256xf32, #tpu.memory_space<vmem>>, %arg6: memref<512x256xbf16, #tpu.memory_space<vmem>>, %arg7: memref<1x256xf32, #tpu.memory_space<vmem>>, %arg8: memref<256x128xbf16, #tpu.memory_space<vmem>>, %arg9: memref<1x128xf32, #tpu.memory_space<vmem>>, %arg10: memref<256x128xf32, #tpu.memory_space<vmem>>) attributes {dimension_semantics = [#tpu.dimension_semantics<parallel>], iteration_bounds = array<i64: 2>, scalar_prefetch = 0 : i64, scratch_operands = 0 : i64, tpu.core_type = #tpu.core_type<tc>, window_params = [{transform_indices = @transform_0, window_bounds = array<i64: 256, 256>}, {pipeline_mode = #tpu.pipeline_mode<synchronous>, transform_indices = @transform_1, window_bounds = array<i64: 256, 512>}, {pipeline_mode = #tpu.pipeline_mode<synchronous>, transform_indices = @transform_2, window_bounds = array<i64: 1, 512>}, {pipeline_mode = #tpu.pipeline_mode<synchronous>, transform_indices = @transform_3, window_bounds = array<i64: 6, 256>}, {pipeline_mode = #tpu.pipeline_mode<synchronous>, transform_indices = @transform_4, window_bounds = array<i64: 4, 256>}, {pipeline_mode = #tpu.pipeline_mode<synchronous>, transform_indices = @transform_5, window_bounds = array<i64: 512, 256>}, {pipeline_mode = #tpu.pipeline_mode<synchronous>, transform_indices = @transform_6, window_bounds = array<i64: 1, 256>}, {pipeline_mode = #tpu.pipeline_mode<synchronous>, transform_indices = @transform_7, window_bounds = array<i64: 256, 128>}, {pipeline_mode = #tpu.pipeline_mode<synchronous>, transform_indices = @transform_8, window_bounds = array<i64: 1, 128>}, {transform_indices = @transform_9, window_bounds = array<i64: 256, 128>}]} {
    %c0 = arith.constant 0 : index
    %c0_0 = arith.constant 0 : index
    %0 = vector.load %arg1[%c0, %c0_0] : memref<256x256xf32, #tpu.memory_space<vmem>>, vector<256x256xf32>
    %1 = arith.truncf %0 : vector<256x256xf32> to vector<256x256xbf16>
    %c0_1 = arith.constant 0 : index
    %c0_2 = arith.constant 0 : index
    %2 = vector.load %arg2[%c0_1, %c0_2] : memref<256x512xbf16, #tpu.memory_space<vmem>>, vector<256x512xbf16>
    %cst = arith.constant dense<0.000000e+00> : vector<256x512xf32>
    %3 = tpu.matmul %1, %2, %cst {dimension_numbers = #tpu.dot_dimension_numbers<[1], [0], [0], [1], [0, 0, 1, 1], [], []>} : vector<256x256xbf16>, vector<256x512xbf16>, vector<256x512xf32> -> vector<256x512xf32>
    %c0_3 = arith.constant 0 : index
    %c0_4 = arith.constant 0 : index
    %4 = vector.load %arg3[%c0_3, %c0_4] : memref<1x512xf32, #tpu.memory_space<vmem>>, vector<1x512xf32>
    %5 = vector.broadcast %4 : vector<1x512xf32> to vector<256x512xf32>
    %6 = arith.addf %3, %5 : vector<256x512xf32>
    %7 = arith.truncf %6 : vector<256x512xf32> to vector<256x512xbf16>
    %c0_5 = arith.constant 0 : index
    %c0_6 = arith.constant 0 : index
    %8 = vector.load %arg6[%c0_5, %c0_6] : memref<512x256xbf16, #tpu.memory_space<vmem>>, vector<512x256xbf16>
    %cst_7 = arith.constant dense<0.000000e+00> : vector<256x256xf32>
    %9 = tpu.matmul %7, %8, %cst_7 {dimension_numbers = #tpu.dot_dimension_numbers<[1], [0], [0], [1], [0, 0, 1, 1], [], []>} : vector<256x512xbf16>, vector<512x256xbf16>, vector<256x256xf32> -> vector<256x256xf32>
    %c0_8 = arith.constant 0 : index
    %c0_9 = arith.constant 0 : index
    %10 = vector.load %arg7[%c0_8, %c0_9] : memref<1x256xf32, #tpu.memory_space<vmem>>, vector<1x256xf32>
    %11 = vector.broadcast %10 : vector<1x256xf32> to vector<256x256xf32>
    %12 = arith.addf %9, %11 : vector<256x256xf32>
    %c0_10 = arith.constant 0 : index
    %c0_11 = arith.constant 0 : index
    %13 = vector.load %arg4[%c0_10, %c0_11] : memref<6x256xf32, #tpu.memory_space<vmem>>, vector<6x256xf32>
    %c0_12 = arith.constant 0 : index
    %c0_13 = arith.constant 0 : index
    %14 = vector.load %arg5[%c0_12, %c0_13] : memref<4x256xf32, #tpu.memory_space<vmem>>, vector<4x256xf32>
    %15 = vector.extract_strided_slice %13 {offsets = [5, 0], sizes = [1, 256], strides = [1, 1]} : vector<6x256xf32> to vector<1x256xf32>
    %16 = vector.broadcast %15 : vector<1x256xf32> to vector<256x256xf32>
    %17 = arith.mulf %16, %12 : vector<256x256xf32>
    %18 = vector.extract_strided_slice %13 {offsets = [4, 0], sizes = [1, 256], strides = [1, 1]} : vector<6x256xf32> to vector<1x256xf32>
    %19 = vector.broadcast %18 : vector<1x256xf32> to vector<256x256xf32>
    %20 = arith.addf %17, %19 : vector<256x256xf32>
    %21 = arith.mulf %20, %12 : vector<256x256xf32>
    %22 = vector.extract_strided_slice %13 {offsets = [3, 0], sizes = [1, 256], strides = [1, 1]} : vector<6x256xf32> to vector<1x256xf32>
    %23 = vector.broadcast %22 : vector<1x256xf32> to vector<256x256xf32>
    %24 = arith.addf %21, %23 : vector<256x256xf32>
    %25 = arith.mulf %24, %12 : vector<256x256xf32>
    %26 = vector.extract_strided_slice %13 {offsets = [2, 0], sizes = [1, 256], strides = [1, 1]} : vector<6x256xf32> to vector<1x256xf32>
    %27 = vector.broadcast %26 : vector<1x256xf32> to vector<256x256xf32>
    %28 = arith.addf %25, %27 : vector<256x256xf32>
    %29 = arith.mulf %28, %12 : vector<256x256xf32>
    %30 = vector.extract_strided_slice %13 {offsets = [1, 0], sizes = [1, 256], strides = [1, 1]} : vector<6x256xf32> to vector<1x256xf32>
    %31 = vector.broadcast %30 : vector<1x256xf32> to vector<256x256xf32>
    %32 = arith.addf %29, %31 : vector<256x256xf32>
    %33 = arith.mulf %32, %12 : vector<256x256xf32>
    %34 = vector.extract_strided_slice %13 {offsets = [0, 0], sizes = [1, 256], strides = [1, 1]} : vector<6x256xf32> to vector<1x256xf32>
    %35 = vector.broadcast %34 : vector<1x256xf32> to vector<256x256xf32>
    %36 = arith.addf %33, %35 : vector<256x256xf32>
    %37 = vector.extract_strided_slice %14 {offsets = [3, 0], sizes = [1, 256], strides = [1, 1]} : vector<4x256xf32> to vector<1x256xf32>
    %38 = vector.broadcast %37 : vector<1x256xf32> to vector<256x256xf32>
    %39 = arith.mulf %38, %12 : vector<256x256xf32>
    %40 = vector.extract_strided_slice %14 {offsets = [2, 0], sizes = [1, 256], strides = [1, 1]} : vector<4x256xf32> to vector<1x256xf32>
    %41 = vector.broadcast %40 : vector<1x256xf32> to vector<256x256xf32>
    %42 = arith.addf %39, %41 : vector<256x256xf32>
    %43 = arith.mulf %42, %12 : vector<256x256xf32>
    %44 = vector.extract_strided_slice %14 {offsets = [1, 0], sizes = [1, 256], strides = [1, 1]} : vector<4x256xf32> to vector<1x256xf32>
    %45 = vector.broadcast %44 : vector<1x256xf32> to vector<256x256xf32>
    %46 = arith.addf %43, %45 : vector<256x256xf32>
    %47 = arith.mulf %46, %12 : vector<256x256xf32>
    %48 = vector.extract_strided_slice %14 {offsets = [0, 0], sizes = [1, 256], strides = [1, 1]} : vector<4x256xf32> to vector<1x256xf32>
    %49 = vector.broadcast %48 : vector<1x256xf32> to vector<256x256xf32>
    %50 = arith.addf %47, %49 : vector<256x256xf32>
    %51 = arith.mulf %50, %12 : vector<256x256xf32>
    %52 = math.absf %51 : vector<256x256xf32>
    %cst_14 = arith.constant 1.000000e+00 : f32
    %53 = vector.broadcast %cst_14 : f32 to vector<256x256xf32>
    %54 = arith.addf %53, %52 : vector<256x256xf32>
    %55 = tpu.reciprocal %54 {approx = true} : vector<256x256xf32> -> vector<256x256xf32>
    %56 = arith.mulf %36, %55 : vector<256x256xf32>
    %57 = arith.truncf %56 : vector<256x256xf32> to vector<256x256xbf16>
    %c0_15 = arith.constant 0 : index
    %c0_16 = arith.constant 0 : index
    %58 = vector.load %arg8[%c0_15, %c0_16] : memref<256x128xbf16, #tpu.memory_space<vmem>>, vector<256x128xbf16>
    %cst_17 = arith.constant dense<0.000000e+00> : vector<256x128xf32>
    %59 = tpu.matmul %57, %58, %cst_17 {dimension_numbers = #tpu.dot_dimension_numbers<[1], [0], [0], [1], [0, 0, 1, 1], [], []>} : vector<256x256xbf16>, vector<256x128xbf16>, vector<256x128xf32> -> vector<256x128xf32>
    %c0_18 = arith.constant 0 : index
    %c0_19 = arith.constant 0 : index
    %60 = vector.load %arg9[%c0_18, %c0_19] : memref<1x128xf32, #tpu.memory_space<vmem>>, vector<1x128xf32>
    %61 = vector.broadcast %60 : vector<1x128xf32> to vector<256x128xf32>
    %62 = arith.addf %59, %61 : vector<256x128xf32>
    %cst_20 = arith.constant 0.000000e+00 : f32
    %63 = vector.broadcast %cst_20 : f32 to vector<256x128xf32>
    %64 = arith.subf %63, %62 : vector<256x128xf32>
    %65 = math.exp %64 : vector<256x128xf32>
    %cst_21 = arith.constant 1.000000e+00 : f32
    %66 = vector.broadcast %cst_21 : f32 to vector<256x128xf32>
    %67 = arith.addf %66, %65 : vector<256x128xf32>
    %cst_22 = arith.constant 1.000000e+00 : f32
    %68 = vector.broadcast %cst_22 : f32 to vector<256x128xf32>
    %69 = arith.divf %68, %67 : vector<256x128xf32>
    %c0_23 = arith.constant 0 : index
    %c0_24 = arith.constant 0 : index
    %70 = vector.load %arg10[%c0_23, %c0_24] : memref<256x128xf32, #tpu.memory_space<vmem>>, vector<256x128xf32>
    tpu.vector_store %arg10[%c0_23, %c0_24], %69 {strides = array<i32>} : memref<256x128xf32, #tpu.memory_space<vmem>>, vector<256x128xf32>,
    return
  }
  func.func @transform_0(%arg0: i32) -> (i32, i32) {
    %c0_i32 = arith.constant 0 : i32
    %c0_i32_0 = arith.constant 0 : i32
    return %arg0, %c0_i32 : i32, i32
  }
  func.func @transform_1(%arg0: i32) -> (i32, i32) {
    %c0_i32 = arith.constant 0 : i32
    %c0_i32_0 = arith.constant 0 : i32
    %c0_i32_1 = arith.constant 0 : i32
    return %c0_i32, %c0_i32_0 : i32, i32
  }
  func.func @transform_2(%arg0: i32) -> (i32, i32) {
    %c0_i32 = arith.constant 0 : i32
    %c0_i32_0 = arith.constant 0 : i32
    %c0_i32_1 = arith.constant 0 : i32
    return %c0_i32, %c0_i32_0 : i32, i32
  }
  func.func @transform_3(%arg0: i32) -> (i32, i32) {
    %c0_i32 = arith.constant 0 : i32
    %c0_i32_0 = arith.constant 0 : i32
    %c0_i32_1 = arith.constant 0 : i32
    return %c0_i32, %c0_i32_0 : i32, i32
  }
  func.func @transform_4(%arg0: i32) -> (i32, i32) {
    %c0_i32 = arith.constant 0 : i32
    %c0_i32_0 = arith.constant 0 : i32
    %c0_i32_1 = arith.constant 0 : i32
    return %c0_i32, %c0_i32_0 : i32, i32
  }
  func.func @transform_5(%arg0: i32) -> (i32, i32) {
    %c0_i32 = arith.constant 0 : i32
    %c0_i32_0 = arith.constant 0 : i32
    %c0_i32_1 = arith.constant 0 : i32
    return %c0_i32, %c0_i32_0 : i32, i32
  }
  func.func @transform_6(%arg0: i32) -> (i32, i32) {
    %c0_i32 = arith.constant 0 : i32
    %c0_i32_0 = arith.constant 0 : i32
    %c0_i32_1 = arith.constant 0 : i32
    return %c0_i32, %c0_i32_0 : i32, i32
  }
  func.func @transform_7(%arg0: i32) -> (i32, i32) {
    %c0_i32 = arith.constant 0 : i32
    %c0_i32_0 = arith.constant 0 : i32
    %c0_i32_1 = arith.constant 0 : i32
    return %c0_i32, %c0_i32_0 : i32, i32
  }
  func.func @transform_8(%arg0: i32) -> (i32, i32) {
    %c0_i32 = arith.constant 0 : i32
    %c0_i32_0 = arith.constant 0 : i32
    %c0_i32_1 = arith.constant 0 : i32
    return %c0_i32, %c0_i32_0 : i32, i32
  }
  func.func @transform_9(%arg0: i32) -> (i32, i32) {
    %c0_i32 = arith.constant 0 : i32
    %c0_i32_0 = arith.constant 0 : i32
    return %arg0, %c0_i32 : i32, i32
  }
}

</mosaic_0001>

<llo_original>
// kernel: tpu_custom_call.1
$region0: #{tpu_custom_call.1}
  #allocation0 [shape = 'u32[]', space=smem, size = 0x4, offset = 0x4, fixed_abs, tag = 'smem constant byte address 0x4 - core index']
  #allocation1 [shape = 'u32[144,128]{1,0:T(1,128)}', space=vmem, size = 0x12000, scoped, tag = 'internal scratch']
  %s0 = inlined_call_operand.hbm [shape: f32[512,256], index: 0, kind: input, shape index: {}]
  %s1 = inlined_call_operand.hbm [shape: bf16[256,512], index: 1, kind: input, shape index: {}]
  %s2 = inlined_call_operand.vmem [shape: f32[1,512], index: 2, kind: input, shape index: {}]
  %s3 = inlined_call_operand.hbm [shape: f32[6,256], index: 3, kind: input, shape index: {}]
  %s4 = inlined_call_operand.vmem [shape: f32[4,256], index: 4, kind: input, shape index: {}]
  %s5 = inlined_call_operand.hbm [shape: bf16[512,256], index: 5, kind: input, shape index: {}]
  %s6 = inlined_call_operand.vmem [shape: f32[1,256], index: 6, kind: input, shape index: {}]
  %s7 = inlined_call_operand.hbm [shape: bf16[256,128], index: 7, kind: input, shape index: {}]
  %s8 = inlined_call_operand.vmem [shape: f32[1,128], index: 8, kind: input, shape index: {}]
  %s9 = inlined_call_operand.hbm [shape: f32[512,128], index: 9, kind: output, shape index: {}]
  %s10 = sld [smem:[#allocation0]]
  $region89: #{tpu_custom_call.1} parent=0
    _
  %s12 = ssub.s32 1, %s10
  %s13 = scalar_select 0, %s12, %s10
  $region1: #{tpu_custom_call.1} parent=0
    #allocation2 [shape = 'u8[524288]{0}', space=vmem, size = 0x80000, scoped, tag = 'input window, operand 0']
    #allocation3 [shape = 's32[2]{0}', space=sflag, size = 0x8, scoped, tag = 'scoped memory for tpu_custom_call.1']
    #allocation4 [shape = 's32[2]{0}', space=sflag, size = 0x8, scoped, tag = 'scoped memory for tpu_custom_call.1']
    #allocation5 [shape = 'u8[262144]{0}', space=vmem, size = 0x40000, scoped, tag = 'input window, operand 1, single buffered']
    #allocation6 [shape = 's32[1]{0}', space=sflag, size = 0x4, scoped, tag = 'scoped memory for tpu_custom_call.1']
    #allocation7 [shape = 'u8[8192]{0}', space=vmem, size = 0x2000, scoped, tag = 'input window, operand 3, single buffered']
    #allocation8 [shape = 'u8[262144]{0}', space=vmem, size = 0x40000, scoped, tag = 'input window, operand 5, single buffered']
    #allocation9 [shape = 's32[1]{0}', space=sflag, size = 0x4, scoped, tag = 'scoped memory for tpu_custom_call.1']
    #allocation10 [shape = 'u8[65536]{0}', space=vmem, size = 0x10000, scoped, tag = 'input window, operand 7, single buffered']
    #allocation11 [shape = 'u8[262144]{0}', space=vmem, size = 0x40000, scoped, tag = 'output window, operand 0']
    %14 = vsyncpa [#allocation3], 0
    %s15 = scalar_lea.sflag [#allocation3], 1
    %16 = vsyncpa %s15, 0
    %17 = vsyncpa [#allocation6], 0
    %18 = vsyncpa [#allocation9], 0
    %19 = vsyncpa [#allocation4], 0
    %s20 = scalar_lea.sflag [#allocation4], 1
    %21 = vsyncpa %s20, 0
    loop: start=0, step=1, limit=4
    $region2: #{tpu_custom_call.1} parent=1 // loop_pre_header
      _
    $region3: #{tpu_custom_call.1} parent=1 // loop_header
      %s23 = sphi 0, %s27
      %p24 = scmp.ge.s32.totalorder %s23, 4
      %s33 = sphi 0, %s35
      %s36 = sphi 0, %s33
      %s37 = sphi 0, %s36
      %s53 = sphi 0, %s37
      %s57 = sphi 0, %s57
      %s59 = sphi 0, %s57
      %s60 = sphi 0, %s59
      %s74 = sphi 0, %s60
      %s78 = sphi 0, %s78
      %s80 = sphi 0, %s78
      %s81 = sphi 0, %s80
      %s95 = sphi 0, %s81
      %s99 = sphi 0, %s99
      %s101 = sphi 0, %s99
      %s102 = sphi 0, %s101
      %s116 = sphi 0, %s102
      %s120 = sphi 0, %s120
      %s122 = sphi 0, %s120
      %s123 = sphi 0, %s122
      %s137 = sphi 0, %s123
      %s141 = sphi 0, %s141
      %s143 = sphi 0, %s141
      %s144 = sphi 0, %s143
      %s158 = sphi 0, %s144
      %s162 = sphi 0, %s162
      %s164 = sphi 0, %s162
      %s165 = sphi 0, %s164
      %s179 = sphi 0, %s165
      %s183 = sphi 0, %s183
      %s185 = sphi 0, %s183
      %s186 = sphi 0, %s185
      %s200 = sphi 0, %s186
      %s204 = sphi 0, %s204
      %s206 = sphi 0, %s204
      %s207 = sphi 0, %s206
      %s221 = sphi 0, %s207
      %s227 = sphi 0, %s229
      %s230 = sphi 0, %s227
      %s231 = sphi 0, %s230
      %s247 = sphi 0, %s231
    $region4: #{tpu_custom_call.1} parent=1 // loop_header_branch
      %26 = sbr.rel (%p24) target = $region8
    $region5: #{tpu_custom_call.1} parent=1 // loop_body
      %s28 = ssub.s32 %s23, 1
      %s29 = ssub.s32 %s23, 2
      %s30 = sadd.s32 %s23, 1
      %s31 = ssub.s32 %s23, %s30
      %p32 = scmp.eq.s32.totalorder %s31, 0
      %s34 = sadd.s32 %s33, 1
      %s35 = scalar_select %p32, %s33, %s34
      %p38 = pneg %p32
      %p39 = scmp.eq.s32.totalorder %s23, 1
      %p40 = por %p38, %p39
      %p41 = scmp.ne.s32.totalorder %s33, %s36
      %p42 = scmp.eq.s32.totalorder %s23, 0
      %p43 = por %p41, %p42
      %p44 = scmp.ne.s32.totalorder %s33, %s36
      %p45 = scmp.eq.s32.totalorder %s28, 1
      %p46 = por %p44, %p45
      %p47 = scmp.ne.s32.totalorder %s36, %s37
      %p48 = scmp.eq.s32.totalorder %s28, 0
      %p49 = por %p47, %p48
      %p50 = scmp.ne.s32.totalorder %s36, %s37
      %p51 = scmp.eq.s32.totalorder %s29, 1
      %p52 = por %p50, %p51
      %p54 = scmp.ne.s32.totalorder %s37, %s53
      %p55 = scmp.eq.s32.totalorder %s29, 0
      %p56 = por %p54, %p55
      %s58 = sadd.s32 %s57, 1
      %p61 = scmp.eq.s32.totalorder %s23, 1
      %p62 = scmp.ne.s32.totalorder %s57, %s59
      %p63 = scmp.eq.s32.totalorder %s23, 0
      %p64 = por %p62, %p63
      %p65 = scmp.ne.s32.totalorder %s57, %s59
      %p66 = scmp.eq.s32.totalorder %s28, 1
      %p67 = por %p65, %p66
      %p68 = scmp.ne.s32.totalorder %s59, %s60
      %p69 = scmp.eq.s32.totalorder %s28, 0
      %p70 = por %p68, %p69
      %p71 = scmp.ne.s32.totalorder %s59, %s60
      %p72 = scmp.eq.s32.totalorder %s29, 1
      %p73 = por %p71, %p72
      %p75 = scmp.ne.s32.totalorder %s60, %s74
      %p76 = scmp.eq.s32.totalorder %s29, 0
      %p77 = por %p75, %p76
      %s79 = sadd.s32 %s78, 1
      %p82 = scmp.eq.s32.totalorder %s23, 1
      %p83 = scmp.ne.s32.totalorder %s78, %s80
      %p84 = scmp.eq.s32.totalorder %s23, 0
      %p85 = por %p83, %p84
      %p86 = scmp.ne.s32.totalorder %s78, %s80
      %p87 = scmp.eq.s32.totalorder %s28, 1
      %p88 = por %p86, %p87
      %p89 = scmp.ne.s32.totalorder %s80, %s81
      %p90 = scmp.eq.s32.totalorder %s28, 0
      %p91 = por %p89, %p90
      %p92 = scmp.ne.s32.totalorder %s80, %s81
      %p93 = scmp.eq.s32.totalorder %s29, 1
      %p94 = por %p92, %p93
      %p96 = scmp.ne.s32.totalorder %s81, %s95
      %p97 = scmp.eq.s32.totalorder %s29, 0
      %p98 = por %p96, %p97
      %s100 = sadd.s32 %s99, 1
      %p103 = scmp.eq.s32.totalorder %s23, 1
      %p104 = scmp.ne.s32.totalorder %s99, %s101
      %p105 = scmp.eq.s32.totalorder %s23, 0
      %p106 = por %p104, %p105
      %p107 = scmp.ne.s32.totalorder %s99, %s101
      %p108 = scmp.eq.s32.totalorder %s28, 1
      %p109 = por %p107, %p108
      %p110 = scmp.ne.s32.totalorder %s101, %s102
      %p111 = scmp.eq.s32.totalorder %s28, 0
      %p112 = por %p110, %p111
      %p113 = scmp.ne.s32.totalorder %s101, %s102
      %p114 = scmp.eq.s32.totalorder %s29, 1
      %p115 = por %p113, %p114
      %p117 = scmp.ne.s32.totalorder %s102, %s116
      %p118 = scmp.eq.s32.totalorder %s29, 0
      %p119 = por %p117, %p118
      %s121 = sadd.s32 %s120, 1
      %p124 = scmp.eq.s32.totalorder %s23, 1
      %p125 = scmp.ne.s32.totalorder %s120, %s122
      %p126 = scmp.eq.s32.totalorder %s23, 0
      %p127 = por %p125, %p126
      %p128 = scmp.ne.s32.totalorder %s120, %s122
      %p129 = scmp.eq.s32.totalorder %s28, 1
      %p130 = por %p128, %p129
      %p131 = scmp.ne.s32.totalorder %s122, %s123
      %p132 = scmp.eq.s32.totalorder %s28, 0
      %p133 = por %p131, %p132
      %p134 = scmp.ne.s32.totalorder %s122, %s123
      %p135 = scmp.eq.s32.totalorder %s29, 1
      %p136 = por %p134, %p135
      %p138 = scmp.ne.s32.totalorder %s123, %s137
      %p139 = scmp.eq.s32.totalorder %s29, 0
      %p140 = por %p138, %p139
      %s142 = sadd.s32 %s141, 1
      %p145 = scmp.eq.s32.totalorder %s23, 1
      %p146 = scmp.ne.s32.totalorder %s141, %s143
      %p147 = scmp.eq.s32.totalorder %s23, 0
      %p148 = por %p146, %p147
      %p149 = scmp.ne.s32.totalorder %s141, %s143
      %p150 = scmp.eq.s32.totalorder %s28, 1
      %p151 = por %p149, %p150
      %p152 = scmp.ne.s32.totalorder %s143, %s144
      %p153 = scmp.eq.s32.totalorder %s28, 0
      %p154 = por %p152, %p153
      %p155 = scmp.ne.s32.totalorder %s143, %s144
      %p156 = scmp.eq.s32.totalorder %s29, 1
      %p157 = por %p155, %p156
      %p159 = scmp.ne.s32.totalorder %s144, %s158
      %p160 = scmp.eq.s32.totalorder %s29, 0
      %p161 = por %p159, %p160
      %s163 = sadd.s32 %s162, 1
      %p166 = scmp.eq.s32.totalorder %s23, 1
      %p167 = scmp.ne.s32.totalorder %s162, %s164
      %p168 = scmp.eq.s32.totalorder %s23, 0
      %p169 = por %p167, %p168
      %p170 = scmp.ne.s32.totalorder %s162, %s164
      %p171 = scmp.eq.s32.totalorder %s28, 1
      %p172 = por %p170, %p171
      %p173 = scmp.ne.s32.totalorder %s164, %s165
      %p174 = scmp.eq.s32.totalorder %s28, 0
      %p175 = por %p173, %p174
      %p176 = scmp.ne.s32.totalorder %s164, %s165
      %p177 = scmp.eq.s32.totalorder %s29, 1
      %p178 = por %p176, %p177
      %p180 = scmp.ne.s32.totalorder %s165, %s179
      %p181 = scmp.eq.s32.totalorder %s29, 0
      %p182 = por %p180, %p181
      %s184 = sadd.s32 %s183, 1
      %p187 = scmp.eq.s32.totalorder %s23, 1
      %p188 = scmp.ne.s32.totalorder %s183, %s185
      %p189 = scmp.eq.s32.totalorder %s23, 0
      %p190 = por %p188, %p189
      %p191 = scmp.ne.s32.totalorder %s183, %s185
      %p192 = scmp.eq.s32.totalorder %s28, 1
      %p193 = por %p191, %p192
      %p194 = scmp.ne.s32.totalorder %s185, %s186
      %p195 = scmp.eq.s32.totalorder %s28, 0
      %p196 = por %p194, %p195
      %p197 = scmp.ne.s32.totalorder %s185, %s186
      %p198 = scmp.eq.s32.totalorder %s29, 1
      %p199 = por %p197, %p198
      %p201 = scmp.ne.s32.totalorder %s186, %s200
      %p202 = scmp.eq.s32.totalorder %s29, 0
      %p203 = por %p201, %p202
      %s205 = sadd.s32 %s204, 1
      %p208 = scmp.eq.s32.totalorder %s23, 1
      %p209 = scmp.ne.s32.totalorder %s204, %s206
      %p210 = scmp.eq.s32.totalorder %s23, 0
      %p211 = por %p209, %p210
      %p212 = scmp.ne.s32.totalorder %s204, %s206
      %p213 = scmp.eq.s32.totalorder %s28, 1
      %p214 = por %p212, %p213
      %p215 = scmp.ne.s32.totalorder %s206, %s207
      %p216 = scmp.eq.s32.totalorder %s28, 0
      %p217 = por %p215, %p216
      %p218 = scmp.ne.s32.totalorder %s206, %s207
      %p219 = scmp.eq.s32.totalorder %s29, 1
      %p220 = por %p218, %p219
      %p222 = scmp.ne.s32.totalorder %s207, %s221
      %p223 = scmp.eq.s32.totalorder %s29, 0
      %p224 = por %p222, %p223
      %s225 = ssub.s32 %s23, %s30
      %p226 = scmp.eq.s32.totalorder %s225, 0
      %s228 = sadd.s32 %s227, 1
      %s229 = scalar_select %p226, %s227, %s228
      %p232 = pneg %p226
      %p233 = scmp.eq.s32.totalorder %s23, 1
      %p234 = por %p232, %p233
      %p235 = scmp.ne.s32.totalorder %s227, %s230
      %p236 = scmp.eq.s32.totalorder %s23, 0
      %p237 = por %p235, %p236
      %p238 = scmp.ne.s32.totalorder %s227, %s230
      %p239 = scmp.eq.s32.totalorder %s28, 1
      %p240 = por %p238, %p239
      %p241 = scmp.ne.s32.totalorder %s230, %s231
      %p242 = scmp.eq.s32.totalorder %s28, 0
      %p243 = por %p241, %p242
      %p244 = scmp.ne.s32.totalorder %s230, %s231
      %p245 = scmp.eq.s32.totalorder %s29, 1
      %p246 = por %p244, %p245
      %p248 = scmp.ne.s32.totalorder %s231, %s247
      %p249 = scmp.eq.s32.totalorder %s29, 0
      %p250 = por %p248, %p249
      %p251 = scmp.le.s32.totalorder 1, %s23
      %p252 = scmp.lt.s32.totalorder %s23, 3
      %p253 = pnand %p251, %p252
      %p254 = pneg %p253
      // Predicated region
      $region9: #{tpu_custom_call.1} parent=5 // pred_check
        _
      $region10: #{tpu_custom_call.1} parent=5 // pred_check_branch
        %256 = sbr.rel (%p253) target = $region12
      $region11: #{tpu_custom_call.1} parent=5 // pred_region
        %s257 = ssub.s32 %s23, 1
        // Predicated region
        $region13: #{tpu_custom_call.1} parent=11 // pred_check
          %p258 = pneg %p70
        $region14: #{tpu_custom_call.1} parent=11 // pred_check_branch
          %260 = sbr.rel (%p258) target = $region16
        $region15: #{tpu_custom_call.1} parent=11 // pred_region
          %s262 = ssub.s32 8192, 8192
          %263 = vsyncadd [#allocation6], %s262
          %s264 = sshll.u32 [#allocation5], 4
          %s265 = int_to_ptr.vmem [resolvable:$true] %s264
          %270 = dma.hbm_to_vmem [thread:$0]  %s1, 8192, %s265, [#allocation6], 256, 256, 16
        $region16: #{tpu_custom_call.1} parent=11 // pred_fallthru
          _
        // Predicated region
        $region17: #{tpu_custom_call.1} parent=11 // pred_check
          %p271 = pneg %p91
        $region18: #{tpu_custom_call.1} parent=11 // pred_check_branch
          %273 = sbr.rel (%p271) target = $region20
        $region19: #{tpu_custom_call.1} parent=11 // pred_region
          _
        $region20: #{tpu_custom_call.1} parent=11 // pred_fallthru
          _
        // Predicated region
        $region21: #{tpu_custom_call.1} parent=11 // pred_check
          %p274 = pneg %p112
        $region22: #{tpu_custom_call.1} parent=11 // pred_check_branch
          %276 = sbr.rel (%p274) target = $region24
        $region23: #{tpu_custom_call.1} parent=11 // pred_region
          %s278 = ssub.s32 256, 256
          %279 = vsyncadd [#allocation6], %s278
          %s281 = sshll.u32 [#allocation7], 4
          %s282 = int_to_ptr.vmem [resolvable:$true] %s281
          %284 = dma.hbm_to_vmem [thread:$0]  %s3, 256, %s282, [#allocation6]
        $region24: #{tpu_custom_call.1} parent=11 // pred_fallthru
          _
        // Predicated region
        $region25: #{tpu_custom_call.1} parent=11 // pred_check
          %p285 = pneg %p133
        $region26: #{tpu_custom_call.1} parent=11 // pred_check_branch
          %287 = sbr.rel (%p285) target = $region28
        $region27: #{tpu_custom_call.1} parent=11 // pred_region
          _
        $region28: #{tpu_custom_call.1} parent=11 // pred_fallthru
          _
        // Predicated region
        $region29: #{tpu_custom_call.1} parent=11 // pred_check
          %p288 = pneg %p154
        $region30: #{tpu_custom_call.1} parent=11 // pred_check_branch
          %290 = sbr.rel (%p288) target = $region32
        $region31: #{tpu_custom_call.1} parent=11 // pred_region
          %s292 = ssub.s32 8192, 8192
          %293 = vsyncadd [#allocation9], %s292
          %s294 = sshll.u32 [#allocation8], 4
          %s295 = int_to_ptr.vmem [resolvable:$true] %s294
          %300 = dma.hbm_to_vmem [thread:$0]  %s5, 8192, %s295, [#allocation9], 128, 128, 8
        $region32: #{tpu_custom_call.1} parent=11 // pred_fallthru
          _
        // Predicated region
        $region33: #{tpu_custom_call.1} parent=11 // pred_check
          %p301 = pneg %p175
        $region34: #{tpu_custom_call.1} parent=11 // pred_check_branch
          %303 = sbr.rel (%p301) target = $region36
        $region35: #{tpu_custom_call.1} parent=11 // pred_region
          _
        $region36: #{tpu_custom_call.1} parent=11 // pred_fallthru
          _
        // Predicated region
        $region37: #{tpu_custom_call.1} parent=11 // pred_check
          %p304 = pneg %p196
        $region38: #{tpu_custom_call.1} parent=11 // pred_check_branch
          %306 = sbr.rel (%p304) target = $region40
        $region39: #{tpu_custom_call.1} parent=11 // pred_region
          %s308 = ssub.s32 2048, 2048
          %309 = vsyncadd [#allocation9], %s308
          %s310 = sshll.u32 [#allocation10], 4
          %s311 = int_to_ptr.vmem [resolvable:$true] %s310
          %316 = dma.hbm_to_vmem [thread:$0]  %s7, 2048, %s311, [#allocation9], 64, 64, 4
        $region40: #{tpu_custom_call.1} parent=11 // pred_fallthru
          _
        // Predicated region
        $region41: #{tpu_custom_call.1} parent=11 // pred_check
          %p317 = pneg %p217
        $region42: #{tpu_custom_call.1} parent=11 // pred_check_branch
          %319 = sbr.rel (%p317) target = $region44
        $region43: #{tpu_custom_call.1} parent=11 // pred_region
          _
        $region44: #{tpu_custom_call.1} parent=11 // pred_fallthru
          _
      $region12: #{tpu_custom_call.1} parent=5 // pred_fallthru
        _
      %p320 = scmp.lt.s32.totalorder %s23, 2
      // Predicated region
      $region45: #{tpu_custom_call.1} parent=5 // pred_check
        %p321 = pneg %p320
      $region46: #{tpu_custom_call.1} parent=5 // pred_check_branch
        %323 = sbr.rel (%p321) target = $region48
      $region47: #{tpu_custom_call.1} parent=5 // pred_region
        // Predicated region
        $region49: #{tpu_custom_call.1} parent=47 // pred_check
          %p324 = pneg %p43
        $region50: #{tpu_custom_call.1} parent=47 // pred_check_branch
          %326 = sbr.rel (%p324) target = $region52
        $region51: #{tpu_custom_call.1} parent=47 // pred_region
          %s327 = sand.u32 %s33, 1
          %s328 = scalar_lea.sflag [#allocation3], %s327
          %s329 = sand.u32 %s33, 1
          %s330 = smul.addr %s329, 512
          %s331 = scalar_lea.vmem [#allocation2], %s330
          %s332 = smul.u32 32, %s23
          %s334 = ssub.s32 8192, 8192
          %335 = vsyncadd %s328, %s334
          %s336 = smul.addr %s332, 2
          %s337 = smul.addr %s336, 128
          %s338 = scalar_lea.hbm %s0, %s337
          %s339 = sshll.u32 %s331, 4
          %s340 = int_to_ptr.vmem [resolvable:$true] %s339
          %345 = dma.hbm_to_vmem [thread:$0]  %s338, 8192, %s340, %s328, 256, 256, 16
        $region52: #{tpu_custom_call.1} parent=47 // pred_fallthru
          _
      $region48: #{tpu_custom_call.1} parent=5 // pred_fallthru
        _
      %p346 = scmp.le.s32.totalorder 1, %s23
      %p347 = scmp.lt.s32.totalorder %s23, 3
      %p348 = pnand %p346, %p347
      %p349 = pneg %p348
      // Predicated region
      $region53: #{tpu_custom_call.1} parent=5 // pred_check
        _
      $region54: #{tpu_custom_call.1} parent=5 // pred_check_branch
        %351 = sbr.rel (%p348) target = $region56
      $region55: #{tpu_custom_call.1} parent=5 // pred_region
        %s352 = ssub.s32 %s23, 1
        %s353 = sand.u32 %s36, 1
        %s354 = scalar_lea.sflag [#allocation3], %s353
        %s355 = sand.u32 %s36, 1
        %s356 = smul.addr %s355, 512
        %s357 = scalar_lea.vmem [#allocation2], %s356
        // Predicated region
        $region57: #{tpu_custom_call.1} parent=55 // pred_check
          %p358 = pneg %p49
        $region58: #{tpu_custom_call.1} parent=55 // pred_check_branch
          %360 = sbr.rel (%p358) target = $region60
        $region59: #{tpu_custom_call.1} parent=55 // pred_region
          %361 = dma.done %s354, 8192
        $region60: #{tpu_custom_call.1} parent=55 // pred_fallthru
          _
        // Predicated region
        $region61: #{tpu_custom_call.1} parent=55 // pred_check
          %p362 = pneg %p70
        $region62: #{tpu_custom_call.1} parent=55 // pred_check_branch
          %364 = sbr.rel (%p362) target = $region64
        $region63: #{tpu_custom_call.1} parent=55 // pred_region
          %365 = dma.done [#allocation6], 8192
        $region64: #{tpu_custom_call.1} parent=55 // pred_fallthru
          _
        // Predicated region
        $region65: #{tpu_custom_call.1} parent=55 // pred_check
          %p366 = pneg %p112
        $region66: #{tpu_custom_call.1} parent=55 // pred_check_branch
          %368 = sbr.rel (%p366) target = $region68
        $region67: #{tpu_custom_call.1} parent=55 // pred_region
          %369 = dma.done [#allocation6], 256
        $region68: #{tpu_custom_call.1} parent=55 // pred_fallthru
          _
        // Predicated region
        $region69: #{tpu_custom_call.1} parent=55 // pred_check
          %p370 = pneg %p154
        $region70: #{tpu_custom_call.1} parent=55 // pred_check_branch
          %372 = sbr.rel (%p370) target = $region72
        $region71: #{tpu_custom_call.1} parent=55 // pred_region
          %373 = dma.done [#allocation9], 8192
        $region72: #{tpu_custom_call.1} parent=55 // pred_fallthru
          _
        // Predicated region
        $region73: #{tpu_custom_call.1} parent=55 // pred_check
          %p374 = pneg %p196
        $region74: #{tpu_custom_call.1} parent=55 // pred_check_branch
          %376 = sbr.rel (%p374) target = $region76
        $region75: #{tpu_custom_call.1} parent=55 // pred_region
          %377 = dma.done [#allocation9], 2048
        $region76: #{tpu_custom_call.1} parent=55 // pred_fallthru
          _
        %s378 = sand.u32 %s36, 1
        %s379 = scalar_lea.sflag [#allocation3], %s378
        %s380 = sand.u32 %s36, 1
        %s381 = smul.addr %s380, 512
        %s382 = scalar_lea.vmem [#allocation2], %s381
        %p383 = pneg %p49
        %p384 = pneg %p46
        %p385 = pneg %p70
        %p386 = pneg %p67
        %p387 = pneg %p91
        %p388 = pneg %p88
        %p389 = pneg %p112
        %p390 = pneg %p109
        %p391 = pneg %p133
        %p392 = pneg %p130
        %p393 = pneg %p154
        %p394 = pneg %p151
        %p395 = pneg %p175
        %p396 = pneg %p172
        %p397 = pneg %p196
        %p398 = pneg %p193
        %p399 = pneg %p217
        %p400 = pneg %p214
        %p401 = pneg %p243
        %p402 = pneg %p240
        %s403 = sand.u32 %s230, 1
        %s404 = scalar_lea.sflag [#allocation4], %s403
        %s405 = sand.u32 %s230, 1
        %s406 = smul.addr %s405, 256
        %s407 = scalar_lea.vmem [#allocation11], %s406
        %s408 = smul.u32 32, %s28
        %s409 = smul.u32 32, %s28
        %v411 = vld [vmem:[%s357] sm:$0xff]
        %v412 = vld [vmem:[%s357 + $0x8] sm:$0xff]
        %v413 = vld [vmem:[%s357 + $0x10] sm:$0xff]
        %v414 = vld [vmem:[%s357 + $0x18] sm:$0xff]
        %v415 = vld [vmem:[%s357 + $0x20] sm:$0xff]
        %v416 = vld [vmem:[%s357 + $0x28] sm:$0xff]
        %v417 = vld [vmem:[%s357 + $0x30] sm:$0xff]
        %v418 = vld [vmem:[%s357 + $0x38] sm:$0xff]
        %v419 = vld [vmem:[%s357 + $0x40] sm:$0xff]
        %v420 = vld [vmem:[%s357 + $0x48] sm:$0xff]
        %v421 = vld [vmem:[%s357 + $0x50] sm:$0xff]
        %v422 = vld [vmem:[%s357 + $0x58] sm:$0xff]
        %v423 = vld [vmem:[%s357 + $0x60] sm:$0xff]
        %v424 = vld [vmem:[%s357 + $0x68] sm:$0xff]
        %v425 = vld [vmem:[%s357 + $0x70] sm:$0xff]
        %v426 = vld [vmem:[%s357 + $0x78] sm:$0xff]
        %v427 = vld [vmem:[%s357 + $0x80] sm:$0xff]
        %v428 = vld [vmem:[%s357 + $0x88] sm:$0xff]
        %v429 = vld [vmem:[%s357 + $0x90] sm:$0xff]
        %v430 = vld [vmem:[%s357 + $0x98] sm:$0xff]
        %v431 = vld [vmem:[%s357 + $0xa0] sm:$0xff]
        %v432 = vld [vmem:[%s357 + $0xa8] sm:$0xff]
        %v433 = vld [vmem:[%s357 + $0xb0] sm:$0xff]
        %v434 = vld [vmem:[%s357 + $0xb8] sm:$0xff]
        %v435 = vld [vmem:[%s357 + $0xc0] sm:$0xff]
        %v436 = vld [vmem:[%s357 + $0xc8] sm:$0xff]
        %v437 = vld [vmem:[%s357 + $0xd0] sm:$0xff]
        %v438 = vld [vmem:[%s357 + $0xd8] sm:$0xff]
        %v439 = vld [vmem:[%s357 + $0xe0] sm:$0xff]
        %v440 = vld [vmem:[%s357 + $0xe8] sm:$0xff]
        %v441 = vld [vmem:[%s357 + $0xf0] sm:$0xff]
        %v442 = vld [vmem:[%s357 + $0xf8] sm:$0xff]
        %v443 = vld [vmem:[%s357 + $0x100] sm:$0xff]
        %v444 = vld [vmem:[%s357 + $0x108] sm:$0xff]
        %v445 = vld [vmem:[%s357 + $0x110] sm:$0xff]
        %v446 = vld [vmem:[%s357 + $0x118] sm:$0xff]
        %v447 = vld [vmem:[%s357 + $0x120] sm:$0xff]
        %v448 = vld [vmem:[%s357 + $0x128] sm:$0xff]
        %v449 = vld [vmem:[%s357 + $0x130] sm:$0xff]
        %v450 = vld [vmem:[%s357 + $0x138] sm:$0xff]
        %v451 = vld [vmem:[%s357 + $0x140] sm:$0xff]
        %v452 = vld [vmem:[%s357 + $0x148] sm:$0xff]
        %v453 = vld [vmem:[%s357 + $0x150] sm:$0xff]
        %v454 = vld [vmem:[%s357 + $0x158] sm:$0xff]
        %v455 = vld [vmem:[%s357 + $0x160] sm:$0xff]
        %v456 = vld [vmem:[%s357 + $0x168] sm:$0xff]
        %v457 = vld [vmem:[%s357 + $0x170] sm:$0xff]
        %v458 = vld [vmem:[%s357 + $0x178] sm:$0xff]
        %v459 = vld [vmem:[%s357 + $0x180] sm:$0xff]
        %v460 = vld [vmem:[%s357 + $0x188] sm:$0xff]
        %v461 = vld [vmem:[%s357 + $0x190] sm:$0xff]
        %v462 = vld [vmem:[%s357 + $0x198] sm:$0xff]
        %v463 = vld [vmem:[%s357 + $0x1a0] sm:$0xff]
        %v464 = vld [vmem:[%s357 + $0x1a8] sm:$0xff]
        %v465 = vld [vmem:[%s357 + $0x1b0] sm:$0xff]
        %v466 = vld [vmem:[%s357 + $0x1b8] sm:$0xff]
        %v467 = vld [vmem:[%s357 + $0x1c0] sm:$0xff]
        %v468 = vld [vmem:[%s357 + $0x1c8] sm:$0xff]
        %v469 = vld [vmem:[%s357 + $0x1d0] sm:$0xff]
        %v470 = vld [vmem:[%s357 + $0x1d8] sm:$0xff]
        %v471 = vld [vmem:[%s357 + $0x1e0] sm:$0xff]
        %v472 = vld [vmem:[%s357 + $0x1e8] sm:$0xff]
        %v473 = vld [vmem:[%s357 + $0x1f0] sm:$0xff]
        %v474 = vld [vmem:[%s357 + $0x1f8] sm:$0xff]
        %v475 = vpack.c.bf16 %v413, %v411
        %v476 = vpack.c.bf16 %v414, %v412
        %v477 = vpack.c.bf16 %v417, %v415
        %v478 = vpack.c.bf16 %v418, %v416
        %v479 = vpack.c.bf16 %v421, %v419
        %v480 = vpack.c.bf16 %v422, %v420
        %v481 = vpack.c.bf16 %v425, %v423
        %v482 = vpack.c.bf16 %v426, %v424
        %v483 = vpack.c.bf16 %v429, %v427
        %v484 = vpack.c.bf16 %v430, %v428
        %v485 = vpack.c.bf16 %v433, %v431
        %v486 = vpack.c.bf16 %v434, %v432
        %v487 = vpack.c.bf16 %v437, %v435
        %v488 = vpack.c.bf16 %v438, %v436
        %v489 = vpack.c.bf16 %v441, %v439
        %v490 = vpack.c.bf16 %v442, %v440
        %v491 = vpack.c.bf16 %v445, %v443
        %v492 = vpack.c.bf16 %v446, %v444
        %v493 = vpack.c.bf16 %v449, %v447
        %v494 = vpack.c.bf16 %v450, %v448
        %v495 = vpack.c.bf16 %v453, %v451
        %v496 = vpack.c.bf16 %v454, %v452
        %v497 = vpack.c.bf16 %v457, %v455
        %v498 = vpack.c.bf16 %v458, %v456
        %v499 = vpack.c.bf16 %v461, %v459
        %v500 = vpack.c.bf16 %v462, %v460
        %v501 = vpack.c.bf16 %v465, %v463
        %v502 = vpack.c.bf16 %v466, %v464
        %v503 = vpack.c.bf16 %v469, %v467
        %v504 = vpack.c.bf16 %v470, %v468
        %v505 = vpack.c.bf16 %v473, %v471
        %v506 = vpack.c.bf16 %v474, %v472
        %v507 = vld [vmem:[#allocation5] sm:$0xff]
        %v508 = vld [vmem:[#allocation5 + $0x8] sm:$0xff]
        %v509 = vld [vmem:[#allocation5 + $0x10] sm:$0xff]
        %v510 = vld [vmem:[#allocation5 + $0x18] sm:$0xff]
        %v511 = vld [vmem:[#allocation5 + $0x20] sm:$0xff]
        %v512 = vld [vmem:[#allocation5 + $0x28] sm:$0xff]
        %v513 = vld [vmem:[#allocation5 + $0x30] sm:$0xff]
        %v514 = vld [vmem:[#allocation5 + $0x38] sm:$0xff]
        %v515 = vld [vmem:[#allocation5 + $0x40] sm:$0xff]
        %v516 = vld [vmem:[#allocation5 + $0x48] sm:$0xff]
        %v517 = vld [vmem:[#allocation5 + $0x50] sm:$0xff]
        %v518 = vld [vmem:[#allocation5 + $0x58] sm:$0xff]
        %v519 = vld [vmem:[#allocation5 + $0x60] sm:$0xff]
        %v520 = vld [vmem:[#allocation5 + $0x68] sm:$0xff]
        %v521 = vld [vmem:[#allocation5 + $0x70] sm:$0xff]
        %v522 = vld [vmem:[#allocation5 + $0x78] sm:$0xff]
        %v523 = vld [vmem:[#allocation5 + $0x80] sm:$0xff]
        %v524 = vld [vmem:[#allocation5 + $0x88] sm:$0xff]
        %v525 = vld [vmem:[#allocation5 + $0x90] sm:$0xff]
        %v526 = vld [vmem:[#allocation5 + $0x98] sm:$0xff]
        %v527 = vld [vmem:[#allocation5 + $0xa0] sm:$0xff]
        %v528 = vld [vmem:[#allocation5 + $0xa8] sm:$0xff]
        %v529 = vld [vmem:[#allocation5 + $0xb0] sm:$0xff]
        %v530 = vld [vmem:[#allocation5 + $0xb8] sm:$0xff]
        %v531 = vld [vmem:[#allocation5 + $0xc0] sm:$0xff]
        %v532 = vld [vmem:[#allocation5 + $0xc8] sm:$0xff]
        %v533 = vld [vmem:[#allocation5 + $0xd0] sm:$0xff]
        %v534 = vld [vmem:[#allocation5 + $0xd8] sm:$0xff]
        %v535 = vld [vmem:[#allocation5 + $0xe0] sm:$0xff]
        %v536 = vld [vmem:[#allocation5 + $0xe8] sm:$0xff]
        %v537 = vld [vmem:[#allocation5 + $0xf0] sm:$0xff]
        %v538 = vld [vmem:[#allocation5 + $0xf8] sm:$0xff]
        %v539 = vld [vmem:[#allocation5 + $0x100] sm:$0xff]
        %v540 = vld [vmem:[#allocation5 + $0x108] sm:$0xff]
        %v541 = vld [vmem:[#allocation5 + $0x110] sm:$0xff]
        %v542 = vld [vmem:[#allocation5 + $0x118] sm:$0xff]
        %v543 = vld [vmem:[#allocation5 + $0x120] sm:$0xff]
        %v544 = vld [vmem:[#allocation5 + $0x128] sm:$0xff]
        %v545 = vld [vmem:[#allocation5 + $0x130] sm:$0xff]
        %v546 = vld [vmem:[#allocation5 + $0x138] sm:$0xff]
        %v547 = vld [vmem:[#allocation5 + $0x140] sm:$0xff]
        %v548 = vld [vmem:[#allocation5 + $0x148] sm:$0xff]
        %v549 = vld [vmem:[#allocation5 + $0x150] sm:$0xff]
        %v550 = vld [vmem:[#allocation5 + $0x158] sm:$0xff]
        %v551 = vld [vmem:[#allocation5 + $0x160] sm:$0xff]
        %v552 = vld [vmem:[#allocation5 + $0x168] sm:$0xff]
        %v553 = vld [vmem:[#allocation5 + $0x170] sm:$0xff]
        %v554 = vld [vmem:[#allocation5 + $0x178] sm:$0xff]
        %v555 = vld [vmem:[#allocation5 + $0x180] sm:$0xff]
        %v556 = vld [vmem:[#allocation5 + $0x188] sm:$0xff]
        %v557 = vld [vmem:[#allocation5 + $0x190] sm:$0xff]
        %v558 = vld [vmem:[#allocation5 + $0x198] sm:$0xff]
        %v559 = vld [vmem:[#allocation5 + $0x1a0] sm:$0xff]
        %v560 = vld [vmem:[#allocation5 + $0x1a8] sm:$0xff]
        %v561 = vld [vmem:[#allocation5 + $0x1b0] sm:$0xff]
        %v562 = vld [vmem:[#allocation5 + $0x1b8] sm:$0xff]
        %v563 = vld [vmem:[#allocation5 + $0x1c0] sm:$0xff]
        %v564 = vld [vmem:[#allocation5 + $0x1c8] sm:$0xff]
        %v565 = vld [vmem:[#allocation5 + $0x1d0] sm:$0xff]
        %v566 = vld [vmem:[#allocation5 + $0x1d8] sm:$0xff]
        %v567 = vld [vmem:[#allocation5 + $0x1e0] sm:$0xff]
        %v568 = vld [vmem:[#allocation5 + $0x1e8] sm:$0xff]
        %v569 = vld [vmem:[#allocation5 + $0x1f0] sm:$0xff]
        %v570 = vld [vmem:[#allocation5 + $0x1f8] sm:$0xff]
        %v571 = vld [vmem:[%s2] sm:$0xf]
        %v573 = vlaneseq
        %v574 = vshrl.u32 %v573, 7
        %v575 = vsub.s32 0, %v574
        %v576 = vrot.slane %v571, %v575
        %v577 = vlaneseq
        %v578 = vshrl.u32 %v577, 7
        %v579 = vsub.s32 1, %v578
        %v580 = vrot.slane %v571, %v579
        %v581 = vlaneseq
        %v582 = vshrl.u32 %v581, 7
        %v583 = vsub.s32 2, %v582
        %v584 = vrot.slane %v571, %v583
        %v585 = vlaneseq
        %v586 = vshrl.u32 %v585, 7
        %v587 = vsub.s32 3, %v586
        %v588 = vrot.slane %v571, %v587
        %v657 = vunpack.c.l.b16 %v507
        %v658 = vunpack.c.h.b16 %v507
        %v659 = vunpack.c.l.b16 %v508
        %v660 = vunpack.c.h.b16 %v508
        %v661 = vunpack.c.l.b16 %v509
        %v662 = vunpack.c.h.b16 %v509
        %v663 = vunpack.c.l.b16 %v510
        %v664 = vunpack.c.h.b16 %v510
        %v665 = vunpack.c.l.b16 %v511
        %v666 = vunpack.c.h.b16 %v511
        %v667 = vunpack.c.l.b16 %v512
        %v668 = vunpack.c.h.b16 %v512
        %v669 = vunpack.c.l.b16 %v513
        %v670 = vunpack.c.h.b16 %v513
        %v671 = vunpack.c.l.b16 %v514
        %v672 = vunpack.c.h.b16 %v514
        %v673 = vunpack.c.l.b16 %v515
        %v674 = vunpack.c.h.b16 %v515
        %v675 = vunpack.c.l.b16 %v516
        %v676 = vunpack.c.h.b16 %v516
        %v677 = vunpack.c.l.b16 %v517
        %v678 = vunpack.c.h.b16 %v517
        %v679 = vunpack.c.l.b16 %v518
        %v680 = vunpack.c.h.b16 %v518
        %v681 = vunpack.c.l.b16 %v519
        %v682 = vunpack.c.h.b16 %v519
        %v683 = vunpack.c.l.b16 %v520
        %v684 = vunpack.c.h.b16 %v520
        %v685 = vunpack.c.l.b16 %v521
        %v686 = vunpack.c.h.b16 %v521
        %v687 = vunpack.c.l.b16 %v522
        %v688 = vunpack.c.h.b16 %v522
        %v689 = vunpack.c.l.b16 %v523
        %v690 = vunpack.c.h.b16 %v523
        %v691 = vunpack.c.l.b16 %v524
        %v692 = vunpack.c.h.b16 %v524
        %v693 = vunpack.c.l.b16 %v525
        %v694 = vunpack.c.h.b16 %v525
        %v695 = vunpack.c.l.b16 %v526
        %v696 = vunpack.c.h.b16 %v526
        %v697 = vunpack.c.l.b16 %v527
        %v698 = vunpack.c.h.b16 %v527
        %v699 = vunpack.c.l.b16 %v528
        %v700 = vunpack.c.h.b16 %v528
        %v701 = vunpack.c.l.b16 %v529
        %v702 = vunpack.c.h.b16 %v529
        %v703 = vunpack.c.l.b16 %v530
        %v704 = vunpack.c.h.b16 %v530
        %v705 = vunpack.c.l.b16 %v531
        %v706 = vunpack.c.h.b16 %v531
        %v707 = vunpack.c.l.b16 %v532
        %v708 = vunpack.c.h.b16 %v532
        %v709 = vunpack.c.l.b16 %v533
        %v710 = vunpack.c.h.b16 %v533
        %v711 = vunpack.c.l.b16 %v534
        %v712 = vunpack.c.h.b16 %v534
        %v713 = vunpack.c.l.b16 %v535
        %v714 = vunpack.c.h.b16 %v535
        %v715 = vunpack.c.l.b16 %v536
        %v716 = vunpack.c.h.b16 %v536
        %v717 = vunpack.c.l.b16 %v537
        %v718 = vunpack.c.h.b16 %v537
        %v719 = vunpack.c.l.b16 %v538
        %v720 = vunpack.c.h.b16 %v538
        %v721 = vunpack.c.l.b16 %v539
        %v722 = vunpack.c.h.b16 %v539
        %v723 = vunpack.c.l.b16 %v540
        %v724 = vunpack.c.h.b16 %v540
        %v725 = vunpack.c.l.b16 %v541
        %v726 = vunpack.c.h.b16 %v541
        %v727 = vunpack.c.l.b16 %v542
        %v728 = vunpack.c.h.b16 %v542
        %v729 = vunpack.c.l.b16 %v543
        %v730 = vunpack.c.h.b16 %v543
        %v731 = vunpack.c.l.b16 %v544
        %v732 = vunpack.c.h.b16 %v544
        %v733 = vunpack.c.l.b16 %v545
        %v734 = vunpack.c.h.b16 %v545
        %v735 = vunpack.c.l.b16 %v546
        %v736 = vunpack.c.h.b16 %v546
        %v737 = vunpack.c.l.b16 %v547
        %v738 = vunpack.c.h.b16 %v547
        %v739 = vunpack.c.l.b16 %v548
        %v740 = vunpack.c.h.b16 %v548
        %v741 = vunpack.c.l.b16 %v549
        %v742 = vunpack.c.h.b16 %v549
        %v743 = vunpack.c.l.b16 %v550
        %v744 = vunpack.c.h.b16 %v550
        %v745 = vunpack.c.l.b16 %v551
        %v746 = vunpack.c.h.b16 %v551
        %v747 = vunpack.c.l.b16 %v552
        %v748 = vunpack.c.h.b16 %v552
        %v749 = vunpack.c.l.b16 %v553
        %v750 = vunpack.c.h.b16 %v553
        %v751 = vunpack.c.l.b16 %v554
        %v752 = vunpack.c.h.b16 %v554
        %v753 = vunpack.c.l.b16 %v555
        %v754 = vunpack.c.h.b16 %v555
        %v755 = vunpack.c.l.b16 %v556
        %v756 = vunpack.c.h.b16 %v556
        %v757 = vunpack.c.l.b16 %v557
        %v758 = vunpack.c.h.b16 %v557
        %v759 = vunpack.c.l.b16 %v558
        %v760 = vunpack.c.h.b16 %v558
        %v761 = vunpack.c.l.b16 %v559
        %v762 = vunpack.c.h.b16 %v559
        %v763 = vunpack.c.l.b16 %v560
        %v764 = vunpack.c.h.b16 %v560
        %v765 = vunpack.c.l.b16 %v561
        %v766 = vunpack.c.h.b16 %v561
        %v767 = vunpack.c.l.b16 %v562
        %v768 = vunpack.c.h.b16 %v562
        %v769 = vunpack.c.l.b16 %v563
        %v770 = vunpack.c.h.b16 %v563
        %v771 = vunpack.c.l.b16 %v564
        %v772 = vunpack.c.h.b16 %v564
        %v773 = vunpack.c.l.b16 %v565
        %v774 = vunpack.c.h.b16 %v565
        %v775 = vunpack.c.l.b16 %v566
        %v776 = vunpack.c.h.b16 %v566
        %v777 = vunpack.c.l.b16 %v567
        %v778 = vunpack.c.h.b16 %v567
        %v779 = vunpack.c.l.b16 %v568
        %v780 = vunpack.c.h.b16 %v568
        %v781 = vunpack.c.l.b16 %v569
        %v782 = vunpack.c.h.b16 %v569
        %v783 = vunpack.c.l.b16 %v570
        %v784 = vunpack.c.h.b16 %v570
        %v785 = vpack.c.b16 %v661, %v657
        %v786 = vpack.c.b16 %v662, %v658
        %v787 = vpack.c.b16 %v663, %v659
        %v788 = vpack.c.b16 %v664, %v660
        %v789 = vpack.c.b16 %v669, %v665
        %v790 = vpack.c.b16 %v670, %v666
        %v791 = vpack.c.b16 %v671, %v667
        %v792 = vpack.c.b16 %v672, %v668
        %v793 = vpack.c.b16 %v677, %v673
        %v794 = vpack.c.b16 %v678, %v674
        %v795 = vpack.c.b16 %v679, %v675
        %v796 = vpack.c.b16 %v680, %v676
        %v797 = vpack.c.b16 %v685, %v681
        %v798 = vpack.c.b16 %v686, %v682
        %v799 = vpack.c.b16 %v687, %v683
        %v800 = vpack.c.b16 %v688, %v684
        %v801 = vpack.c.b16 %v693, %v689
        %v802 = vpack.c.b16 %v694, %v690
        %v803 = vpack.c.b16 %v695, %v691
        %v804 = vpack.c.b16 %v696, %v692
        %v805 = vpack.c.b16 %v701, %v697
        %v806 = vpack.c.b16 %v702, %v698
        %v807 = vpack.c.b16 %v703, %v699
        %v808 = vpack.c.b16 %v704, %v700
        %v809 = vpack.c.b16 %v709, %v705
        %v810 = vpack.c.b16 %v710, %v706
        %v811 = vpack.c.b16 %v711, %v707
        %v812 = vpack.c.b16 %v712, %v708
        %v813 = vpack.c.b16 %v717, %v713
        %v814 = vpack.c.b16 %v718, %v714
        %v815 = vpack.c.b16 %v719, %v715
        %v816 = vpack.c.b16 %v720, %v716
        %v817 = vpack.c.b16 %v725, %v721
        %v818 = vpack.c.b16 %v726, %v722
        %v819 = vpack.c.b16 %v727, %v723
        %v820 = vpack.c.b16 %v728, %v724
        %v821 = vpack.c.b16 %v733, %v729
        %v822 = vpack.c.b16 %v734, %v730
        %v823 = vpack.c.b16 %v735, %v731
        %v824 = vpack.c.b16 %v736, %v732
        %v825 = vpack.c.b16 %v741, %v737
        %v826 = vpack.c.b16 %v742, %v738
        %v827 = vpack.c.b16 %v743, %v739
        %v828 = vpack.c.b16 %v744, %v740
        %v829 = vpack.c.b16 %v749, %v745
        %v830 = vpack.c.b16 %v750, %v746
        %v831 = vpack.c.b16 %v751, %v747
        %v832 = vpack.c.b16 %v752, %v748
        %v833 = vpack.c.b16 %v757, %v753
        %v834 = vpack.c.b16 %v758, %v754
        %v835 = vpack.c.b16 %v759, %v755
        %v836 = vpack.c.b16 %v760, %v756
        %v837 = vpack.c.b16 %v765, %v761
        %v838 = vpack.c.b16 %v766, %v762
        %v839 = vpack.c.b16 %v767, %v763
        %v840 = vpack.c.b16 %v768, %v764
        %v841 = vpack.c.b16 %v773, %v769
        %v842 = vpack.c.b16 %v774, %v770
        %v843 = vpack.c.b16 %v775, %v771
        %v844 = vpack.c.b16 %v776, %v772
        %v845 = vpack.c.b16 %v781, %v777
        %v846 = vpack.c.b16 %v782, %v778
        %v847 = vpack.c.b16 %v783, %v779
        %v848 = vpack.c.b16 %v784, %v780
        %913 = vmatprep.subr.bf16.mxu0 %v786
        %914 = vmatpush1.bf16.msra.mxu0 %v785
        %915 = vmatprep.subr.bf16.mxu0 %v790
        %916 = vmatpush1.bf16.msra.mxu0 %v789
        %917 = vmatprep.subr.bf16.mxu0 %v794
        %918 = vmatpush1.bf16.msra.mxu0 %v793
        %919 = vmatprep.subr.bf16.mxu0 %v798
        %920 = vmatpush1.bf16.msra.mxu0 %v797
        %921 = vmatprep.subr.bf16.mxu0 %v802
        %922 = vmatpush1.bf16.msra.mxu0 %v801
        %923 = vmatprep.subr.bf16.mxu0 %v806
        %924 = vmatpush1.bf16.msra.mxu0 %v805
        %925 = vmatprep.subr.bf16.mxu0 %v810
        %926 = vmatpush1.bf16.msra.mxu0 %v809
        %927 = vmatprep.subr.bf16.mxu0 %v814
        %928 = vmatpush1.bf16.msra.mxu0 %v813
        %929 = vmatprep.subr.bf16.mxu0 %v818
        %930 = vmatpush1.bf16.msra.mxu0 %v817
        %931 = vmatprep.subr.bf16.mxu0 %v822
        %932 = vmatpush1.bf16.msra.mxu0 %v821
        %933 = vmatprep.subr.bf16.mxu0 %v826
        %934 = vmatpush1.bf16.msra.mxu0 %v825
        %935 = vmatprep.subr.bf16.mxu0 %v830
        %936 = vmatpush1.bf16.msra.mxu0 %v829
        %937 = vmatprep.subr.bf16.mxu0 %v834
        %938 = vmatpush1.bf16.msra.mxu0 %v833
        %939 = vmatprep.subr.bf16.mxu0 %v838
        %940 = vmatpush1.bf16.msra.mxu0 %v837
        %941 = vmatprep.subr.bf16.mxu0 %v842
        %942 = vmatpush1.bf16.msra.mxu0 %v841
        %943 = vmatprep.subr.bf16.mxu0 %v846
        %944 = vmatpush1.bf16.msra.mxu0 %v845
        %945 = vmatprep.mubr.bf16.mxu0 %v476
        %946 = vmatmul.mubr.bf16.gmra.mrb[0].mxu0 %v475
        %v947 = vpop.f32.mrb[0].mxu0
        %v948 = vadd.f32 %v576, %v947
        %v949 = vpop.f32.mrb[0].mxu0
        %v950 = vadd.f32 %v580, %v949
        %v951 = vpop.f32.mrb[0].mxu0
        %v952 = vadd.f32 %v576, %v951
        %v953 = vpop.f32.mrb[0].mxu0
        %v954 = vadd.f32 %v580, %v953
        %955 = vmatprep.mubr.bf16.mxu0 %v478
        %956 = vmatmul.mubr.bf16.gmra.mrb[0].mxu0 %v477
        %v957 = vpop.f32.mrb[0].mxu0
        %v958 = vadd.f32 %v576, %v957
        %v959 = vpop.f32.mrb[0].mxu0
        %v960 = vadd.f32 %v580, %v959
        %v961 = vpop.f32.mrb[0].mxu0
        %v962 = vadd.f32 %v576, %v961
        %v963 = vpop.f32.mrb[0].mxu0
        %v964 = vadd.f32 %v580, %v963
        %965 = vmatprep.mubr.bf16.mxu0 %v480
        %966 = vmatmul.mubr.bf16.gmra.mrb[0].mxu0 %v479
        %v967 = vpop.f32.mrb[0].mxu0
        %v968 = vadd.f32 %v576, %v967
        %v969 = vpop.f32.mrb[0].mxu0
        %v970 = vadd.f32 %v580, %v969
        %v971 = vpop.f32.mrb[0].mxu0
        %v972 = vadd.f32 %v576, %v971
        %v973 = vpop.f32.mrb[0].mxu0
        %v974 = vadd.f32 %v580, %v973
        %975 = vmatprep.mubr.bf16.mxu0 %v482
        %976 = vmatmul.mubr.bf16.gmra.mrb[0].mxu0 %v481
        %v977 = vpop.f32.mrb[0].mxu0
        %v978 = vadd.f32 %v576, %v977
        %v979 = vpop.f32.mrb[0].mxu0
        %v980 = vadd.f32 %v580, %v979
        %v981 = vpop.f32.mrb[0].mxu0
        %v982 = vadd.f32 %v576, %v981
        %v983 = vpop.f32.mrb[0].mxu0
        %v984 = vadd.f32 %v580, %v983
        %985 = vmatprep.mubr.bf16.mxu0 %v484
        %986 = vmatmul.mubr.bf16.gmra.mrb[0].mxu0 %v483
        %v987 = vpop.f32.mrb[0].mxu0
        %v988 = vadd.f32 %v576, %v987
        %v989 = vpop.f32.mrb[0].mxu0
        %v990 = vadd.f32 %v580, %v989
        %v991 = vpop.f32.mrb[0].mxu0
        %v992 = vadd.f32 %v576, %v991
        %v993 = vpop.f32.mrb[0].mxu0
        %v994 = vadd.f32 %v580, %v993
        %995 = vmatprep.mubr.bf16.mxu0 %v486
        %996 = vmatmul.mubr.bf16.gmra.mrb[0].mxu0 %v485
        %v997 = vpop.f32.mrb[0].mxu0
        %v998 = vadd.f32 %v576, %v997
        %v999 = vpop.f32.mrb[0].mxu0
        %v1000 = vadd.f32 %v580, %v999
        %v1001 = vpop.f32.mrb[0].mxu0
        %v1002 = vadd.f32 %v576, %v1001
        %v1003 = vpop.f32.mrb[0].mxu0
        %v1004 = vadd.f32 %v580, %v1003
        %1005 = vmatprep.mubr.bf16.mxu0 %v488
        %1006 = vmatmul.mubr.bf16.gmra.mrb[0].mxu0 %v487
        %v1007 = vpop.f32.mrb[0].mxu0
        %v1008 = vadd.f32 %v576, %v1007
        %v1009 = vpop.f32.mrb[0].mxu0
        %v1010 = vadd.f32 %v580, %v1009
        %v1011 = vpop.f32.mrb[0].mxu0
        %v1012 = vadd.f32 %v576, %v1011
        %v1013 = vpop.f32.mrb[0].mxu0
        %v1014 = vadd.f32 %v580, %v1013
        %1015 = vmatprep.mubr.bf16.mxu0 %v490
        %1016 = vmatmul.mubr.bf16.gmra.mrb[0].mxu0 %v489
        %v1017 = vpop.f32.mrb[0].mxu0
        %v1018 = vadd.f32 %v576, %v1017
        %v1019 = vpop.f32.mrb[0].mxu0
        %v1020 = vadd.f32 %v580, %v1019
        %v1021 = vpop.f32.mrb[0].mxu0
        %v1022 = vadd.f32 %v576, %v1021
        %v1023 = vpop.f32.mrb[0].mxu0
        %v1024 = vadd.f32 %v580, %v1023
        %1025 = vmatprep.mubr.bf16.mxu0 %v492
        %1026 = vmatmul.mubr.bf16.gmra.mrb[0].mxu0 %v491
        %v1027 = vpop.f32.mrb[0].mxu0
        %v1028 = vadd.f32 %v576, %v1027
        %v1029 = vpop.f32.mrb[0].mxu0
        %v1030 = vadd.f32 %v580, %v1029
        %v1031 = vpop.f32.mrb[0].mxu0
        %v1032 = vadd.f32 %v576, %v1031
        %v1033 = vpop.f32.mrb[0].mxu0
        %v1034 = vadd.f32 %v580, %v1033
        %1035 = vmatprep.mubr.bf16.mxu0 %v494
        %1036 = vmatmul.mubr.bf16.gmra.mrb[0].mxu0 %v493
        %v1037 = vpop.f32.mrb[0].mxu0
        %v1038 = vadd.f32 %v576, %v1037
        %v1039 = vpop.f32.mrb[0].mxu0
        %v1040 = vadd.f32 %v580, %v1039
        %v1041 = vpop.f32.mrb[0].mxu0
        %v1042 = vadd.f32 %v576, %v1041
        %v1043 = vpop.f32.mrb[0].mxu0
        %v1044 = vadd.f32 %v580, %v1043
        %1045 = vmatprep.mubr.bf16.mxu0 %v496
        %1046 = vmatmul.mubr.bf16.gmra.mrb[0].mxu0 %v495
        %v1047 = vpop.f32.mrb[0].mxu0
        %v1048 = vadd.f32 %v576, %v1047
        %v1049 = vpop.f32.mrb[0].mxu0
        %v1050 = vadd.f32 %v580, %v1049
        %v1051 = vpop.f32.mrb[0].mxu0
        %v1052 = vadd.f32 %v576, %v1051
        %v1053 = vpop.f32.mrb[0].mxu0
        %v1054 = vadd.f32 %v580, %v1053
        %1055 = vmatprep.mubr.bf16.mxu0 %v498
        %1056 = vmatmul.mubr.bf16.gmra.mrb[0].mxu0 %v497
        %v1057 = vpop.f32.mrb[0].mxu0
        %v1058 = vadd.f32 %v576, %v1057
        %v1059 = vpop.f32.mrb[0].mxu0
        %v1060 = vadd.f32 %v580, %v1059
        %v1061 = vpop.f32.mrb[0].mxu0
        %v1062 = vadd.f32 %v576, %v1061
        %v1063 = vpop.f32.mrb[0].mxu0
        %v1064 = vadd.f32 %v580, %v1063
        %1065 = vmatprep.mubr.bf16.mxu0 %v500
        %1066 = vmatmul.mubr.bf16.gmra.mrb[0].mxu0 %v499
        %v1067 = vpop.f32.mrb[0].mxu0
        %v1068 = vadd.f32 %v576, %v1067
        %v1069 = vpop.f32.mrb[0].mxu0
        %v1070 = vadd.f32 %v580, %v1069
        %v1071 = vpop.f32.mrb[0].mxu0
        %v1072 = vadd.f32 %v576, %v1071
        %v1073 = vpop.f32.mrb[0].mxu0
        %v1074 = vadd.f32 %v580, %v1073
        %1075 = vmatprep.mubr.bf16.mxu0 %v502
        %1076 = vmatmul.mubr.bf16.gmra.mrb[0].mxu0 %v501
        %v1077 = vpop.f32.mrb[0].mxu0
        %v1078 = vadd.f32 %v576, %v1077
        %v1079 = vpop.f32.mrb[0].mxu0
        %v1080 = vadd.f32 %v580, %v1079
        %v1081 = vpop.f32.mrb[0].mxu0
        %v1082 = vadd.f32 %v576, %v1081
        %v1083 = vpop.f32.mrb[0].mxu0
        %v1084 = vadd.f32 %v580, %v1083
        %1085 = vmatprep.mubr.bf16.mxu0 %v504
        %1086 = vmatmul.mubr.bf16.gmra.mrb[0].mxu0 %v503
        %v1087 = vpop.f32.mrb[0].mxu0
        %v1088 = vadd.f32 %v576, %v1087
        %v1089 = vpop.f32.mrb[0].mxu0
        %v1090 = vadd.f32 %v580, %v1089
        %v1091 = vpop.f32.mrb[0].mxu0
        %v1092 = vadd.f32 %v576, %v1091
        %v1093 = vpop.f32.mrb[0].mxu0
        %v1094 = vadd.f32 %v580, %v1093
        %1095 = vmatprep.mubr.bf16.mxu0 %v506
        %1096 = vmatmul.mubr.bf16.gmra.mrb[0].mxu0 %v505
        %v1097 = vpop.f32.mrb[0].mxu0
        %v1098 = vadd.f32 %v576, %v1097
        %v1099 = vpop.f32.mrb[0].mxu0
        %v1100 = vadd.f32 %v580, %v1099
        %v1101 = vpop.f32.mrb[0].mxu0
        %v1102 = vadd.f32 %v576, %v1101
        %v1103 = vpop.f32.mrb[0].mxu0
        %v1104 = vadd.f32 %v580, %v1103
        %1105 = vdwg.mxu0
        %1106 = vmatprep.subr.bf16.mxu0 %v788
        %1107 = vmatpush1.bf16.msra.mxu0 %v787
        %1108 = vmatprep.subr.bf16.mxu0 %v792
        %1109 = vmatpush1.bf16.msra.mxu0 %v791
        %1110 = vmatprep.subr.bf16.mxu0 %v796
        %1111 = vmatpush1.bf16.msra.mxu0 %v795
        %1112 = vmatprep.subr.bf16.mxu0 %v800
        %1113 = vmatpush1.bf16.msra.mxu0 %v799
        %1114 = vmatprep.subr.bf16.mxu0 %v804
        %1115 = vmatpush1.bf16.msra.mxu0 %v803
        %1116 = vmatprep.subr.bf16.mxu0 %v808
        %1117 = vmatpush1.bf16.msra.mxu0 %v807
        %1118 = vmatprep.subr.bf16.mxu0 %v812
        %1119 = vmatpush1.bf16.msra.mxu0 %v811
        %1120 = vmatprep.subr.bf16.mxu0 %v816
        %1121 = vmatpush1.bf16.msra.mxu0 %v815
        %1122 = vmatprep.subr.bf16.mxu0 %v820
        %1123 = vmatpush1.bf16.msra.mxu0 %v819
        %1124 = vmatprep.subr.bf16.mxu0 %v824
        %1125 = vmatpush1.bf16.msra.mxu0 %v823
        %1126 = vmatprep.subr.bf16.mxu0 %v828
        %1127 = vmatpush1.bf16.msra.mxu0 %v827
        %1128 = vmatprep.subr.bf16.mxu0 %v832
        %1129 = vmatpush1.bf16.msra.mxu0 %v831
        %1130 = vmatprep.subr.bf16.mxu0 %v836
        %1131 = vmatpush1.bf16.msra.mxu0 %v835
        %1132 = vmatprep.subr.bf16.mxu0 %v840
        %1133 = vmatpush1.bf16.msra.mxu0 %v839
        %1134 = vmatprep.subr.bf16.mxu0 %v844
        %1135 = vmatpush1.bf16.msra.mxu0 %v843
        %1136 = vmatprep.subr.bf16.mxu0 %v848
        %1137 = vmatpush1.bf16.msra.mxu0 %v847
        %1138 = vmatprep.mubr.bf16.mxu0 %v476
        %1139 = vmatmul.mubr.bf16.gmra.mrb[0].mxu0 %v475
        %v1140 = vpop.f32.mrb[0].mxu0
        %v1141 = vadd.f32 %v584, %v1140
        %v1142 = vpop.f32.mrb[0].mxu0
        %v1143 = vadd.f32 %v588, %v1142
        %v1144 = vpop.f32.mrb[0].mxu0
        %v1145 = vadd.f32 %v584, %v1144
        %v1146 = vpop.f32.mrb[0].mxu0
        %v1147 = vadd.f32 %v588, %v1146
        %1148 = vmatprep.mubr.bf16.mxu0 %v478
        %1149 = vmatmul.mubr.bf16.gmra.mrb[0].mxu0 %v477
        %v1150 = vpop.f32.mrb[0].mxu0
        %v1151 = vadd.f32 %v584, %v1150
        %v1152 = vpop.f32.mrb[0].mxu0
        %v1153 = vadd.f32 %v588, %v1152
        %v1154 = vpop.f32.mrb[0].mxu0
        %v1155 = vadd.f32 %v584, %v1154
        %v1156 = vpop.f32.mrb[0].mxu0
        %v1157 = vadd.f32 %v588, %v1156
        %1158 = vmatprep.mubr.bf16.mxu0 %v480
        %1159 = vmatmul.mubr.bf16.gmra.mrb[0].mxu0 %v479
        %v1160 = vpop.f32.mrb[0].mxu0
        %v1161 = vadd.f32 %v584, %v1160
        %v1162 = vpop.f32.mrb[0].mxu0
        %v1163 = vadd.f32 %v588, %v1162
        %v1164 = vpop.f32.mrb[0].mxu0
        %v1165 = vadd.f32 %v584, %v1164
        %v1166 = vpop.f32.mrb[0].mxu0
        %v1167 = vadd.f32 %v588, %v1166
        %1168 = vmatprep.mubr.bf16.mxu0 %v482
        %1169 = vmatmul.mubr.bf16.gmra.mrb[0].mxu0 %v481
        %v1170 = vpop.f32.mrb[0].mxu0
        %v1171 = vadd.f32 %v584, %v1170
        %v1172 = vpop.f32.mrb[0].mxu0
        %v1173 = vadd.f32 %v588, %v1172
        %v1174 = vpop.f32.mrb[0].mxu0
        %v1175 = vadd.f32 %v584, %v1174
        %v1176 = vpop.f32.mrb[0].mxu0
        %v1177 = vadd.f32 %v588, %v1176
        %1178 = vmatprep.mubr.bf16.mxu0 %v484
        %1179 = vmatmul.mubr.bf16.gmra.mrb[0].mxu0 %v483
        %v1180 = vpop.f32.mrb[0].mxu0
        %v1181 = vadd.f32 %v584, %v1180
        %v1182 = vpop.f32.mrb[0].mxu0
        %v1183 = vadd.f32 %v588, %v1182
        %v1184 = vpop.f32.mrb[0].mxu0
        %v1185 = vadd.f32 %v584, %v1184
        %v1186 = vpop.f32.mrb[0].mxu0
        %v1187 = vadd.f32 %v588, %v1186
        %1188 = vmatprep.mubr.bf16.mxu0 %v486
        %1189 = vmatmul.mubr.bf16.gmra.mrb[0].mxu0 %v485
        %v1190 = vpop.f32.mrb[0].mxu0
        %v1191 = vadd.f32 %v584, %v1190
        %v1192 = vpop.f32.mrb[0].mxu0
        %v1193 = vadd.f32 %v588, %v1192
        %v1194 = vpop.f32.mrb[0].mxu0
        %v1195 = vadd.f32 %v584, %v1194
        %v1196 = vpop.f32.mrb[0].mxu0
        %v1197 = vadd.f32 %v588, %v1196
        %1198 = vmatprep.mubr.bf16.mxu0 %v488
        %1199 = vmatmul.mubr.bf16.gmra.mrb[0].mxu0 %v487
        %v1200 = vpop.f32.mrb[0].mxu0
        %v1201 = vadd.f32 %v584, %v1200
        %v1202 = vpop.f32.mrb[0].mxu0
        %v1203 = vadd.f32 %v588, %v1202
        %v1204 = vpop.f32.mrb[0].mxu0
        %v1205 = vadd.f32 %v584, %v1204
        %v1206 = vpop.f32.mrb[0].mxu0
        %v1207 = vadd.f32 %v588, %v1206
        %1208 = vmatprep.mubr.bf16.mxu0 %v490
        %1209 = vmatmul.mubr.bf16.gmra.mrb[0].mxu0 %v489
        %v1210 = vpop.f32.mrb[0].mxu0
        %v1211 = vadd.f32 %v584, %v1210
        %v1212 = vpop.f32.mrb[0].mxu0
        %v1213 = vadd.f32 %v588, %v1212
        %v1214 = vpop.f32.mrb[0].mxu0
        %v1215 = vadd.f32 %v584, %v1214
        %v1216 = vpop.f32.mrb[0].mxu0
        %v1217 = vadd.f32 %v588, %v1216
        %1218 = vmatprep.mubr.bf16.mxu0 %v492
        %1219 = vmatmul.mubr.bf16.gmra.mrb[0].mxu0 %v491
        %v1220 = vpop.f32.mrb[0].mxu0
        %v1221 = vadd.f32 %v584, %v1220
        %v1222 = vpop.f32.mrb[0].mxu0
        %v1223 = vadd.f32 %v588, %v1222
        %v1224 = vpop.f32.mrb[0].mxu0
        %v1225 = vadd.f32 %v584, %v1224
        %v1226 = vpop.f32.mrb[0].mxu0
        %v1227 = vadd.f32 %v588, %v1226
        %1228 = vmatprep.mubr.bf16.mxu0 %v494
        %1229 = vmatmul.mubr.bf16.gmra.mrb[0].mxu0 %v493
        %v1230 = vpop.f32.mrb[0].mxu0
        %v1231 = vadd.f32 %v584, %v1230
        %v1232 = vpop.f32.mrb[0].mxu0
        %v1233 = vadd.f32 %v588, %v1232
        %v1234 = vpop.f32.mrb[0].mxu0
        %v1235 = vadd.f32 %v584, %v1234
        %v1236 = vpop.f32.mrb[0].mxu0
        %v1237 = vadd.f32 %v588, %v1236
        %1238 = vmatprep.mubr.bf16.mxu0 %v496
        %1239 = vmatmul.mubr.bf16.gmra.mrb[0].mxu0 %v495
        %v1240 = vpop.f32.mrb[0].mxu0
        %v1241 = vadd.f32 %v584, %v1240
        %v1242 = vpop.f32.mrb[0].mxu0
        %v1243 = vadd.f32 %v588, %v1242
        %v1244 = vpop.f32.mrb[0].mxu0
        %v1245 = vadd.f32 %v584, %v1244
        %v1246 = vpop.f32.mrb[0].mxu0
        %v1247 = vadd.f32 %v588, %v1246
        %1248 = vmatprep.mubr.bf16.mxu0 %v498
        %1249 = vmatmul.mubr.bf16.gmra.mrb[0].mxu0 %v497
        %v1250 = vpop.f32.mrb[0].mxu0
        %v1251 = vadd.f32 %v584, %v1250
        %v1252 = vpop.f32.mrb[0].mxu0
        %v1253 = vadd.f32 %v588, %v1252
        %v1254 = vpop.f32.mrb[0].mxu0
        %v1255 = vadd.f32 %v584, %v1254
        %v1256 = vpop.f32.mrb[0].mxu0
        %v1257 = vadd.f32 %v588, %v1256
        %1258 = vmatprep.mubr.bf16.mxu0 %v500
        %1259 = vmatmul.mubr.bf16.gmra.mrb[0].mxu0 %v499
        %v1260 = vpop.f32.mrb[0].mxu0
        %v1261 = vadd.f32 %v584, %v1260
        %v1262 = vpop.f32.mrb[0].mxu0
        %v1263 = vadd.f32 %v588, %v1262
        %v1264 = vpop.f32.mrb[0].mxu0
        %v1265 = vadd.f32 %v584, %v1264
        %v1266 = vpop.f32.mrb[0].mxu0
        %v1267 = vadd.f32 %v588, %v1266
        %1268 = vmatprep.mubr.bf16.mxu0 %v502
        %1269 = vmatmul.mubr.bf16.gmra.mrb[0].mxu0 %v501
        %v1270 = vpop.f32.mrb[0].mxu0
        %v1271 = vadd.f32 %v584, %v1270
        %v1272 = vpop.f32.mrb[0].mxu0
        %v1273 = vadd.f32 %v588, %v1272
        %v1274 = vpop.f32.mrb[0].mxu0
        %v1275 = vadd.f32 %v584, %v1274
        %v1276 = vpop.f32.mrb[0].mxu0
        %v1277 = vadd.f32 %v588, %v1276
        %1278 = vmatprep.mubr.bf16.mxu0 %v504
        %1279 = vmatmul.mubr.bf16.gmra.mrb[0].mxu0 %v503
        %v1280 = vpop.f32.mrb[0].mxu0
        %v1281 = vadd.f32 %v584, %v1280
        %v1282 = vpop.f32.mrb[0].mxu0
        %v1283 = vadd.f32 %v588, %v1282
        %v1284 = vpop.f32.mrb[0].mxu0
        %v1285 = vadd.f32 %v584, %v1284
        %v1286 = vpop.f32.mrb[0].mxu0
        %v1287 = vadd.f32 %v588, %v1286
        %1288 = vmatprep.mubr.bf16.mxu0 %v506
        %1289 = vmatmul.mubr.bf16.gmra.mrb[0].mxu0 %v505
        %v1290 = vpop.f32.mrb[0].mxu0
        %v1291 = vadd.f32 %v584, %v1290
        %v1292 = vpop.f32.mrb[0].mxu0
        %v1293 = vadd.f32 %v588, %v1292
        %v1294 = vpop.f32.mrb[0].mxu0
        %v1295 = vadd.f32 %v584, %v1294
        %v1296 = vpop.f32.mrb[0].mxu0
        %v1297 = vadd.f32 %v588, %v1296
        %1298 = vdwg.mxu0
        %v1299 = vpack.c.bf16 %v952, %v948
        %v1300 = vpack.c.bf16 %v954, %v950
        %v1301 = vpack.c.bf16 %v1145, %v1141
        %v1302 = vpack.c.bf16 %v1147, %v1143
        %v1303 = vpack.c.bf16 %v962, %v958
        %v1304 = vpack.c.bf16 %v964, %v960
        %v1305 = vpack.c.bf16 %v1155, %v1151
        %v1306 = vpack.c.bf16 %v1157, %v1153
        %v1307 = vpack.c.bf16 %v972, %v968
        %v1308 = vpack.c.bf16 %v974, %v970
        %v1309 = vpack.c.bf16 %v1165, %v1161
        %v1310 = vpack.c.bf16 %v1167, %v1163
        %v1311 = vpack.c.bf16 %v982, %v978
        %v1312 = vpack.c.bf16 %v984, %v980
        %v1313 = vpack.c.bf16 %v1175, %v1171
        %v1314 = vpack.c.bf16 %v1177, %v1173
        %v1315 = vpack.c.bf16 %v992, %v988
        %v1316 = vpack.c.bf16 %v994, %v990
        %v1317 = vpack.c.bf16 %v1185, %v1181
        %v1318 = vpack.c.bf16 %v1187, %v1183
        %v1319 = vpack.c.bf16 %v1002, %v998
        %v1320 = vpack.c.bf16 %v1004, %v1000
        %v1321 = vpack.c.bf16 %v1195, %v1191
        %v1322 = vpack.c.bf16 %v1197, %v1193
        %v1323 = vpack.c.bf16 %v1012, %v1008
        %v1324 = vpack.c.bf16 %v1014, %v1010
        %v1325 = vpack.c.bf16 %v1205, %v1201
        %v1326 = vpack.c.bf16 %v1207, %v1203
        %v1327 = vpack.c.bf16 %v1022, %v1018
        %v1328 = vpack.c.bf16 %v1024, %v1020
        %v1329 = vpack.c.bf16 %v1215, %v1211
        %v1330 = vpack.c.bf16 %v1217, %v1213
        %v1331 = vpack.c.bf16 %v1032, %v1028
        %v1332 = vpack.c.bf16 %v1034, %v1030
        %v1333 = vpack.c.bf16 %v1225, %v1221
        %v1334 = vpack.c.bf16 %v1227, %v1223
        %v1335 = vpack.c.bf16 %v1042, %v1038
        %v1336 = vpack.c.bf16 %v1044, %v1040
        %v1337 = vpack.c.bf16 %v1235, %v1231
        %v1338 = vpack.c.bf16 %v1237, %v1233
        %v1339 = vpack.c.bf16 %v1052, %v1048
        %v1340 = vpack.c.bf16 %v1054, %v1050
        %v1341 = vpack.c.bf16 %v1245, %v1241
        %v1342 = vpack.c.bf16 %v1247, %v1243
        %v1343 = vpack.c.bf16 %v1062, %v1058
        %v1344 = vpack.c.bf16 %v1064, %v1060
        %v1345 = vpack.c.bf16 %v1255, %v1251
        %v1346 = vpack.c.bf16 %v1257, %v1253
        %v1347 = vpack.c.bf16 %v1072, %v1068
        %v1348 = vpack.c.bf16 %v1074, %v1070
        %v1349 = vpack.c.bf16 %v1265, %v1261
        %v1350 = vpack.c.bf16 %v1267, %v1263
        %v1351 = vpack.c.bf16 %v1082, %v1078
        %v1352 = vpack.c.bf16 %v1084, %v1080
        %v1353 = vpack.c.bf16 %v1275, %v1271
        %v1354 = vpack.c.bf16 %v1277, %v1273
        %v1355 = vpack.c.bf16 %v1092, %v1088
        %v1356 = vpack.c.bf16 %v1094, %v1090
        %v1357 = vpack.c.bf16 %v1285, %v1281
        %v1358 = vpack.c.bf16 %v1287, %v1283
        %v1359 = vpack.c.bf16 %v1102, %v1098
        %v1360 = vpack.c.bf16 %v1104, %v1100
        %v1361 = vpack.c.bf16 %v1295, %v1291
        %v1362 = vpack.c.bf16 %v1297, %v1293
        %v1363 = vld [vmem:[#allocation8] sm:$0xff]
        %v1364 = vld [vmem:[#allocation8 + $0x8] sm:$0xff]
        %v1365 = vld [vmem:[#allocation8 + $0x10] sm:$0xff]
        %v1366 = vld [vmem:[#allocation8 + $0x18] sm:$0xff]
        %v1367 = vld [vmem:[#allocation8 + $0x20] sm:$0xff]
        %v1368 = vld [vmem:[#allocation8 + $0x28] sm:$0xff]
        %v1369 = vld [vmem:[#allocation8 + $0x30] sm:$0xff]
        %v1370 = vld [vmem:[#allocation8 + $0x38] sm:$0xff]
        %v1371 = vld [vmem:[#allocation8 + $0x40] sm:$0xff]
        %v1372 = vld [vmem:[#allocation8 + $0x48] sm:$0xff]
        %v1373 = vld [vmem:[#allocation8 + $0x50] sm:$0xff]
        %v1374 = vld [vmem:[#allocation8 + $0x58] sm:$0xff]
        %v1375 = vld [vmem:[#allocation8 + $0x60] sm:$0xff]
        %v1376 = vld [vmem:[#allocation8 + $0x68] sm:$0xff]
        %v1377 = vld [vmem:[#allocation8 + $0x70] sm:$0xff]
        %v1378 = vld [vmem:[#allocation8 + $0x78] sm:$0xff]
        %v1379 = vld [vmem:[#allocation8 + $0x80] sm:$0xff]
        %v1380 = vld [vmem:[#allocation8 + $0x88] sm:$0xff]
        %v1381 = vld [vmem:[#allocation8 + $0x90] sm:$0xff]
        %v1382 = vld [vmem:[#allocation8 + $0x98] sm:$0xff]
        %v1383 = vld [vmem:[#allocation8 + $0xa0] sm:$0xff]
        %v1384 = vld [vmem:[#allocation8 + $0xa8] sm:$0xff]
        %v1385 = vld [vmem:[#allocation8 + $0xb0] sm:$0xff]
        %v1386 = vld [vmem:[#allocation8 + $0xb8] sm:$0xff]
        %v1387 = vld [vmem:[#allocation8 + $0xc0] sm:$0xff]
        %v1388 = vld [vmem:[#allocation8 + $0xc8] sm:$0xff]
        %v1389 = vld [vmem:[#allocation8 + $0xd0] sm:$0xff]
        %v1390 = vld [vmem:[#allocation8 + $0xd8] sm:$0xff]
        %v1391 = vld [vmem:[#allocation8 + $0xe0] sm:$0xff]
        %v1392 = vld [vmem:[#allocation8 + $0xe8] sm:$0xff]
        %v1393 = vld [vmem:[#allocation8 + $0xf0] sm:$0xff]
        %v1394 = vld [vmem:[#allocation8 + $0xf8] sm:$0xff]
        %v1395 = vld [vmem:[#allocation8 + $0x100] sm:$0xff]
        %v1396 = vld [vmem:[#allocation8 + $0x108] sm:$0xff]
        %v1397 = vld [vmem:[#allocation8 + $0x110] sm:$0xff]
        %v1398 = vld [vmem:[#allocation8 + $0x118] sm:$0xff]
        %v1399 = vld [vmem:[#allocation8 + $0x120] sm:$0xff]
        %v1400 = vld [vmem:[#allocation8 + $0x128] sm:$0xff]
        %v1401 = vld [vmem:[#allocation8 + $0x130] sm:$0xff]
        %v1402 = vld [vmem:[#allocation8 + $0x138] sm:$0xff]
        %v1403 = vld [vmem:[#allocation8 + $0x140] sm:$0xff]
        %v1404 = vld [vmem:[#allocation8 + $0x148] sm:$0xff]
        %v1405 = vld [vmem:[#allocation8 + $0x150] sm:$0xff]
        %v1406 = vld [vmem:[#allocation8 + $0x158] sm:$0xff]
        %v1407 = vld [vmem:[#allocation8 + $0x160] sm:$0xff]
        %v1408 = vld [vmem:[#allocation8 + $0x168] sm:$0xff]
        %v1409 = vld [vmem:[#allocation8 + $0x170] sm:$0xff]
        %v1410 = vld [vmem:[#allocation8 + $0x178] sm:$0xff]
        %v1411 = vld [vmem:[#allocation8 + $0x180] sm:$0xff]
        %v1412 = vld [vmem:[#allocation8 + $0x188] sm:$0xff]
        %v1413 = vld [vmem:[#allocation8 + $0x190] sm:$0xff]
        %v1414 = vld [vmem:[#allocation8 + $0x198] sm:$0xff]
        %v1415 = vld [vmem:[#allocation8 + $0x1a0] sm:$0xff]
        %v1416 = vld [vmem:[#allocation8 + $0x1a8] sm:$0xff]
        %v1417 = vld [vmem:[#allocation8 + $0x1b0] sm:$0xff]
        %v1418 = vld [vmem:[#allocation8 + $0x1b8] sm:$0xff]
        %v1419 = vld [vmem:[#allocation8 + $0x1c0] sm:$0xff]
        %v1420 = vld [vmem:[#allocation8 + $0x1c8] sm:$0xff]
        %v1421 = vld [vmem:[#allocation8 + $0x1d0] sm:$0xff]
        %v1422 = vld [vmem:[#allocation8 + $0x1d8] sm:$0xff]
        %v1423 = vld [vmem:[#allocation8 + $0x1e0] sm:$0xff]
        %v1424 = vld [vmem:[#allocation8 + $0x1e8] sm:$0xff]
        %v1425 = vld [vmem:[#allocation8 + $0x1f0] sm:$0xff]
        %v1426 = vld [vmem:[#allocation8 + $0x1f8] sm:$0xff]
        %v1427 = vld [vmem:[%s6] sm:$0x3]
        %v1429 = vlaneseq
        %v1430 = vshrl.u32 %v1429, 7
        %v1431 = vsub.s32 0, %v1430
        %v1432 = vrot.slane %v1427, %v1431
        %v1433 = vlaneseq
        %v1434 = vshrl.u32 %v1433, 7
        %v1435 = vsub.s32 1, %v1434
        %v1436 = vrot.slane %v1427, %v1435
        %v1503 = vunpack.c.l.b16 %v1363
        %v1504 = vunpack.c.h.b16 %v1363
        %v1505 = vunpack.c.l.b16 %v1364
        %v1506 = vunpack.c.h.b16 %v1364
        %v1507 = vunpack.c.l.b16 %v1365
        %v1508 = vunpack.c.h.b16 %v1365
        %v1509 = vunpack.c.l.b16 %v1366
        %v1510 = vunpack.c.h.b16 %v1366
        %v1511 = vunpack.c.l.b16 %v1367
        %v1512 = vunpack.c.h.b16 %v1367
        %v1513 = vunpack.c.l.b16 %v1368
        %v1514 = vunpack.c.h.b16 %v1368
        %v1515 = vunpack.c.l.b16 %v1369
        %v1516 = vunpack.c.h.b16 %v1369
        %v1517 = vunpack.c.l.b16 %v1370
        %v1518 = vunpack.c.h.b16 %v1370
        %v1519 = vunpack.c.l.b16 %v1371
        %v1520 = vunpack.c.h.b16 %v1371
        %v1521 = vunpack.c.l.b16 %v1372
        %v1522 = vunpack.c.h.b16 %v1372
        %v1523 = vunpack.c.l.b16 %v1373
        %v1524 = vunpack.c.h.b16 %v1373
        %v1525 = vunpack.c.l.b16 %v1374
        %v1526 = vunpack.c.h.b16 %v1374
        %v1527 = vunpack.c.l.b16 %v1375
        %v1528 = vunpack.c.h.b16 %v1375
        %v1529 = vunpack.c.l.b16 %v1376
        %v1530 = vunpack.c.h.b16 %v1376
        %v1531 = vunpack.c.l.b16 %v1377
        %v1532 = vunpack.c.h.b16 %v1377
        %v1533 = vunpack.c.l.b16 %v1378
        %v1534 = vunpack.c.h.b16 %v1378
        %v1535 = vunpack.c.l.b16 %v1379
        %v1536 = vunpack.c.h.b16 %v1379
        %v1537 = vunpack.c.l.b16 %v1380
        %v1538 = vunpack.c.h.b16 %v1380
        %v1539 = vunpack.c.l.b16 %v1381
        %v1540 = vunpack.c.h.b16 %v1381
        %v1541 = vunpack.c.l.b16 %v1382
        %v1542 = vunpack.c.h.b16 %v1382
        %v1543 = vunpack.c.l.b16 %v1383
        %v1544 = vunpack.c.h.b16 %v1383
        %v1545 = vunpack.c.l.b16 %v1384
        %v1546 = vunpack.c.h.b16 %v1384
        %v1547 = vunpack.c.l.b16 %v1385
        %v1548 = vunpack.c.h.b16 %v1385
        %v1549 = vunpack.c.l.b16 %v1386
        %v1550 = vunpack.c.h.b16 %v1386
        %v1551 = vunpack.c.l.b16 %v1387
        %v1552 = vunpack.c.h.b16 %v1387
        %v1553 = vunpack.c.l.b16 %v1388
        %v1554 = vunpack.c.h.b16 %v1388
        %v1555 = vunpack.c.l.b16 %v1389
        %v1556 = vunpack.c.h.b16 %v1389
        %v1557 = vunpack.c.l.b16 %v1390
        %v1558 = vunpack.c.h.b16 %v1390
        %v1559 = vunpack.c.l.b16 %v1391
        %v1560 = vunpack.c.h.b16 %v1391
        %v1561 = vunpack.c.l.b16 %v1392
        %v1562 = vunpack.c.h.b16 %v1392
        %v1563 = vunpack.c.l.b16 %v1393
        %v1564 = vunpack.c.h.b16 %v1393
        %v1565 = vunpack.c.l.b16 %v1394
        %v1566 = vunpack.c.h.b16 %v1394
        %v1567 = vunpack.c.l.b16 %v1395
        %v1568 = vunpack.c.h.b16 %v1395
        %v1569 = vunpack.c.l.b16 %v1396
        %v1570 = vunpack.c.h.b16 %v1396
        %v1571 = vunpack.c.l.b16 %v1397
        %v1572 = vunpack.c.h.b16 %v1397
        %v1573 = vunpack.c.l.b16 %v1398
        %v1574 = vunpack.c.h.b16 %v1398
        %v1575 = vunpack.c.l.b16 %v1399
        %v1576 = vunpack.c.h.b16 %v1399
        %v1577 = vunpack.c.l.b16 %v1400
        %v1578 = vunpack.c.h.b16 %v1400
        %v1579 = vunpack.c.l.b16 %v1401
        %v1580 = vunpack.c.h.b16 %v1401
        %v1581 = vunpack.c.l.b16 %v1402
        %v1582 = vunpack.c.h.b16 %v1402
        %v1583 = vunpack.c.l.b16 %v1403
        %v1584 = vunpack.c.h.b16 %v1403
        %v1585 = vunpack.c.l.b16 %v1404
        %v1586 = vunpack.c.h.b16 %v1404
        %v1587 = vunpack.c.l.b16 %v1405
        %v1588 = vunpack.c.h.b16 %v1405
        %v1589 = vunpack.c.l.b16 %v1406
        %v1590 = vunpack.c.h.b16 %v1406
        %v1591 = vunpack.c.l.b16 %v1407
        %v1592 = vunpack.c.h.b16 %v1407
        %v1593 = vunpack.c.l.b16 %v1408
        %v1594 = vunpack.c.h.b16 %v1408
        %v1595 = vunpack.c.l.b16 %v1409
        %v1596 = vunpack.c.h.b16 %v1409
        %v1597 = vunpack.c.l.b16 %v1410
        %v1598 = vunpack.c.h.b16 %v1410
        %v1599 = vunpack.c.l.b16 %v1411
        %v1600 = vunpack.c.h.b16 %v1411
        %v1601 = vunpack.c.l.b16 %v1412
        %v1602 = vunpack.c.h.b16 %v1412
        %v1603 = vunpack.c.l.b16 %v1413
        %v1604 = vunpack.c.h.b16 %v1413
        %v1605 = vunpack.c.l.b16 %v1414
        %v1606 = vunpack.c.h.b16 %v1414
        %v1607 = vunpack.c.l.b16 %v1415
        %v1608 = vunpack.c.h.b16 %v1415
        %v1609 = vunpack.c.l.b16 %v1416
        %v1610 = vunpack.c.h.b16 %v1416
        %v1611 = vunpack.c.l.b16 %v1417
        %v1612 = vunpack.c.h.b16 %v1417
        %v1613 = vunpack.c.l.b16 %v1418
        %v1614 = vunpack.c.h.b16 %v1418
        %v1615 = vunpack.c.l.b16 %v1419
        %v1616 = vunpack.c.h.b16 %v1419
        %v1617 = vunpack.c.l.b16 %v1420
        %v1618 = vunpack.c.h.b16 %v1420
        %v1619 = vunpack.c.l.b16 %v1421
        %v1620 = vunpack.c.h.b16 %v1421
        %v1621 = vunpack.c.l.b16 %v1422
        %v1622 = vunpack.c.h.b16 %v1422
        %v1623 = vunpack.c.l.b16 %v1423
        %v1624 = vunpack.c.h.b16 %v1423
        %v1625 = vunpack.c.l.b16 %v1424
        %v1626 = vunpack.c.h.b16 %v1424
        %v1627 = vunpack.c.l.b16 %v1425
        %v1628 = vunpack.c.h.b16 %v1425
        %v1629 = vunpack.c.l.b16 %v1426
        %v1630 = vunpack.c.h.b16 %v1426
        %v1631 = vpack.c.b16 %v1505, %v1503
        %v1632 = vpack.c.b16 %v1506, %v1504
        %v1633 = vpack.c.b16 %v1509, %v1507
        %v1634 = vpack.c.b16 %v1510, %v1508
        %v1635 = vpack.c.b16 %v1513, %v1511
        %v1636 = vpack.c.b16 %v1514, %v1512
        %v1637 = vpack.c.b16 %v1517, %v1515
        %v1638 = vpack.c.b16 %v1518, %v1516
        %v1639 = vpack.c.b16 %v1521, %v1519
        %v1640 = vpack.c.b16 %v1522, %v1520
        %v1641 = vpack.c.b16 %v1525, %v1523
        %v1642 = vpack.c.b16 %v1526, %v1524
        %v1643 = vpack.c.b16 %v1529, %v1527
        %v1644 = vpack.c.b16 %v1530, %v1528
        %v1645 = vpack.c.b16 %v1533, %v1531
        %v1646 = vpack.c.b16 %v1534, %v1532
        %v1647 = vpack.c.b16 %v1537, %v1535
        %v1648 = vpack.c.b16 %v1538, %v1536
        %v1649 = vpack.c.b16 %v1541, %v1539
        %v1650 = vpack.c.b16 %v1542, %v1540
        %v1651 = vpack.c.b16 %v1545, %v1543
        %v1652 = vpack.c.b16 %v1546, %v1544
        %v1653 = vpack.c.b16 %v1549, %v1547
        %v1654 = vpack.c.b16 %v1550, %v1548
        %v1655 = vpack.c.b16 %v1553, %v1551
        %v1656 = vpack.c.b16 %v1554, %v1552
        %v1657 = vpack.c.b16 %v1557, %v1555
        %v1658 = vpack.c.b16 %v1558, %v1556
        %v1659 = vpack.c.b16 %v1561, %v1559
        %v1660 = vpack.c.b16 %v1562, %v1560
        %v1661 = vpack.c.b16 %v1565, %v1563
        %v1662 = vpack.c.b16 %v1566, %v1564
        %v1663 = vpack.c.b16 %v1569, %v1567
        %v1664 = vpack.c.b16 %v1570, %v1568
        %v1665 = vpack.c.b16 %v1573, %v1571
        %v1666 = vpack.c.b16 %v1574, %v1572
        %v1667 = vpack.c.b16 %v1577, %v1575
        %v1668 = vpack.c.b16 %v1578, %v1576
        %v1669 = vpack.c.b16 %v1581, %v1579
        %v1670 = vpack.c.b16 %v1582, %v1580
        %v1671 = vpack.c.b16 %v1585, %v1583
        %v1672 = vpack.c.b16 %v1586, %v1584
        %v1673 = vpack.c.b16 %v1589, %v1587
        %v1674 = vpack.c.b16 %v1590, %v1588
        %v1675 = vpack.c.b16 %v1593, %v1591
        %v1676 = vpack.c.b16 %v1594, %v1592
        %v1677 = vpack.c.b16 %v1597, %v1595
        %v1678 = vpack.c.b16 %v1598, %v1596
        %v1679 = vpack.c.b16 %v1601, %v1599
        %v1680 = vpack.c.b16 %v1602, %v1600
        %v1681 = vpack.c.b16 %v1605, %v1603
        %v1682 = vpack.c.b16 %v1606, %v1604
        %v1683 = vpack.c.b16 %v1609, %v1607
        %v1684 = vpack.c.b16 %v1610, %v1608
        %v1685 = vpack.c.b16 %v1613, %v1611
        %v1686 = vpack.c.b16 %v1614, %v1612
        %v1687 = vpack.c.b16 %v1617, %v1615
        %v1688 = vpack.c.b16 %v1618, %v1616
        %v1689 = vpack.c.b16 %v1621, %v1619
        %v1690 = vpack.c.b16 %v1622, %v1620
        %v1691 = vpack.c.b16 %v1625, %v1623
        %v1692 = vpack.c.b16 %v1626, %v1624
        %v1693 = vpack.c.b16 %v1629, %v1627
        %v1694 = vpack.c.b16 %v1630, %v1628
        %1759 = vmatprep.subr.bf16.mxu0 %v1632
        %1760 = vmatpush1.bf16.msra.mxu0 %v1631
        %1761 = vmatprep.subr.bf16.mxu0 %v1634
        %1762 = vmatpush1.bf16.msra.mxu0 %v1633
        %1763 = vmatprep.subr.bf16.mxu0 %v1636
        %1764 = vmatpush1.bf16.msra.mxu0 %v1635
        %1765 = vmatprep.subr.bf16.mxu0 %v1638
        %1766 = vmatpush1.bf16.msra.mxu0 %v1637
        %1767 = vmatprep.subr.bf16.mxu0 %v1640
        %1768 = vmatpush1.bf16.msra.mxu0 %v1639
        %1769 = vmatprep.subr.bf16.mxu0 %v1642
        %1770 = vmatpush1.bf16.msra.mxu0 %v1641
        %1771 = vmatprep.subr.bf16.mxu0 %v1644
        %1772 = vmatpush1.bf16.msra.mxu0 %v1643
        %1773 = vmatprep.subr.bf16.mxu0 %v1646
        %1774 = vmatpush1.bf16.msra.mxu0 %v1645
        %1775 = vmatprep.subr.bf16.mxu0 %v1648
        %1776 = vmatpush1.bf16.msra.mxu0 %v1647
        %1777 = vmatprep.subr.bf16.mxu0 %v1650
        %1778 = vmatpush1.bf16.msra.mxu0 %v1649
        %1779 = vmatprep.subr.bf16.mxu0 %v1652
        %1780 = vmatpush1.bf16.msra.mxu0 %v1651
        %1781 = vmatprep.subr.bf16.mxu0 %v1654
        %1782 = vmatpush1.bf16.msra.mxu0 %v1653
        %1783 = vmatprep.subr.bf16.mxu0 %v1656
        %1784 = vmatpush1.bf16.msra.mxu0 %v1655
        %1785 = vmatprep.subr.bf16.mxu0 %v1658
        %1786 = vmatpush1.bf16.msra.mxu0 %v1657
        %1787 = vmatprep.subr.bf16.mxu0 %v1660
        %1788 = vmatpush1.bf16.msra.mxu0 %v1659
        %1789 = vmatprep.subr.bf16.mxu0 %v1662
        %1790 = vmatpush1.bf16.msra.mxu0 %v1661
        %1791 = vmatprep.mubr.bf16.mxu0 %v1300
        %1792 = vmatmul.mubr.bf16.gmra.mrb[0].mxu0 %v1299
        %v1793 = vpop.f32.mrb[0].mxu0
        %v1794 = vadd.f32 %v1432, %v1793
        %v1795 = vpop.f32.mrb[0].mxu0
        %v1796 = vadd.f32 %v1436, %v1795
        %v1797 = vpop.f32.mrb[0].mxu0
        %v1798 = vadd.f32 %v1432, %v1797
        %v1799 = vpop.f32.mrb[0].mxu0
        %v1800 = vadd.f32 %v1436, %v1799
        %1801 = vmatprep.mubr.bf16.mxu0 %v1304
        %1802 = vmatmul.mubr.bf16.gmra.mrb[0].mxu0 %v1303
        %v1803 = vpop.f32.mrb[0].mxu0
        %v1804 = vadd.f32 %v1432, %v1803
        %v1805 = vpop.f32.mrb[0].mxu0
        %v1806 = vadd.f32 %v1436, %v1805
        %v1807 = vpop.f32.mrb[0].mxu0
        %v1808 = vadd.f32 %v1432, %v1807
        %v1809 = vpop.f32.mrb[0].mxu0
        %v1810 = vadd.f32 %v1436, %v1809
        %1811 = vmatprep.mubr.bf16.mxu0 %v1308
        %1812 = vmatmul.mubr.bf16.gmra.mrb[0].mxu0 %v1307
        %v1813 = vpop.f32.mrb[0].mxu0
        %v1814 = vadd.f32 %v1432, %v1813
        %v1815 = vpop.f32.mrb[0].mxu0
        %v1816 = vadd.f32 %v1436, %v1815
        %v1817 = vpop.f32.mrb[0].mxu0
        %v1818 = vadd.f32 %v1432, %v1817
        %v1819 = vpop.f32.mrb[0].mxu0
        %v1820 = vadd.f32 %v1436, %v1819
        %1821 = vmatprep.mubr.bf16.mxu0 %v1312
        %1822 = vmatmul.mubr.bf16.gmra.mrb[0].mxu0 %v1311
        %v1823 = vpop.f32.mrb[0].mxu0
        %v1824 = vadd.f32 %v1432, %v1823
        %v1825 = vpop.f32.mrb[0].mxu0
        %v1826 = vadd.f32 %v1436, %v1825
        %v1827 = vpop.f32.mrb[0].mxu0
        %v1828 = vadd.f32 %v1432, %v1827
        %v1829 = vpop.f32.mrb[0].mxu0
        %v1830 = vadd.f32 %v1436, %v1829
        %1831 = vmatprep.mubr.bf16.mxu0 %v1316
        %1832 = vmatmul.mubr.bf16.gmra.mrb[0].mxu0 %v1315
        %v1833 = vpop.f32.mrb[0].mxu0
        %v1834 = vadd.f32 %v1432, %v1833
        %v1835 = vpop.f32.mrb[0].mxu0
        %v1836 = vadd.f32 %v1436, %v1835
        %v1837 = vpop.f32.mrb[0].mxu0
        %v1838 = vadd.f32 %v1432, %v1837
        %v1839 = vpop.f32.mrb[0].mxu0
        %v1840 = vadd.f32 %v1436, %v1839
        %1841 = vmatprep.mubr.bf16.mxu0 %v1320
        %1842 = vmatmul.mubr.bf16.gmra.mrb[0].mxu0 %v1319
        %v1843 = vpop.f32.mrb[0].mxu0
        %v1844 = vadd.f32 %v1432, %v1843
        %v1845 = vpop.f32.mrb[0].mxu0
        %v1846 = vadd.f32 %v1436, %v1845
        %v1847 = vpop.f32.mrb[0].mxu0
        %v1848 = vadd.f32 %v1432, %v1847
        %v1849 = vpop.f32.mrb[0].mxu0
        %v1850 = vadd.f32 %v1436, %v1849
        %1851 = vmatprep.mubr.bf16.mxu0 %v1324
        %1852 = vmatmul.mubr.bf16.gmra.mrb[0].mxu0 %v1323
        %v1853 = vpop.f32.mrb[0].mxu0
        %v1854 = vadd.f32 %v1432, %v1853
        %v1855 = vpop.f32.mrb[0].mxu0
        %v1856 = vadd.f32 %v1436, %v1855
        %v1857 = vpop.f32.mrb[0].mxu0
        %v1858 = vadd.f32 %v1432, %v1857
        %v1859 = vpop.f32.mrb[0].mxu0
        %v1860 = vadd.f32 %v1436, %v1859
        %1861 = vmatprep.mubr.bf16.mxu0 %v1328
        %1862 = vmatmul.mubr.bf16.gmra.mrb[0].mxu0 %v1327
        %v1863 = vpop.f32.mrb[0].mxu0
        %v1864 = vadd.f32 %v1432, %v1863
        %v1865 = vpop.f32.mrb[0].mxu0
        %v1866 = vadd.f32 %v1436, %v1865
        %v1867 = vpop.f32.mrb[0].mxu0
        %v1868 = vadd.f32 %v1432, %v1867
        %v1869 = vpop.f32.mrb[0].mxu0
        %v1870 = vadd.f32 %v1436, %v1869
        %1871 = vmatprep.mubr.bf16.mxu0 %v1332
        %1872 = vmatmul.mubr.bf16.gmra.mrb[0].mxu0 %v1331
        %v1873 = vpop.f32.mrb[0].mxu0
        %v1874 = vadd.f32 %v1432, %v1873
        %v1875 = vpop.f32.mrb[0].mxu0
        %v1876 = vadd.f32 %v1436, %v1875
        %v1877 = vpop.f32.mrb[0].mxu0
        %v1878 = vadd.f32 %v1432, %v1877
        %v1879 = vpop.f32.mrb[0].mxu0
        %v1880 = vadd.f32 %v1436, %v1879
        %1881 = vmatprep.mubr.bf16.mxu0 %v1336
        %1882 = vmatmul.mubr.bf16.gmra.mrb[0].mxu0 %v1335
        %v1883 = vpop.f32.mrb[0].mxu0
        %v1884 = vadd.f32 %v1432, %v1883
        %v1885 = vpop.f32.mrb[0].mxu0
        %v1886 = vadd.f32 %v1436, %v1885
        %v1887 = vpop.f32.mrb[0].mxu0
        %v1888 = vadd.f32 %v1432, %v1887
        %v1889 = vpop.f32.mrb[0].mxu0
        %v1890 = vadd.f32 %v1436, %v1889
        %1891 = vmatprep.mubr.bf16.mxu0 %v1340
        %1892 = vmatmul.mubr.bf16.gmra.mrb[0].mxu0 %v1339
        %v1893 = vpop.f32.mrb[0].mxu0
        %v1894 = vadd.f32 %v1432, %v1893
        %v1895 = vpop.f32.mrb[0].mxu0
        %v1896 = vadd.f32 %v1436, %v1895
        %v1897 = vpop.f32.mrb[0].mxu0
        %v1898 = vadd.f32 %v1432, %v1897
        %v1899 = vpop.f32.mrb[0].mxu0
        %v1900 = vadd.f32 %v1436, %v1899
        %1901 = vmatprep.mubr.bf16.mxu0 %v1344
        %1902 = vmatmul.mubr.bf16.gmra.mrb[0].mxu0 %v1343
        %v1903 = vpop.f32.mrb[0].mxu0
        %v1904 = vadd.f32 %v1432, %v1903
        %v1905 = vpop.f32.mrb[0].mxu0
        %v1906 = vadd.f32 %v1436, %v1905
        %v1907 = vpop.f32.mrb[0].mxu0
        %v1908 = vadd.f32 %v1432, %v1907
        %v1909 = vpop.f32.mrb[0].mxu0
        %v1910 = vadd.f32 %v1436, %v1909
        %1911 = vmatprep.mubr.bf16.mxu0 %v1348
        %1912 = vmatmul.mubr.bf16.gmra.mrb[0].mxu0 %v1347
        %v1913 = vpop.f32.mrb[0].mxu0
        %v1914 = vadd.f32 %v1432, %v1913
        %v1915 = vpop.f32.mrb[0].mxu0
        %v1916 = vadd.f32 %v1436, %v1915
        %v1917 = vpop.f32.mrb[0].mxu0
        %v1918 = vadd.f32 %v1432, %v1917
        %v1919 = vpop.f32.mrb[0].mxu0
        %v1920 = vadd.f32 %v1436, %v1919
        %1921 = vmatprep.mubr.bf16.mxu0 %v1352
        %1922 = vmatmul.mubr.bf16.gmra.mrb[0].mxu0 %v1351
        %v1923 = vpop.f32.mrb[0].mxu0
        %v1924 = vadd.f32 %v1432, %v1923
        %v1925 = vpop.f32.mrb[0].mxu0
        %v1926 = vadd.f32 %v1436, %v1925
        %v1927 = vpop.f32.mrb[0].mxu0
        %v1928 = vadd.f32 %v1432, %v1927
        %v1929 = vpop.f32.mrb[0].mxu0
        %v1930 = vadd.f32 %v1436, %v1929
        %1931 = vmatprep.mubr.bf16.mxu0 %v1356
        %1932 = vmatmul.mubr.bf16.gmra.mrb[0].mxu0 %v1355
        %v1933 = vpop.f32.mrb[0].mxu0
        %v1934 = vadd.f32 %v1432, %v1933
        %v1935 = vpop.f32.mrb[0].mxu0
        %v1936 = vadd.f32 %v1436, %v1935
        %v1937 = vpop.f32.mrb[0].mxu0
        %v1938 = vadd.f32 %v1432, %v1937
        %v1939 = vpop.f32.mrb[0].mxu0
        %v1940 = vadd.f32 %v1436, %v1939
        %1941 = vmatprep.mubr.bf16.mxu0 %v1360
        %1942 = vmatmul.mubr.bf16.gmra.mrb[0].mxu0 %v1359
        %v1943 = vpop.f32.mrb[0].mxu0
        %v1944 = vadd.f32 %v1432, %v1943
        %v1945 = vpop.f32.mrb[0].mxu0
        %v1946 = vadd.f32 %v1436, %v1945
        %v1947 = vpop.f32.mrb[0].mxu0
        %v1948 = vadd.f32 %v1432, %v1947
        %v1949 = vpop.f32.mrb[0].mxu0
        %v1950 = vadd.f32 %v1436, %v1949
        %1951 = vdwg.mxu0
        %1952 = vmatprep.subr.bf16.mxu0 %v1664
        %1953 = vmatpush1.bf16.msra.mxu0 %v1663
        %1954 = vmatprep.subr.bf16.mxu0 %v1666
        %1955 = vmatpush1.bf16.msra.mxu0 %v1665
        %1956 = vmatprep.subr.bf16.mxu0 %v1668
        %1957 = vmatpush1.bf16.msra.mxu0 %v1667
        %1958 = vmatprep.subr.bf16.mxu0 %v1670
        %1959 = vmatpush1.bf16.msra.mxu0 %v1669
        %1960 = vmatprep.subr.bf16.mxu0 %v1672
        %1961 = vmatpush1.bf16.msra.mxu0 %v1671
        %1962 = vmatprep.subr.bf16.mxu0 %v1674
        %1963 = vmatpush1.bf16.msra.mxu0 %v1673
        %1964 = vmatprep.subr.bf16.mxu0 %v1676
        %1965 = vmatpush1.bf16.msra.mxu0 %v1675
        %1966 = vmatprep.subr.bf16.mxu0 %v1678
        %1967 = vmatpush1.bf16.msra.mxu0 %v1677
        %1968 = vmatprep.subr.bf16.mxu0 %v1680
        %1969 = vmatpush1.bf16.msra.mxu0 %v1679
        %1970 = vmatprep.subr.bf16.mxu0 %v1682
        %1971 = vmatpush1.bf16.msra.mxu0 %v1681
        %1972 = vmatprep.subr.bf16.mxu0 %v1684
        %1973 = vmatpush1.bf16.msra.mxu0 %v1683
        %1974 = vmatprep.subr.bf16.mxu0 %v1686
        %1975 = vmatpush1.bf16.msra.mxu0 %v1685
        %1976 = vmatprep.subr.bf16.mxu0 %v1688
        %1977 = vmatpush1.bf16.msra.mxu0 %v1687
        %1978 = vmatprep.subr.bf16.mxu0 %v1690
        %1979 = vmatpush1.bf16.msra.mxu0 %v1689
        %1980 = vmatprep.subr.bf16.mxu0 %v1692
        %1981 = vmatpush1.bf16.msra.mxu0 %v1691
        %1982 = vmatprep.subr.bf16.mxu0 %v1694
        %1983 = vmatpush1.bf16.msra.mxu0 %v1693
        %1984 = vmatprep.mubr.bf16.mxu0 %v1302
        %1985 = vmatmul.mubr.bf16.gmra.mrb[0].mxu0 %v1301
        %v1986 = vpop.f32.mrb[0].mxu0
        %v1987 = vadd.f32 %v1794, %v1986
        %v1988 = vpop.f32.mrb[0].mxu0
        %v1989 = vadd.f32 %v1796, %v1988
        %v1990 = vpop.f32.mrb[0].mxu0
        %v1991 = vadd.f32 %v1798, %v1990
        %v1992 = vpop.f32.mrb[0].mxu0
        %v1993 = vadd.f32 %v1800, %v1992
        %1994 = vmatprep.mubr.bf16.mxu0 %v1306
        %1995 = vmatmul.mubr.bf16.gmra.mrb[0].mxu0 %v1305
        %v1996 = vpop.f32.mrb[0].mxu0
        %v1997 = vadd.f32 %v1804, %v1996
        %v1998 = vpop.f32.mrb[0].mxu0
        %v1999 = vadd.f32 %v1806, %v1998
        %v2000 = vpop.f32.mrb[0].mxu0
        %v2001 = vadd.f32 %v1808, %v2000
        %v2002 = vpop.f32.mrb[0].mxu0
        %v2003 = vadd.f32 %v1810, %v2002
        %2004 = vmatprep.mubr.bf16.mxu0 %v1310
        %2005 = vmatmul.mubr.bf16.gmra.mrb[0].mxu0 %v1309
        %v2006 = vpop.f32.mrb[0].mxu0
        %v2007 = vadd.f32 %v1814, %v2006
        %v2008 = vpop.f32.mrb[0].mxu0
        %v2009 = vadd.f32 %v1816, %v2008
        %v2010 = vpop.f32.mrb[0].mxu0
        %v2011 = vadd.f32 %v1818, %v2010
        %v2012 = vpop.f32.mrb[0].mxu0
        %v2013 = vadd.f32 %v1820, %v2012
        %2014 = vmatprep.mubr.bf16.mxu0 %v1314
        %2015 = vmatmul.mubr.bf16.gmra.mrb[0].mxu0 %v1313
        %v2016 = vpop.f32.mrb[0].mxu0
        %v2017 = vadd.f32 %v1824, %v2016
        %v2018 = vpop.f32.mrb[0].mxu0
        %v2019 = vadd.f32 %v1826, %v2018
        %v2020 = vpop.f32.mrb[0].mxu0
        %v2021 = vadd.f32 %v1828, %v2020
        %v2022 = vpop.f32.mrb[0].mxu0
        %v2023 = vadd.f32 %v1830, %v2022
        %2024 = vmatprep.mubr.bf16.mxu0 %v1318
        %2025 = vmatmul.mubr.bf16.gmra.mrb[0].mxu0 %v1317
        %v2026 = vpop.f32.mrb[0].mxu0
        %v2027 = vadd.f32 %v1834, %v2026
        %v2028 = vpop.f32.mrb[0].mxu0
        %v2029 = vadd.f32 %v1836, %v2028
        %v2030 = vpop.f32.mrb[0].mxu0
        %v2031 = vadd.f32 %v1838, %v2030
        %v2032 = vpop.f32.mrb[0].mxu0
        %v2033 = vadd.f32 %v1840, %v2032
        %2034 = vmatprep.mubr.bf16.mxu0 %v1322
        %2035 = vmatmul.mubr.bf16.gmra.mrb[0].mxu0 %v1321
        %v2036 = vpop.f32.mrb[0].mxu0
        %v2037 = vadd.f32 %v1844, %v2036
        %v2038 = vpop.f32.mrb[0].mxu0
        %v2039 = vadd.f32 %v1846, %v2038
        %v2040 = vpop.f32.mrb[0].mxu0
        %v2041 = vadd.f32 %v1848, %v2040
        %v2042 = vpop.f32.mrb[0].mxu0
        %v2043 = vadd.f32 %v1850, %v2042
        %2044 = vmatprep.mubr.bf16.mxu0 %v1326
        %2045 = vmatmul.mubr.bf16.gmra.mrb[0].mxu0 %v1325
        %v2046 = vpop.f32.mrb[0].mxu0
        %v2047 = vadd.f32 %v1854, %v2046
        %v2048 = vpop.f32.mrb[0].mxu0
        %v2049 = vadd.f32 %v1856, %v2048
        %v2050 = vpop.f32.mrb[0].mxu0
        %v2051 = vadd.f32 %v1858, %v2050
        %v2052 = vpop.f32.mrb[0].mxu0
        %v2053 = vadd.f32 %v1860, %v2052
        %2054 = vmatprep.mubr.bf16.mxu0 %v1330
        %2055 = vmatmul.mubr.bf16.gmra.mrb[0].mxu0 %v1329
        %v2056 = vpop.f32.mrb[0].mxu0
        %v2057 = vadd.f32 %v1864, %v2056
        %v2058 = vpop.f32.mrb[0].mxu0
        %v2059 = vadd.f32 %v1866, %v2058
        %v2060 = vpop.f32.mrb[0].mxu0
        %v2061 = vadd.f32 %v1868, %v2060
        %v2062 = vpop.f32.mrb[0].mxu0
        %v2063 = vadd.f32 %v1870, %v2062
        %2064 = vmatprep.mubr.bf16.mxu0 %v1334
        %2065 = vmatmul.mubr.bf16.gmra.mrb[0].mxu0 %v1333
        %v2066 = vpop.f32.mrb[0].mxu0
        %v2067 = vadd.f32 %v1874, %v2066
        %v2068 = vpop.f32.mrb[0].mxu0
        %v2069 = vadd.f32 %v1876, %v2068
        %v2070 = vpop.f32.mrb[0].mxu0
        %v2071 = vadd.f32 %v1878, %v2070
        %v2072 = vpop.f32.mrb[0].mxu0
        %v2073 = vadd.f32 %v1880, %v2072
        %2074 = vmatprep.mubr.bf16.mxu0 %v1338
        %2075 = vmatmul.mubr.bf16.gmra.mrb[0].mxu0 %v1337
        %v2076 = vpop.f32.mrb[0].mxu0
        %v2077 = vadd.f32 %v1884, %v2076
        %v2078 = vpop.f32.mrb[0].mxu0
        %v2079 = vadd.f32 %v1886, %v2078
        %v2080 = vpop.f32.mrb[0].mxu0
        %v2081 = vadd.f32 %v1888, %v2080
        %v2082 = vpop.f32.mrb[0].mxu0
        %v2083 = vadd.f32 %v1890, %v2082
        %2084 = vmatprep.mubr.bf16.mxu0 %v1342
        %2085 = vmatmul.mubr.bf16.gmra.mrb[0].mxu0 %v1341
        %v2086 = vpop.f32.mrb[0].mxu0
        %v2087 = vadd.f32 %v1894, %v2086
        %v2088 = vpop.f32.mrb[0].mxu0
        %v2089 = vadd.f32 %v1896, %v2088
        %v2090 = vpop.f32.mrb[0].mxu0
        %v2091 = vadd.f32 %v1898, %v2090
        %v2092 = vpop.f32.mrb[0].mxu0
        %v2093 = vadd.f32 %v1900, %v2092
        %2094 = vmatprep.mubr.bf16.mxu0 %v1346
        %2095 = vmatmul.mubr.bf16.gmra.mrb[0].mxu0 %v1345
        %v2096 = vpop.f32.mrb[0].mxu0
        %v2097 = vadd.f32 %v1904, %v2096
        %v2098 = vpop.f32.mrb[0].mxu0
        %v2099 = vadd.f32 %v1906, %v2098
        %v2100 = vpop.f32.mrb[0].mxu0
        %v2101 = vadd.f32 %v1908, %v2100
        %v2102 = vpop.f32.mrb[0].mxu0
        %v2103 = vadd.f32 %v1910, %v2102
        %2104 = vmatprep.mubr.bf16.mxu0 %v1350
        %2105 = vmatmul.mubr.bf16.gmra.mrb[0].mxu0 %v1349
        %v2106 = vpop.f32.mrb[0].mxu0
        %v2107 = vadd.f32 %v1914, %v2106
        %v2108 = vpop.f32.mrb[0].mxu0
        %v2109 = vadd.f32 %v1916, %v2108
        %v2110 = vpop.f32.mrb[0].mxu0
        %v2111 = vadd.f32 %v1918, %v2110
        %v2112 = vpop.f32.mrb[0].mxu0
        %v2113 = vadd.f32 %v1920, %v2112
        %2114 = vmatprep.mubr.bf16.mxu0 %v1354
        %2115 = vmatmul.mubr.bf16.gmra.mrb[0].mxu0 %v1353
        %v2116 = vpop.f32.mrb[0].mxu0
        %v2117 = vadd.f32 %v1924, %v2116
        %v2118 = vpop.f32.mrb[0].mxu0
        %v2119 = vadd.f32 %v1926, %v2118
        %v2120 = vpop.f32.mrb[0].mxu0
        %v2121 = vadd.f32 %v1928, %v2120
        %v2122 = vpop.f32.mrb[0].mxu0
        %v2123 = vadd.f32 %v1930, %v2122
        %2124 = vmatprep.mubr.bf16.mxu0 %v1358
        %2125 = vmatmul.mubr.bf16.gmra.mrb[0].mxu0 %v1357
        %v2126 = vpop.f32.mrb[0].mxu0
        %v2127 = vadd.f32 %v1934, %v2126
        %v2128 = vpop.f32.mrb[0].mxu0
        %v2129 = vadd.f32 %v1936, %v2128
        %v2130 = vpop.f32.mrb[0].mxu0
        %v2131 = vadd.f32 %v1938, %v2130
        %v2132 = vpop.f32.mrb[0].mxu0
        %v2133 = vadd.f32 %v1940, %v2132
        %2134 = vmatprep.mubr.bf16.mxu0 %v1362
        %2135 = vmatmul.mubr.bf16.gmra.mrb[0].mxu0 %v1361
        %v2136 = vpop.f32.mrb[0].mxu0
        %v2137 = vadd.f32 %v1944, %v2136
        %v2138 = vpop.f32.mrb[0].mxu0
        %v2139 = vadd.f32 %v1946, %v2138
        %v2140 = vpop.f32.mrb[0].mxu0
        %v2141 = vadd.f32 %v1948, %v2140
        %v2142 = vpop.f32.mrb[0].mxu0
        %v2143 = vadd.f32 %v1950, %v2142
        %2144 = vdwg.mxu0
        %v2145 = vld [vmem:[#allocation7] sm:$0x3f]
        %v2146 = vld [vmem:[#allocation7 + $0x8] sm:$0x3f]
        %v2147 = vld [vmem:[%s4] sm:$0xff]
        %v2148 = vlaneseq
        %v2149 = vshrl.u32 %v2148, 7
        %v2150 = vsub.s32 5, %v2149
        %v2151 = vrot.slane %v2145, %v2150
        %v2152 = vlaneseq
        %v2153 = vshrl.u32 %v2152, 7
        %v2154 = vsub.s32 5, %v2153
        %v2155 = vrot.slane %v2146, %v2154
        %v2156 = vmul.f32 %v2151, %v1987
        %v2157 = vmul.f32 %v2155, %v1989
        %v2158 = vmul.f32 %v2151, %v1991
        %v2159 = vmul.f32 %v2155, %v1993
        %v2160 = vmul.f32 %v2151, %v1997
        %v2161 = vmul.f32 %v2155, %v1999
        %v2162 = vmul.f32 %v2151, %v2001
        %v2163 = vmul.f32 %v2155, %v2003
        %v2164 = vmul.f32 %v2151, %v2007
        %v2165 = vmul.f32 %v2155, %v2009
        %v2166 = vmul.f32 %v2151, %v2011
        %v2167 = vmul.f32 %v2155, %v2013
        %v2168 = vmul.f32 %v2151, %v2017
        %v2169 = vmul.f32 %v2155, %v2019
        %v2170 = vmul.f32 %v2151, %v2021
        %v2171 = vmul.f32 %v2155, %v2023
        %v2172 = vmul.f32 %v2151, %v2027
        %v2173 = vmul.f32 %v2155, %v2029
        %v2174 = vmul.f32 %v2151, %v2031
        %v2175 = vmul.f32 %v2155, %v2033
        %v2176 = vmul.f32 %v2151, %v2037
        %v2177 = vmul.f32 %v2155, %v2039
        %v2178 = vmul.f32 %v2151, %v2041
        %v2179 = vmul.f32 %v2155, %v2043
        %v2180 = vmul.f32 %v2151, %v2047
        %v2181 = vmul.f32 %v2155, %v2049
        %v2182 = vmul.f32 %v2151, %v2051
        %v2183 = vmul.f32 %v2155, %v2053
        %v2184 = vmul.f32 %v2151, %v2057
        %v2185 = vmul.f32 %v2155, %v2059
        %v2186 = vmul.f32 %v2151, %v2061
        %v2187 = vmul.f32 %v2155, %v2063
        %v2188 = vmul.f32 %v2151, %v2067
        %v2189 = vmul.f32 %v2155, %v2069
        %v2190 = vmul.f32 %v2151, %v2071
        %v2191 = vmul.f32 %v2155, %v2073
        %v2192 = vmul.f32 %v2151, %v2077
        %v2193 = vmul.f32 %v2155, %v2079
        %v2194 = vmul.f32 %v2151, %v2081
        %v2195 = vmul.f32 %v2155, %v2083
        %v2196 = vmul.f32 %v2151, %v2087
        %v2197 = vmul.f32 %v2155, %v2089
        %v2198 = vmul.f32 %v2151, %v2091
        %v2199 = vmul.f32 %v2155, %v2093
        %v2200 = vmul.f32 %v2151, %v2097
        %v2201 = vmul.f32 %v2155, %v2099
        %v2202 = vmul.f32 %v2151, %v2101
        %v2203 = vmul.f32 %v2155, %v2103
        %v2204 = vmul.f32 %v2151, %v2107
        %v2205 = vmul.f32 %v2155, %v2109
        %v2206 = vmul.f32 %v2151, %v2111
        %v2207 = vmul.f32 %v2155, %v2113
        %v2208 = vmul.f32 %v2151, %v2117
        %v2209 = vmul.f32 %v2155, %v2119
        %v2210 = vmul.f32 %v2151, %v2121
        %v2211 = vmul.f32 %v2155, %v2123
        %v2212 = vmul.f32 %v2151, %v2127
        %v2213 = vmul.f32 %v2155, %v2129
        %v2214 = vmul.f32 %v2151, %v2131
        %v2215 = vmul.f32 %v2155, %v2133
        %v2216 = vmul.f32 %v2151, %v2137
        %v2217 = vmul.f32 %v2155, %v2139
        %v2218 = vmul.f32 %v2151, %v2141
        %v2219 = vmul.f32 %v2155, %v2143
        %v2220 = vlaneseq
        %v2221 = vshrl.u32 %v2220, 7
        %v2222 = vsub.s32 4, %v2221
        %v2223 = vrot.slane %v2145, %v2222
        %v2224 = vlaneseq
        %v2225 = vshrl.u32 %v2224, 7
        %v2226 = vsub.s32 4, %v2225
        %v2227 = vrot.slane %v2146, %v2226
        %v2228 = vadd.f32 %v2156, %v2223
        %v2229 = vadd.f32 %v2157, %v2227
        %v2230 = vadd.f32 %v2158, %v2223
        %v2231 = vadd.f32 %v2159, %v2227
        %v2232 = vadd.f32 %v2160, %v2223
        %v2233 = vadd.f32 %v2161, %v2227
        %v2234 = vadd.f32 %v2162, %v2223
        %v2235 = vadd.f32 %v2163, %v2227
        %v2236 = vadd.f32 %v2164, %v2223
        %v2237 = vadd.f32 %v2165, %v2227
        %v2238 = vadd.f32 %v2166, %v2223
        %v2239 = vadd.f32 %v2167, %v2227
        %v2240 = vadd.f32 %v2168, %v2223
        %v2241 = vadd.f32 %v2169, %v2227
        %v2242 = vadd.f32 %v2170, %v2223
        %v2243 = vadd.f32 %v2171, %v2227
        %v2244 = vadd.f32 %v2172, %v2223
        %v2245 = vadd.f32 %v2173, %v2227
        %v2246 = vadd.f32 %v2174, %v2223
        %v2247 = vadd.f32 %v2175, %v2227
        %v2248 = vadd.f32 %v2176, %v2223
        %v2249 = vadd.f32 %v2177, %v2227
        %v2250 = vadd.f32 %v2178, %v2223
        %v2251 = vadd.f32 %v2179, %v2227
        %v2252 = vadd.f32 %v2180, %v2223
        %v2253 = vadd.f32 %v2181, %v2227
        %v2254 = vadd.f32 %v2182, %v2223
        %v2255 = vadd.f32 %v2183, %v2227
        %v2256 = vadd.f32 %v2184, %v2223
        %v2257 = vadd.f32 %v2185, %v2227
        %v2258 = vadd.f32 %v2186, %v2223
        %v2259 = vadd.f32 %v2187, %v2227
        %v2260 = vadd.f32 %v2188, %v2223
        %v2261 = vadd.f32 %v2189, %v2227
        %v2262 = vadd.f32 %v2190, %v2223
        %v2263 = vadd.f32 %v2191, %v2227
        %v2264 = vadd.f32 %v2192, %v2223
        %v2265 = vadd.f32 %v2193, %v2227
        %v2266 = vadd.f32 %v2194, %v2223
        %v2267 = vadd.f32 %v2195, %v2227
        %v2268 = vadd.f32 %v2196, %v2223
        %v2269 = vadd.f32 %v2197, %v2227
        %v2270 = vadd.f32 %v2198, %v2223
        %v2271 = vadd.f32 %v2199, %v2227
        %v2272 = vadd.f32 %v2200, %v2223
        %v2273 = vadd.f32 %v2201, %v2227
        %v2274 = vadd.f32 %v2202, %v2223
        %v2275 = vadd.f32 %v2203, %v2227
        %v2276 = vadd.f32 %v2204, %v2223
        %v2277 = vadd.f32 %v2205, %v2227
        %v2278 = vadd.f32 %v2206, %v2223
        %v2279 = vadd.f32 %v2207, %v2227
        %v2280 = vadd.f32 %v2208, %v2223
        %v2281 = vadd.f32 %v2209, %v2227
        %v2282 = vadd.f32 %v2210, %v2223
        %v2283 = vadd.f32 %v2211, %v2227
        %v2284 = vadd.f32 %v2212, %v2223
        %v2285 = vadd.f32 %v2213, %v2227
        %v2286 = vadd.f32 %v2214, %v2223
        %v2287 = vadd.f32 %v2215, %v2227
        %v2288 = vadd.f32 %v2216, %v2223
        %v2289 = vadd.f32 %v2217, %v2227
        %v2290 = vadd.f32 %v2218, %v2223
        %v2291 = vadd.f32 %v2219, %v2227
        %v2292 = vmul.f32 %v2228, %v1987
        %v2293 = vmul.f32 %v2229, %v1989
        %v2294 = vmul.f32 %v2230, %v1991
        %v2295 = vmul.f32 %v2231, %v1993
        %v2296 = vmul.f32 %v2232, %v1997
        %v2297 = vmul.f32 %v2233, %v1999
        %v2298 = vmul.f32 %v2234, %v2001
        %v2299 = vmul.f32 %v2235, %v2003
        %v2300 = vmul.f32 %v2236, %v2007
        %v2301 = vmul.f32 %v2237, %v2009
        %v2302 = vmul.f32 %v2238, %v2011
        %v2303 = vmul.f32 %v2239, %v2013
        %v2304 = vmul.f32 %v2240, %v2017
        %v2305 = vmul.f32 %v2241, %v2019
        %v2306 = vmul.f32 %v2242, %v2021
        %v2307 = vmul.f32 %v2243, %v2023
        %v2308 = vmul.f32 %v2244, %v2027
        %v2309 = vmul.f32 %v2245, %v2029
        %v2310 = vmul.f32 %v2246, %v2031
        %v2311 = vmul.f32 %v2247, %v2033
        %v2312 = vmul.f32 %v2248, %v2037
        %v2313 = vmul.f32 %v2249, %v2039
        %v2314 = vmul.f32 %v2250, %v2041
        %v2315 = vmul.f32 %v2251, %v2043
        %v2316 = vmul.f32 %v2252, %v2047
        %v2317 = vmul.f32 %v2253, %v2049
        %v2318 = vmul.f32 %v2254, %v2051
        %v2319 = vmul.f32 %v2255, %v2053
        %v2320 = vmul.f32 %v2256, %v2057
        %v2321 = vmul.f32 %v2257, %v2059
        %v2322 = vmul.f32 %v2258, %v2061
        %v2323 = vmul.f32 %v2259, %v2063
        %v2324 = vmul.f32 %v2260, %v2067
        %v2325 = vmul.f32 %v2261, %v2069
        %v2326 = vmul.f32 %v2262, %v2071
        %v2327 = vmul.f32 %v2263, %v2073
        %v2328 = vmul.f32 %v2264, %v2077
        %v2329 = vmul.f32 %v2265, %v2079
        %v2330 = vmul.f32 %v2266, %v2081
        %v2331 = vmul.f32 %v2267, %v2083
        %v2332 = vmul.f32 %v2268, %v2087
        %v2333 = vmul.f32 %v2269, %v2089
        %v2334 = vmul.f32 %v2270, %v2091
        %v2335 = vmul.f32 %v2271, %v2093
        %v2336 = vmul.f32 %v2272, %v2097
        %v2337 = vmul.f32 %v2273, %v2099
        %v2338 = vmul.f32 %v2274, %v2101
        %v2339 = vmul.f32 %v2275, %v2103
        %v2340 = vmul.f32 %v2276, %v2107
        %v2341 = vmul.f32 %v2277, %v2109
        %v2342 = vmul.f32 %v2278, %v2111
        %v2343 = vmul.f32 %v2279, %v2113
        %v2344 = vmul.f32 %v2280, %v2117
        %v2345 = vmul.f32 %v2281, %v2119
        %v2346 = vmul.f32 %v2282, %v2121
        %v2347 = vmul.f32 %v2283, %v2123
        %v2348 = vmul.f32 %v2284, %v2127
        %v2349 = vmul.f32 %v2285, %v2129
        %v2350 = vmul.f32 %v2286, %v2131
        %v2351 = vmul.f32 %v2287, %v2133
        %v2352 = vmul.f32 %v2288, %v2137
        %v2353 = vmul.f32 %v2289, %v2139
        %v2354 = vmul.f32 %v2290, %v2141
        %v2355 = vmul.f32 %v2291, %v2143
        %v2356 = vlaneseq
        %v2357 = vshrl.u32 %v2356, 7
        %v2358 = vsub.s32 3, %v2357
        %v2359 = vrot.slane %v2145, %v2358
        %v2360 = vlaneseq
        %v2361 = vshrl.u32 %v2360, 7
        %v2362 = vsub.s32 3, %v2361
        %v2363 = vrot.slane %v2146, %v2362
        %v2364 = vadd.f32 %v2292, %v2359
        %v2365 = vadd.f32 %v2293, %v2363
        %v2366 = vadd.f32 %v2294, %v2359
        %v2367 = vadd.f32 %v2295, %v2363
        %v2368 = vadd.f32 %v2296, %v2359
        %v2369 = vadd.f32 %v2297, %v2363
        %v2370 = vadd.f32 %v2298, %v2359
        %v2371 = vadd.f32 %v2299, %v2363
        %v2372 = vadd.f32 %v2300, %v2359
        %v2373 = vadd.f32 %v2301, %v2363
        %v2374 = vadd.f32 %v2302, %v2359
        %v2375 = vadd.f32 %v2303, %v2363
        %v2376 = vadd.f32 %v2304, %v2359
        %v2377 = vadd.f32 %v2305, %v2363
        %v2378 = vadd.f32 %v2306, %v2359
        %v2379 = vadd.f32 %v2307, %v2363
        %v2380 = vadd.f32 %v2308, %v2359
        %v2381 = vadd.f32 %v2309, %v2363
        %v2382 = vadd.f32 %v2310, %v2359
        %v2383 = vadd.f32 %v2311, %v2363
        %v2384 = vadd.f32 %v2312, %v2359
        %v2385 = vadd.f32 %v2313, %v2363
        %v2386 = vadd.f32 %v2314, %v2359
        %v2387 = vadd.f32 %v2315, %v2363
        %v2388 = vadd.f32 %v2316, %v2359
        %v2389 = vadd.f32 %v2317, %v2363
        %v2390 = vadd.f32 %v2318, %v2359
        %v2391 = vadd.f32 %v2319, %v2363
        %v2392 = vadd.f32 %v2320, %v2359
        %v2393 = vadd.f32 %v2321, %v2363
        %v2394 = vadd.f32 %v2322, %v2359
        %v2395 = vadd.f32 %v2323, %v2363
        %v2396 = vadd.f32 %v2324, %v2359
        %v2397 = vadd.f32 %v2325, %v2363
        %v2398 = vadd.f32 %v2326, %v2359
        %v2399 = vadd.f32 %v2327, %v2363
        %v2400 = vadd.f32 %v2328, %v2359
        %v2401 = vadd.f32 %v2329, %v2363
        %v2402 = vadd.f32 %v2330, %v2359
        %v2403 = vadd.f32 %v2331, %v2363
        %v2404 = vadd.f32 %v2332, %v2359
        %v2405 = vadd.f32 %v2333, %v2363
        %v2406 = vadd.f32 %v2334, %v2359
        %v2407 = vadd.f32 %v2335, %v2363
        %v2408 = vadd.f32 %v2336, %v2359
        %v2409 = vadd.f32 %v2337, %v2363
        %v2410 = vadd.f32 %v2338, %v2359
        %v2411 = vadd.f32 %v2339, %v2363
        %v2412 = vadd.f32 %v2340, %v2359
        %v2413 = vadd.f32 %v2341, %v2363
        %v2414 = vadd.f32 %v2342, %v2359
        %v2415 = vadd.f32 %v2343, %v2363
        %v2416 = vadd.f32 %v2344, %v2359
        %v2417 = vadd.f32 %v2345, %v2363
        %v2418 = vadd.f32 %v2346, %v2359
        %v2419 = vadd.f32 %v2347, %v2363
        %v2420 = vadd.f32 %v2348, %v2359
        %v2421 = vadd.f32 %v2349, %v2363
        %v2422 = vadd.f32 %v2350, %v2359
        %v2423 = vadd.f32 %v2351, %v2363
        %v2424 = vadd.f32 %v2352, %v2359
        %v2425 = vadd.f32 %v2353, %v2363
        %v2426 = vadd.f32 %v2354, %v2359
        %v2427 = vadd.f32 %v2355, %v2363
        %v2428 = vmul.f32 %v2364, %v1987
        %v2429 = vmul.f32 %v2365, %v1989
        %v2430 = vmul.f32 %v2366, %v1991
        %v2431 = vmul.f32 %v2367, %v1993
        %v2432 = vmul.f32 %v2368, %v1997
        %v2433 = vmul.f32 %v2369, %v1999
        %v2434 = vmul.f32 %v2370, %v2001
        %v2435 = vmul.f32 %v2371, %v2003
        %v2436 = vmul.f32 %v2372, %v2007
        %v2437 = vmul.f32 %v2373, %v2009
        %v2438 = vmul.f32 %v2374, %v2011
        %v2439 = vmul.f32 %v2375, %v2013
        %v2440 = vmul.f32 %v2376, %v2017
        %v2441 = vmul.f32 %v2377, %v2019
        %v2442 = vmul.f32 %v2378, %v2021
        %v2443 = vmul.f32 %v2379, %v2023
        %v2444 = vmul.f32 %v2380, %v2027
        %v2445 = vmul.f32 %v2381, %v2029
        %v2446 = vmul.f32 %v2382, %v2031
        %v2447 = vmul.f32 %v2383, %v2033
        %v2448 = vmul.f32 %v2384, %v2037
        %v2449 = vmul.f32 %v2385, %v2039
        %v2450 = vmul.f32 %v2386, %v2041
        %v2451 = vmul.f32 %v2387, %v2043
        %v2452 = vmul.f32 %v2388, %v2047
        %v2453 = vmul.f32 %v2389, %v2049
        %v2454 = vmul.f32 %v2390, %v2051
        %v2455 = vmul.f32 %v2391, %v2053
        %v2456 = vmul.f32 %v2392, %v2057
        %v2457 = vmul.f32 %v2393, %v2059
        %v2458 = vmul.f32 %v2394, %v2061
        %v2459 = vmul.f32 %v2395, %v2063
        %v2460 = vmul.f32 %v2396, %v2067
        %v2461 = vmul.f32 %v2397, %v2069
        %v2462 = vmul.f32 %v2398, %v2071
        %v2463 = vmul.f32 %v2399, %v2073
        %v2464 = vmul.f32 %v2400, %v2077
        %v2465 = vmul.f32 %v2401, %v2079
        %v2466 = vmul.f32 %v2402, %v2081
        %v2467 = vmul.f32 %v2403, %v2083
        %v2468 = vmul.f32 %v2404, %v2087
        %v2469 = vmul.f32 %v2405, %v2089
        %v2470 = vmul.f32 %v2406, %v2091
        %v2471 = vmul.f32 %v2407, %v2093
        %v2472 = vmul.f32 %v2408, %v2097
        %v2473 = vmul.f32 %v2409, %v2099
        %v2474 = vmul.f32 %v2410, %v2101
        %v2475 = vmul.f32 %v2411, %v2103
        %v2476 = vmul.f32 %v2412, %v2107
        %v2477 = vmul.f32 %v2413, %v2109
        %v2478 = vmul.f32 %v2414, %v2111
        %v2479 = vmul.f32 %v2415, %v2113
        %v2480 = vmul.f32 %v2416, %v2117
        %v2481 = vmul.f32 %v2417, %v2119
        %v2482 = vmul.f32 %v2418, %v2121
        %v2483 = vmul.f32 %v2419, %v2123
        %v2484 = vmul.f32 %v2420, %v2127
        %v2485 = vmul.f32 %v2421, %v2129
        %v2486 = vmul.f32 %v2422, %v2131
        %v2487 = vmul.f32 %v2423, %v2133
        %v2488 = vmul.f32 %v2424, %v2137
        %v2489 = vmul.f32 %v2425, %v2139
        %v2490 = vmul.f32 %v2426, %v2141
        %v2491 = vmul.f32 %v2427, %v2143
        %v2492 = vlaneseq
        %v2493 = vshrl.u32 %v2492, 7
        %v2494 = vsub.s32 2, %v2493
        %v2495 = vrot.slane %v2145, %v2494
        %v2496 = vlaneseq
        %v2497 = vshrl.u32 %v2496, 7
        %v2498 = vsub.s32 2, %v2497
        %v2499 = vrot.slane %v2146, %v2498
        %v2500 = vadd.f32 %v2428, %v2495
        %v2501 = vadd.f32 %v2429, %v2499
        %v2502 = vadd.f32 %v2430, %v2495
        %v2503 = vadd.f32 %v2431, %v2499
        %v2504 = vadd.f32 %v2432, %v2495
        %v2505 = vadd.f32 %v2433, %v2499
        %v2506 = vadd.f32 %v2434, %v2495
        %v2507 = vadd.f32 %v2435, %v2499
        %v2508 = vadd.f32 %v2436, %v2495
        %v2509 = vadd.f32 %v2437, %v2499
        %v2510 = vadd.f32 %v2438, %v2495
        %v2511 = vadd.f32 %v2439, %v2499
        %v2512 = vadd.f32 %v2440, %v2495
        %v2513 = vadd.f32 %v2441, %v2499
        %v2514 = vadd.f32 %v2442, %v2495
        %v2515 = vadd.f32 %v2443, %v2499
        %v2516 = vadd.f32 %v2444, %v2495
        %v2517 = vadd.f32 %v2445, %v2499
        %v2518 = vadd.f32 %v2446, %v2495
        %v2519 = vadd.f32 %v2447, %v2499
        %v2520 = vadd.f32 %v2448, %v2495
        %v2521 = vadd.f32 %v2449, %v2499
        %v2522 = vadd.f32 %v2450, %v2495
        %v2523 = vadd.f32 %v2451, %v2499
        %v2524 = vadd.f32 %v2452, %v2495
        %v2525 = vadd.f32 %v2453, %v2499
        %v2526 = vadd.f32 %v2454, %v2495
        %v2527 = vadd.f32 %v2455, %v2499
        %v2528 = vadd.f32 %v2456, %v2495
        %v2529 = vadd.f32 %v2457, %v2499
        %v2530 = vadd.f32 %v2458, %v2495
        %v2531 = vadd.f32 %v2459, %v2499
        %v2532 = vadd.f32 %v2460, %v2495
        %v2533 = vadd.f32 %v2461, %v2499
        %v2534 = vadd.f32 %v2462, %v2495
        %v2535 = vadd.f32 %v2463, %v2499
        %v2536 = vadd.f32 %v2464, %v2495
        %v2537 = vadd.f32 %v2465, %v2499
        %v2538 = vadd.f32 %v2466, %v2495
        %v2539 = vadd.f32 %v2467, %v2499
        %v2540 = vadd.f32 %v2468, %v2495
        %v2541 = vadd.f32 %v2469, %v2499
        %v2542 = vadd.f32 %v2470, %v2495
        %v2543 = vadd.f32 %v2471, %v2499
        %v2544 = vadd.f32 %v2472, %v2495
        %v2545 = vadd.f32 %v2473, %v2499
        %v2546 = vadd.f32 %v2474, %v2495
        %v2547 = vadd.f32 %v2475, %v2499
        %v2548 = vadd.f32 %v2476, %v2495
        %v2549 = vadd.f32 %v2477, %v2499
        %v2550 = vadd.f32 %v2478, %v2495
        %v2551 = vadd.f32 %v2479, %v2499
        %v2552 = vadd.f32 %v2480, %v2495
        %v2553 = vadd.f32 %v2481, %v2499
        %v2554 = vadd.f32 %v2482, %v2495
        %v2555 = vadd.f32 %v2483, %v2499
        %v2556 = vadd.f32 %v2484, %v2495
        %v2557 = vadd.f32 %v2485, %v2499
        %v2558 = vadd.f32 %v2486, %v2495
        %v2559 = vadd.f32 %v2487, %v2499
        %v2560 = vadd.f32 %v2488, %v2495
        %v2561 = vadd.f32 %v2489, %v2499
        %v2562 = vadd.f32 %v2490, %v2495
        %v2563 = vadd.f32 %v2491, %v2499
        %v2564 = vmul.f32 %v2500, %v1987
        %v2565 = vmul.f32 %v2501, %v1989
        %v2566 = vmul.f32 %v2502, %v1991
        %v2567 = vmul.f32 %v2503, %v1993
        %v2568 = vmul.f32 %v2504, %v1997
        %v2569 = vmul.f32 %v2505, %v1999
        %v2570 = vmul.f32 %v2506, %v2001
        %v2571 = vmul.f32 %v2507, %v2003
        %v2572 = vmul.f32 %v2508, %v2007
        %v2573 = vmul.f32 %v2509, %v2009
        %v2574 = vmul.f32 %v2510, %v2011
        %v2575 = vmul.f32 %v2511, %v2013
        %v2576 = vmul.f32 %v2512, %v2017
        %v2577 = vmul.f32 %v2513, %v2019
        %v2578 = vmul.f32 %v2514, %v2021
        %v2579 = vmul.f32 %v2515, %v2023
        %v2580 = vmul.f32 %v2516, %v2027
        %v2581 = vmul.f32 %v2517, %v2029
        %v2582 = vmul.f32 %v2518, %v2031
        %v2583 = vmul.f32 %v2519, %v2033
        %v2584 = vmul.f32 %v2520, %v2037
        %v2585 = vmul.f32 %v2521, %v2039
        %v2586 = vmul.f32 %v2522, %v2041
        %v2587 = vmul.f32 %v2523, %v2043
        %v2588 = vmul.f32 %v2524, %v2047
        %v2589 = vmul.f32 %v2525, %v2049
        %v2590 = vmul.f32 %v2526, %v2051
        %v2591 = vmul.f32 %v2527, %v2053
        %v2592 = vmul.f32 %v2528, %v2057
        %v2593 = vmul.f32 %v2529, %v2059
        %v2594 = vmul.f32 %v2530, %v2061
        %v2595 = vmul.f32 %v2531, %v2063
        %v2596 = vmul.f32 %v2532, %v2067
        %v2597 = vmul.f32 %v2533, %v2069
        %v2598 = vmul.f32 %v2534, %v2071
        %v2599 = vmul.f32 %v2535, %v2073
        %v2600 = vmul.f32 %v2536, %v2077
        %v2601 = vmul.f32 %v2537, %v2079
        %v2602 = vmul.f32 %v2538, %v2081
        %v2603 = vmul.f32 %v2539, %v2083
        %v2604 = vmul.f32 %v2540, %v2087
        %v2605 = vmul.f32 %v2541, %v2089
        %v2606 = vmul.f32 %v2542, %v2091
        %v2607 = vmul.f32 %v2543, %v2093
        %v2608 = vmul.f32 %v2544, %v2097
        %v2609 = vmul.f32 %v2545, %v2099
        %v2610 = vmul.f32 %v2546, %v2101
        %v2611 = vmul.f32 %v2547, %v2103
        %v2612 = vmul.f32 %v2548, %v2107
        %v2613 = vmul.f32 %v2549, %v2109
        %v2614 = vmul.f32 %v2550, %v2111
        %v2615 = vmul.f32 %v2551, %v2113
        %v2616 = vmul.f32 %v2552, %v2117
        %v2617 = vmul.f32 %v2553, %v2119
        %v2618 = vmul.f32 %v2554, %v2121
        %v2619 = vmul.f32 %v2555, %v2123
        %v2620 = vmul.f32 %v2556, %v2127
        %v2621 = vmul.f32 %v2557, %v2129
        %v2622 = vmul.f32 %v2558, %v2131
        %v2623 = vmul.f32 %v2559, %v2133
        %v2624 = vmul.f32 %v2560, %v2137
        %v2625 = vmul.f32 %v2561, %v2139
        %v2626 = vmul.f32 %v2562, %v2141
        %v2627 = vmul.f32 %v2563, %v2143
        %v2628 = vlaneseq
        %v2629 = vshrl.u32 %v2628, 7
        %v2630 = vsub.s32 1, %v2629
        %v2631 = vrot.slane %v2145, %v2630
        %v2632 = vlaneseq
        %v2633 = vshrl.u32 %v2632, 7
        %v2634 = vsub.s32 1, %v2633
        %v2635 = vrot.slane %v2146, %v2634
        %v2636 = vadd.f32 %v2564, %v2631
        %v2637 = vadd.f32 %v2565, %v2635
        %v2638 = vadd.f32 %v2566, %v2631
        %v2639 = vadd.f32 %v2567, %v2635
        %v2640 = vadd.f32 %v2568, %v2631
        %v2641 = vadd.f32 %v2569, %v2635
        %v2642 = vadd.f32 %v2570, %v2631
        %v2643 = vadd.f32 %v2571, %v2635
        %v2644 = vadd.f32 %v2572, %v2631
        %v2645 = vadd.f32 %v2573, %v2635
        %v2646 = vadd.f32 %v2574, %v2631
        %v2647 = vadd.f32 %v2575, %v2635
        %v2648 = vadd.f32 %v2576, %v2631
        %v2649 = vadd.f32 %v2577, %v2635
        %v2650 = vadd.f32 %v2578, %v2631
        %v2651 = vadd.f32 %v2579, %v2635
        %v2652 = vadd.f32 %v2580, %v2631
        %v2653 = vadd.f32 %v2581, %v2635
        %v2654 = vadd.f32 %v2582, %v2631
        %v2655 = vadd.f32 %v2583, %v2635
        %v2656 = vadd.f32 %v2584, %v2631
        %v2657 = vadd.f32 %v2585, %v2635
        %v2658 = vadd.f32 %v2586, %v2631
        %v2659 = vadd.f32 %v2587, %v2635
        %v2660 = vadd.f32 %v2588, %v2631
        %v2661 = vadd.f32 %v2589, %v2635
        %v2662 = vadd.f32 %v2590, %v2631
        %v2663 = vadd.f32 %v2591, %v2635
        %v2664 = vadd.f32 %v2592, %v2631
        %v2665 = vadd.f32 %v2593, %v2635
        %v2666 = vadd.f32 %v2594, %v2631
        %v2667 = vadd.f32 %v2595, %v2635
        %v2668 = vadd.f32 %v2596, %v2631
        %v2669 = vadd.f32 %v2597, %v2635
        %v2670 = vadd.f32 %v2598, %v2631
        %v2671 = vadd.f32 %v2599, %v2635
        %v2672 = vadd.f32 %v2600, %v2631
        %v2673 = vadd.f32 %v2601, %v2635
        %v2674 = vadd.f32 %v2602, %v2631
        %v2675 = vadd.f32 %v2603, %v2635
        %v2676 = vadd.f32 %v2604, %v2631
        %v2677 = vadd.f32 %v2605, %v2635
        %v2678 = vadd.f32 %v2606, %v2631
        %v2679 = vadd.f32 %v2607, %v2635
        %v2680 = vadd.f32 %v2608, %v2631
        %v2681 = vadd.f32 %v2609, %v2635
        %v2682 = vadd.f32 %v2610, %v2631
        %v2683 = vadd.f32 %v2611, %v2635
        %v2684 = vadd.f32 %v2612, %v2631
        %v2685 = vadd.f32 %v2613, %v2635
        %v2686 = vadd.f32 %v2614, %v2631
        %v2687 = vadd.f32 %v2615, %v2635
        %v2688 = vadd.f32 %v2616, %v2631
        %v2689 = vadd.f32 %v2617, %v2635
        %v2690 = vadd.f32 %v2618, %v2631
        %v2691 = vadd.f32 %v2619, %v2635
        %v2692 = vadd.f32 %v2620, %v2631
        %v2693 = vadd.f32 %v2621, %v2635
        %v2694 = vadd.f32 %v2622, %v2631
        %v2695 = vadd.f32 %v2623, %v2635
        %v2696 = vadd.f32 %v2624, %v2631
        %v2697 = vadd.f32 %v2625, %v2635
        %v2698 = vadd.f32 %v2626, %v2631
        %v2699 = vadd.f32 %v2627, %v2635
        %v2700 = vmul.f32 %v2636, %v1987
        %v2701 = vmul.f32 %v2637, %v1989
        %v2702 = vmul.f32 %v2638, %v1991
        %v2703 = vmul.f32 %v2639, %v1993
        %v2704 = vmul.f32 %v2640, %v1997
        %v2705 = vmul.f32 %v2641, %v1999
        %v2706 = vmul.f32 %v2642, %v2001
        %v2707 = vmul.f32 %v2643, %v2003
        %v2708 = vmul.f32 %v2644, %v2007
        %v2709 = vmul.f32 %v2645, %v2009
        %v2710 = vmul.f32 %v2646, %v2011
        %v2711 = vmul.f32 %v2647, %v2013
        %v2712 = vmul.f32 %v2648, %v2017
        %v2713 = vmul.f32 %v2649, %v2019
        %v2714 = vmul.f32 %v2650, %v2021
        %v2715 = vmul.f32 %v2651, %v2023
        %v2716 = vmul.f32 %v2652, %v2027
        %v2717 = vmul.f32 %v2653, %v2029
        %v2718 = vmul.f32 %v2654, %v2031
        %v2719 = vmul.f32 %v2655, %v2033
        %v2720 = vmul.f32 %v2656, %v2037
        %v2721 = vmul.f32 %v2657, %v2039
        %v2722 = vmul.f32 %v2658, %v2041
        %v2723 = vmul.f32 %v2659, %v2043
        %v2724 = vmul.f32 %v2660, %v2047
        %v2725 = vmul.f32 %v2661, %v2049
        %v2726 = vmul.f32 %v2662, %v2051
        %v2727 = vmul.f32 %v2663, %v2053
        %v2728 = vmul.f32 %v2664, %v2057
        %v2729 = vmul.f32 %v2665, %v2059
        %v2730 = vmul.f32 %v2666, %v2061
        %v2731 = vmul.f32 %v2667, %v2063
        %v2732 = vmul.f32 %v2668, %v2067
        %v2733 = vmul.f32 %v2669, %v2069
        %v2734 = vmul.f32 %v2670, %v2071
        %v2735 = vmul.f32 %v2671, %v2073
        %v2736 = vmul.f32 %v2672, %v2077
        %v2737 = vmul.f32 %v2673, %v2079
        %v2738 = vmul.f32 %v2674, %v2081
        %v2739 = vmul.f32 %v2675, %v2083
        %v2740 = vmul.f32 %v2676, %v2087
        %v2741 = vmul.f32 %v2677, %v2089
        %v2742 = vmul.f32 %v2678, %v2091
        %v2743 = vmul.f32 %v2679, %v2093
        %v2744 = vmul.f32 %v2680, %v2097
        %v2745 = vmul.f32 %v2681, %v2099
        %v2746 = vmul.f32 %v2682, %v2101
        %v2747 = vmul.f32 %v2683, %v2103
        %v2748 = vmul.f32 %v2684, %v2107
        %v2749 = vmul.f32 %v2685, %v2109
        %v2750 = vmul.f32 %v2686, %v2111
        %v2751 = vmul.f32 %v2687, %v2113
        %v2752 = vmul.f32 %v2688, %v2117
        %v2753 = vmul.f32 %v2689, %v2119
        %v2754 = vmul.f32 %v2690, %v2121
        %v2755 = vmul.f32 %v2691, %v2123
        %v2756 = vmul.f32 %v2692, %v2127
        %v2757 = vmul.f32 %v2693, %v2129
        %v2758 = vmul.f32 %v2694, %v2131
        %v2759 = vmul.f32 %v2695, %v2133
        %v2760 = vmul.f32 %v2696, %v2137
        %v2761 = vmul.f32 %v2697, %v2139
        %v2762 = vmul.f32 %v2698, %v2141
        %v2763 = vmul.f32 %v2699, %v2143
        %v2764 = vlaneseq
        %v2765 = vshrl.u32 %v2764, 7
        %v2766 = vsub.s32 0, %v2765
        %v2767 = vrot.slane %v2145, %v2766
        %v2768 = vlaneseq
        %v2769 = vshrl.u32 %v2768, 7
        %v2770 = vsub.s32 0, %v2769
        %v2771 = vrot.slane %v2146, %v2770
        %v2772 = vadd.f32 %v2700, %v2767
        %v2773 = vadd.f32 %v2701, %v2771
        %v2774 = vadd.f32 %v2702, %v2767
        %v2775 = vadd.f32 %v2703, %v2771
        %v2776 = vadd.f32 %v2704, %v2767
        %v2777 = vadd.f32 %v2705, %v2771
        %v2778 = vadd.f32 %v2706, %v2767
        %v2779 = vadd.f32 %v2707, %v2771
        %v2780 = vadd.f32 %v2708, %v2767
        %v2781 = vadd.f32 %v2709, %v2771
        %v2782 = vadd.f32 %v2710, %v2767
        %v2783 = vadd.f32 %v2711, %v2771
        %v2784 = vadd.f32 %v2712, %v2767
        %v2785 = vadd.f32 %v2713, %v2771
        %v2786 = vadd.f32 %v2714, %v2767
        %v2787 = vadd.f32 %v2715, %v2771
        %v2788 = vadd.f32 %v2716, %v2767
        %v2789 = vadd.f32 %v2717, %v2771
        %v2790 = vadd.f32 %v2718, %v2767
        %v2791 = vadd.f32 %v2719, %v2771
        %v2792 = vadd.f32 %v2720, %v2767
        %v2793 = vadd.f32 %v2721, %v2771
        %v2794 = vadd.f32 %v2722, %v2767
        %v2795 = vadd.f32 %v2723, %v2771
        %v2796 = vadd.f32 %v2724, %v2767
        %v2797 = vadd.f32 %v2725, %v2771
        %v2798 = vadd.f32 %v2726, %v2767
        %v2799 = vadd.f32 %v2727, %v2771
        %v2800 = vadd.f32 %v2728, %v2767
        %v2801 = vadd.f32 %v2729, %v2771
        %v2802 = vadd.f32 %v2730, %v2767
        %v2803 = vadd.f32 %v2731, %v2771
        %v2804 = vadd.f32 %v2732, %v2767
        %v2805 = vadd.f32 %v2733, %v2771
        %v2806 = vadd.f32 %v2734, %v2767
        %v2807 = vadd.f32 %v2735, %v2771
        %v2808 = vadd.f32 %v2736, %v2767
        %v2809 = vadd.f32 %v2737, %v2771
        %v2810 = vadd.f32 %v2738, %v2767
        %v2811 = vadd.f32 %v2739, %v2771
        %v2812 = vadd.f32 %v2740, %v2767
        %v2813 = vadd.f32 %v2741, %v2771
        %v2814 = vadd.f32 %v2742, %v2767
        %v2815 = vadd.f32 %v2743, %v2771
        %v2816 = vadd.f32 %v2744, %v2767
        %v2817 = vadd.f32 %v2745, %v2771
        %v2818 = vadd.f32 %v2746, %v2767
        %v2819 = vadd.f32 %v2747, %v2771
        %v2820 = vadd.f32 %v2748, %v2767
        %v2821 = vadd.f32 %v2749, %v2771
        %v2822 = vadd.f32 %v2750, %v2767
        %v2823 = vadd.f32 %v2751, %v2771
        %v2824 = vadd.f32 %v2752, %v2767
        %v2825 = vadd.f32 %v2753, %v2771
        %v2826 = vadd.f32 %v2754, %v2767
        %v2827 = vadd.f32 %v2755, %v2771
        %v2828 = vadd.f32 %v2756, %v2767
        %v2829 = vadd.f32 %v2757, %v2771
        %v2830 = vadd.f32 %v2758, %v2767
        %v2831 = vadd.f32 %v2759, %v2771
        %v2832 = vadd.f32 %v2760, %v2767
        %v2833 = vadd.f32 %v2761, %v2771
        %v2834 = vadd.f32 %v2762, %v2767
        %v2835 = vadd.f32 %v2763, %v2771
        %v2837 = vlaneseq
        %v2838 = vshrl.u32 %v2837, 7
        %v2839 = vsub.s32 3, %v2838
        %v2840 = vrot.slane %v2147, %v2839
        %v2841 = vlaneseq
        %v2842 = vshrl.u32 %v2841, 7
        %v2843 = vsub.s32 7, %v2842
        %v2844 = vrot.slane %v2147, %v2843
        %v2847 = vlaneseq
        %v2848 = vshrl.u32 %v2847, 7
        %v2849 = vsub.s32 3, %v2848
        %v2850 = vrot.slane %v2840, %v2849
        %v2851 = vlaneseq
        %v2852 = vshrl.u32 %v2851, 7
        %v2853 = vsub.s32 3, %v2852
        %v2854 = vrot.slane %v2844, %v2853
        %v2855 = vmul.f32 %v2850, %v1987
        %v2856 = vmul.f32 %v2854, %v1989
        %v2857 = vmul.f32 %v2850, %v1991
        %v2858 = vmul.f32 %v2854, %v1993
        %v2859 = vmul.f32 %v2850, %v1997
        %v2860 = vmul.f32 %v2854, %v1999
        %v2861 = vmul.f32 %v2850, %v2001
        %v2862 = vmul.f32 %v2854, %v2003
        %v2863 = vmul.f32 %v2850, %v2007
        %v2864 = vmul.f32 %v2854, %v2009
        %v2865 = vmul.f32 %v2850, %v2011
        %v2866 = vmul.f32 %v2854, %v2013
        %v2867 = vmul.f32 %v2850, %v2017
        %v2868 = vmul.f32 %v2854, %v2019
        %v2869 = vmul.f32 %v2850, %v2021
        %v2870 = vmul.f32 %v2854, %v2023
        %v2871 = vmul.f32 %v2850, %v2027
        %v2872 = vmul.f32 %v2854, %v2029
        %v2873 = vmul.f32 %v2850, %v2031
        %v2874 = vmul.f32 %v2854, %v2033
        %v2875 = vmul.f32 %v2850, %v2037
        %v2876 = vmul.f32 %v2854, %v2039
        %v2877 = vmul.f32 %v2850, %v2041
        %v2878 = vmul.f32 %v2854, %v2043
        %v2879 = vmul.f32 %v2850, %v2047
        %v2880 = vmul.f32 %v2854, %v2049
        %v2881 = vmul.f32 %v2850, %v2051
        %v2882 = vmul.f32 %v2854, %v2053
        %v2883 = vmul.f32 %v2850, %v2057
        %v2884 = vmul.f32 %v2854, %v2059
        %v2885 = vmul.f32 %v2850, %v2061
        %v2886 = vmul.f32 %v2854, %v2063
        %v2887 = vmul.f32 %v2850, %v2067
        %v2888 = vmul.f32 %v2854, %v2069
        %v2889 = vmul.f32 %v2850, %v2071
        %v2890 = vmul.f32 %v2854, %v2073
        %v2891 = vmul.f32 %v2850, %v2077
        %v2892 = vmul.f32 %v2854, %v2079
        %v2893 = vmul.f32 %v2850, %v2081
        %v2894 = vmul.f32 %v2854, %v2083
        %v2895 = vmul.f32 %v2850, %v2087
        %v2896 = vmul.f32 %v2854, %v2089
        %v2897 = vmul.f32 %v2850, %v2091
        %v2898 = vmul.f32 %v2854, %v2093
        %v2899 = vmul.f32 %v2850, %v2097
        %v2900 = vmul.f32 %v2854, %v2099
        %v2901 = vmul.f32 %v2850, %v2101
        %v2902 = vmul.f32 %v2854, %v2103
        %v2903 = vmul.f32 %v2850, %v2107
        %v2904 = vmul.f32 %v2854, %v2109
        %v2905 = vmul.f32 %v2850, %v2111
        %v2906 = vmul.f32 %v2854, %v2113
        %v2907 = vmul.f32 %v2850, %v2117
        %v2908 = vmul.f32 %v2854, %v2119
        %v2909 = vmul.f32 %v2850, %v2121
        %v2910 = vmul.f32 %v2854, %v2123
        %v2911 = vmul.f32 %v2850, %v2127
        %v2912 = vmul.f32 %v2854, %v2129
        %v2913 = vmul.f32 %v2850, %v2131
        %v2914 = vmul.f32 %v2854, %v2133
        %v2915 = vmul.f32 %v2850, %v2137
        %v2916 = vmul.f32 %v2854, %v2139
        %v2917 = vmul.f32 %v2850, %v2141
        %v2918 = vmul.f32 %v2854, %v2143
        %v2919 = vlaneseq
        %v2920 = vshrl.u32 %v2919, 7
        %v2921 = vsub.s32 2, %v2920
        %v2922 = vrot.slane %v2147, %v2921
        %v2923 = vlaneseq
        %v2924 = vshrl.u32 %v2923, 7
        %v2925 = vsub.s32 6, %v2924
        %v2926 = vrot.slane %v2147, %v2925
        %v2929 = vlaneseq
        %v2930 = vshrl.u32 %v2929, 7
        %v2931 = vsub.s32 2, %v2930
        %v2932 = vrot.slane %v2922, %v2931
        %v2933 = vlaneseq
        %v2934 = vshrl.u32 %v2933, 7
        %v2935 = vsub.s32 2, %v2934
        %v2936 = vrot.slane %v2926, %v2935
        %v2937 = vadd.f32 %v2855, %v2932
        %v2938 = vadd.f32 %v2856, %v2936
        %v2939 = vadd.f32 %v2857, %v2932
        %v2940 = vadd.f32 %v2858, %v2936
        %v2941 = vadd.f32 %v2859, %v2932
        %v2942 = vadd.f32 %v2860, %v2936
        %v2943 = vadd.f32 %v2861, %v2932
        %v2944 = vadd.f32 %v2862, %v2936
        %v2945 = vadd.f32 %v2863, %v2932
        %v2946 = vadd.f32 %v2864, %v2936
        %v2947 = vadd.f32 %v2865, %v2932
        %v2948 = vadd.f32 %v2866, %v2936
        %v2949 = vadd.f32 %v2867, %v2932
        %v2950 = vadd.f32 %v2868, %v2936
        %v2951 = vadd.f32 %v2869, %v2932
        %v2952 = vadd.f32 %v2870, %v2936
        %v2953 = vadd.f32 %v2871, %v2932
        %v2954 = vadd.f32 %v2872, %v2936
        %v2955 = vadd.f32 %v2873, %v2932
        %v2956 = vadd.f32 %v2874, %v2936
        %v2957 = vadd.f32 %v2875, %v2932
        %v2958 = vadd.f32 %v2876, %v2936
        %v2959 = vadd.f32 %v2877, %v2932
        %v2960 = vadd.f32 %v2878, %v2936
        %v2961 = vadd.f32 %v2879, %v2932
        %v2962 = vadd.f32 %v2880, %v2936
        %v2963 = vadd.f32 %v2881, %v2932
        %v2964 = vadd.f32 %v2882, %v2936
        %v2965 = vadd.f32 %v2883, %v2932
        %v2966 = vadd.f32 %v2884, %v2936
        %v2967 = vadd.f32 %v2885, %v2932
        %v2968 = vadd.f32 %v2886, %v2936
        %v2969 = vadd.f32 %v2887, %v2932
        %v2970 = vadd.f32 %v2888, %v2936
        %v2971 = vadd.f32 %v2889, %v2932
        %v2972 = vadd.f32 %v2890, %v2936
        %v2973 = vadd.f32 %v2891, %v2932
        %v2974 = vadd.f32 %v2892, %v2936
        %v2975 = vadd.f32 %v2893, %v2932
        %v2976 = vadd.f32 %v2894, %v2936
        %v2977 = vadd.f32 %v2895, %v2932
        %v2978 = vadd.f32 %v2896, %v2936
        %v2979 = vadd.f32 %v2897, %v2932
        %v2980 = vadd.f32 %v2898, %v2936
        %v2981 = vadd.f32 %v2899, %v2932
        %v2982 = vadd.f32 %v2900, %v2936
        %v2983 = vadd.f32 %v2901, %v2932
        %v2984 = vadd.f32 %v2902, %v2936
        %v2985 = vadd.f32 %v2903, %v2932
        %v2986 = vadd.f32 %v2904, %v2936
        %v2987 = vadd.f32 %v2905, %v2932
        %v2988 = vadd.f32 %v2906, %v2936
        %v2989 = vadd.f32 %v2907, %v2932
        %v2990 = vadd.f32 %v2908, %v2936
        %v2991 = vadd.f32 %v2909, %v2932
        %v2992 = vadd.f32 %v2910, %v2936
        %v2993 = vadd.f32 %v2911, %v2932
        %v2994 = vadd.f32 %v2912, %v2936
        %v2995 = vadd.f32 %v2913, %v2932
        %v2996 = vadd.f32 %v2914, %v2936
        %v2997 = vadd.f32 %v2915, %v2932
        %v2998 = vadd.f32 %v2916, %v2936
        %v2999 = vadd.f32 %v2917, %v2932
        %v3000 = vadd.f32 %v2918, %v2936
        %v3001 = vmul.f32 %v2937, %v1987
        %v3002 = vmul.f32 %v2938, %v1989
        %v3003 = vmul.f32 %v2939, %v1991
        %v3004 = vmul.f32 %v2940, %v1993
        %v3005 = vmul.f32 %v2941, %v1997
        %v3006 = vmul.f32 %v2942, %v1999
        %v3007 = vmul.f32 %v2943, %v2001
        %v3008 = vmul.f32 %v2944, %v2003
        %v3009 = vmul.f32 %v2945, %v2007
        %v3010 = vmul.f32 %v2946, %v2009
        %v3011 = vmul.f32 %v2947, %v2011
        %v3012 = vmul.f32 %v2948, %v2013
        %v3013 = vmul.f32 %v2949, %v2017
        %v3014 = vmul.f32 %v2950, %v2019
        %v3015 = vmul.f32 %v2951, %v2021
        %v3016 = vmul.f32 %v2952, %v2023
        %v3017 = vmul.f32 %v2953, %v2027
        %v3018 = vmul.f32 %v2954, %v2029
        %v3019 = vmul.f32 %v2955, %v2031
        %v3020 = vmul.f32 %v2956, %v2033
        %v3021 = vmul.f32 %v2957, %v2037
        %v3022 = vmul.f32 %v2958, %v2039
        %v3023 = vmul.f32 %v2959, %v2041
        %v3024 = vmul.f32 %v2960, %v2043
        %v3025 = vmul.f32 %v2961, %v2047
        %v3026 = vmul.f32 %v2962, %v2049
        %v3027 = vmul.f32 %v2963, %v2051
        %v3028 = vmul.f32 %v2964, %v2053
        %v3029 = vmul.f32 %v2965, %v2057
        %v3030 = vmul.f32 %v2966, %v2059
        %v3031 = vmul.f32 %v2967, %v2061
        %v3032 = vmul.f32 %v2968, %v2063
        %v3033 = vmul.f32 %v2969, %v2067
        %v3034 = vmul.f32 %v2970, %v2069
        %v3035 = vmul.f32 %v2971, %v2071
        %v3036 = vmul.f32 %v2972, %v2073
        %v3037 = vmul.f32 %v2973, %v2077
        %v3038 = vmul.f32 %v2974, %v2079
        %v3039 = vmul.f32 %v2975, %v2081
        %v3040 = vmul.f32 %v2976, %v2083
        %v3041 = vmul.f32 %v2977, %v2087
        %v3042 = vmul.f32 %v2978, %v2089
        %v3043 = vmul.f32 %v2979, %v2091
        %v3044 = vmul.f32 %v2980, %v2093
        %v3045 = vmul.f32 %v2981, %v2097
        %v3046 = vmul.f32 %v2982, %v2099
        %v3047 = vmul.f32 %v2983, %v2101
        %v3048 = vmul.f32 %v2984, %v2103
        %v3049 = vmul.f32 %v2985, %v2107
        %v3050 = vmul.f32 %v2986, %v2109
        %v3051 = vmul.f32 %v2987, %v2111
        %v3052 = vmul.f32 %v2988, %v2113
        %v3053 = vmul.f32 %v2989, %v2117
        %v3054 = vmul.f32 %v2990, %v2119
        %v3055 = vmul.f32 %v2991, %v2121
        %v3056 = vmul.f32 %v2992, %v2123
        %v3057 = vmul.f32 %v2993, %v2127
        %v3058 = vmul.f32 %v2994, %v2129
        %v3059 = vmul.f32 %v2995, %v2131
        %v3060 = vmul.f32 %v2996, %v2133
        %v3061 = vmul.f32 %v2997, %v2137
        %v3062 = vmul.f32 %v2998, %v2139
        %v3063 = vmul.f32 %v2999, %v2141
        %v3064 = vmul.f32 %v3000, %v2143
        %v3065 = vlaneseq
        %v3066 = vshrl.u32 %v3065, 7
        %v3067 = vsub.s32 1, %v3066
        %v3068 = vrot.slane %v2147, %v3067
        %v3069 = vlaneseq
        %v3070 = vshrl.u32 %v3069, 7
        %v3071 = vsub.s32 5, %v3070
        %v3072 = vrot.slane %v2147, %v3071
        %v3075 = vlaneseq
        %v3076 = vshrl.u32 %v3075, 7
        %v3077 = vsub.s32 1, %v3076
        %v3078 = vrot.slane %v3068, %v3077
        %v3079 = vlaneseq
        %v3080 = vshrl.u32 %v3079, 7
        %v3081 = vsub.s32 1, %v3080
        %v3082 = vrot.slane %v3072, %v3081
        %v3083 = vadd.f32 %v3001, %v3078
        %v3084 = vadd.f32 %v3002, %v3082
        %v3085 = vadd.f32 %v3003, %v3078
        %v3086 = vadd.f32 %v3004, %v3082
        %v3087 = vadd.f32 %v3005, %v3078
        %v3088 = vadd.f32 %v3006, %v3082
        %v3089 = vadd.f32 %v3007, %v3078
        %v3090 = vadd.f32 %v3008, %v3082
        %v3091 = vadd.f32 %v3009, %v3078
        %v3092 = vadd.f32 %v3010, %v3082
        %v3093 = vadd.f32 %v3011, %v3078
        %v3094 = vadd.f32 %v3012, %v3082
        %v3095 = vadd.f32 %v3013, %v3078
        %v3096 = vadd.f32 %v3014, %v3082
        %v3097 = vadd.f32 %v3015, %v3078
        %v3098 = vadd.f32 %v3016, %v3082
        %v3099 = vadd.f32 %v3017, %v3078
        %v3100 = vadd.f32 %v3018, %v3082
        %v3101 = vadd.f32 %v3019, %v3078
        %v3102 = vadd.f32 %v3020, %v3082
        %v3103 = vadd.f32 %v3021, %v3078
        %v3104 = vadd.f32 %v3022, %v3082
        %v3105 = vadd.f32 %v3023, %v3078
        %v3106 = vadd.f32 %v3024, %v3082
        %v3107 = vadd.f32 %v3025, %v3078
        %v3108 = vadd.f32 %v3026, %v3082
        %v3109 = vadd.f32 %v3027, %v3078
        %v3110 = vadd.f32 %v3028, %v3082
        %v3111 = vadd.f32 %v3029, %v3078
        %v3112 = vadd.f32 %v3030, %v3082
        %v3113 = vadd.f32 %v3031, %v3078
        %v3114 = vadd.f32 %v3032, %v3082
        %v3115 = vadd.f32 %v3033, %v3078
        %v3116 = vadd.f32 %v3034, %v3082
        %v3117 = vadd.f32 %v3035, %v3078
        %v3118 = vadd.f32 %v3036, %v3082
        %v3119 = vadd.f32 %v3037, %v3078
        %v3120 = vadd.f32 %v3038, %v3082
        %v3121 = vadd.f32 %v3039, %v3078
        %v3122 = vadd.f32 %v3040, %v3082
        %v3123 = vadd.f32 %v3041, %v3078
        %v3124 = vadd.f32 %v3042, %v3082
        %v3125 = vadd.f32 %v3043, %v3078
        %v3126 = vadd.f32 %v3044, %v3082
        %v3127 = vadd.f32 %v3045, %v3078
        %v3128 = vadd.f32 %v3046, %v3082
        %v3129 = vadd.f32 %v3047, %v3078
        %v3130 = vadd.f32 %v3048, %v3082
        %v3131 = vadd.f32 %v3049, %v3078
        %v3132 = vadd.f32 %v3050, %v3082
        %v3133 = vadd.f32 %v3051, %v3078
        %v3134 = vadd.f32 %v3052, %v3082
        %v3135 = vadd.f32 %v3053, %v3078
        %v3136 = vadd.f32 %v3054, %v3082
        %v3137 = vadd.f32 %v3055, %v3078
        %v3138 = vadd.f32 %v3056, %v3082
        %v3139 = vadd.f32 %v3057, %v3078
        %v3140 = vadd.f32 %v3058, %v3082
        %v3141 = vadd.f32 %v3059, %v3078
        %v3142 = vadd.f32 %v3060, %v3082
        %v3143 = vadd.f32 %v3061, %v3078
        %v3144 = vadd.f32 %v3062, %v3082
        %v3145 = vadd.f32 %v3063, %v3078
        %v3146 = vadd.f32 %v3064, %v3082
        %v3147 = vmul.f32 %v3083, %v1987
        %v3148 = vmul.f32 %v3084, %v1989
        %v3149 = vmul.f32 %v3085, %v1991
        %v3150 = vmul.f32 %v3086, %v1993
        %v3151 = vmul.f32 %v3087, %v1997
        %v3152 = vmul.f32 %v3088, %v1999
        %v3153 = vmul.f32 %v3089, %v2001
        %v3154 = vmul.f32 %v3090, %v2003
        %v3155 = vmul.f32 %v3091, %v2007
        %v3156 = vmul.f32 %v3092, %v2009
        %v3157 = vmul.f32 %v3093, %v2011
        %v3158 = vmul.f32 %v3094, %v2013
        %v3159 = vmul.f32 %v3095, %v2017
        %v3160 = vmul.f32 %v3096, %v2019
        %v3161 = vmul.f32 %v3097, %v2021
        %v3162 = vmul.f32 %v3098, %v2023
        %v3163 = vmul.f32 %v3099, %v2027
        %v3164 = vmul.f32 %v3100, %v2029
        %v3165 = vmul.f32 %v3101, %v2031
        %v3166 = vmul.f32 %v3102, %v2033
        %v3167 = vmul.f32 %v3103, %v2037
        %v3168 = vmul.f32 %v3104, %v2039
        %v3169 = vmul.f32 %v3105, %v2041
        %v3170 = vmul.f32 %v3106, %v2043
        %v3171 = vmul.f32 %v3107, %v2047
        %v3172 = vmul.f32 %v3108, %v2049
        %v3173 = vmul.f32 %v3109, %v2051
        %v3174 = vmul.f32 %v3110, %v2053
        %v3175 = vmul.f32 %v3111, %v2057
        %v3176 = vmul.f32 %v3112, %v2059
        %v3177 = vmul.f32 %v3113, %v2061
        %v3178 = vmul.f32 %v3114, %v2063
        %v3179 = vmul.f32 %v3115, %v2067
        %v3180 = vmul.f32 %v3116, %v2069
        %v3181 = vmul.f32 %v3117, %v2071
        %v3182 = vmul.f32 %v3118, %v2073
        %v3183 = vmul.f32 %v3119, %v2077
        %v3184 = vmul.f32 %v3120, %v2079
        %v3185 = vmul.f32 %v3121, %v2081
        %v3186 = vmul.f32 %v3122, %v2083
        %v3187 = vmul.f32 %v3123, %v2087
        %v3188 = vmul.f32 %v3124, %v2089
        %v3189 = vmul.f32 %v3125, %v2091
        %v3190 = vmul.f32 %v3126, %v2093
        %v3191 = vmul.f32 %v3127, %v2097
        %v3192 = vmul.f32 %v3128, %v2099
        %v3193 = vmul.f32 %v3129, %v2101
        %v3194 = vmul.f32 %v3130, %v2103
        %v3195 = vmul.f32 %v3131, %v2107
        %v3196 = vmul.f32 %v3132, %v2109
        %v3197 = vmul.f32 %v3133, %v2111
        %v3198 = vmul.f32 %v3134, %v2113
        %v3199 = vmul.f32 %v3135, %v2117
        %v3200 = vmul.f32 %v3136, %v2119
        %v3201 = vmul.f32 %v3137, %v2121
        %v3202 = vmul.f32 %v3138, %v2123
        %v3203 = vmul.f32 %v3139, %v2127
        %v3204 = vmul.f32 %v3140, %v2129
        %v3205 = vmul.f32 %v3141, %v2131
        %v3206 = vmul.f32 %v3142, %v2133
        %v3207 = vmul.f32 %v3143, %v2137
        %v3208 = vmul.f32 %v3144, %v2139
        %v3209 = vmul.f32 %v3145, %v2141
        %v3210 = vmul.f32 %v3146, %v2143
        %v3211 = vlaneseq
        %v3212 = vshrl.u32 %v3211, 7
        %v3213 = vsub.s32 0, %v3212
        %v3214 = vrot.slane %v2147, %v3213
        %v3215 = vlaneseq
        %v3216 = vshrl.u32 %v3215, 7
        %v3217 = vsub.s32 4, %v3216
        %v3218 = vrot.slane %v2147, %v3217
        %v3221 = vlaneseq
        %v3222 = vshrl.u32 %v3221, 7
        %v3223 = vsub.s32 0, %v3222
        %v3224 = vrot.slane %v3214, %v3223
        %v3225 = vlaneseq
        %v3226 = vshrl.u32 %v3225, 7
        %v3227 = vsub.s32 0, %v3226
        %v3228 = vrot.slane %v3218, %v3227
        %v3229 = vadd.f32 %v3147, %v3224
        %v3230 = vadd.f32 %v3148, %v3228
        %v3231 = vadd.f32 %v3149, %v3224
        %v3232 = vadd.f32 %v3150, %v3228
        %v3233 = vadd.f32 %v3151, %v3224
        %v3234 = vadd.f32 %v3152, %v3228
        %v3235 = vadd.f32 %v3153, %v3224
        %v3236 = vadd.f32 %v3154, %v3228
        %v3237 = vadd.f32 %v3155, %v3224
        %v3238 = vadd.f32 %v3156, %v3228
        %v3239 = vadd.f32 %v3157, %v3224
        %v3240 = vadd.f32 %v3158, %v3228
        %v3241 = vadd.f32 %v3159, %v3224
        %v3242 = vadd.f32 %v3160, %v3228
        %v3243 = vadd.f32 %v3161, %v3224
        %v3244 = vadd.f32 %v3162, %v3228
        %v3245 = vadd.f32 %v3163, %v3224
        %v3246 = vadd.f32 %v3164, %v3228
        %v3247 = vadd.f32 %v3165, %v3224
        %v3248 = vadd.f32 %v3166, %v3228
        %v3249 = vadd.f32 %v3167, %v3224
        %v3250 = vadd.f32 %v3168, %v3228
        %v3251 = vadd.f32 %v3169, %v3224
        %v3252 = vadd.f32 %v3170, %v3228
        %v3253 = vadd.f32 %v3171, %v3224
        %v3254 = vadd.f32 %v3172, %v3228
        %v3255 = vadd.f32 %v3173, %v3224
        %v3256 = vadd.f32 %v3174, %v3228
        %v3257 = vadd.f32 %v3175, %v3224
        %v3258 = vadd.f32 %v3176, %v3228
        %v3259 = vadd.f32 %v3177, %v3224
        %v3260 = vadd.f32 %v3178, %v3228
        %v3261 = vadd.f32 %v3179, %v3224
        %v3262 = vadd.f32 %v3180, %v3228
        %v3263 = vadd.f32 %v3181, %v3224
        %v3264 = vadd.f32 %v3182, %v3228
        %v3265 = vadd.f32 %v3183, %v3224
        %v3266 = vadd.f32 %v3184, %v3228
        %v3267 = vadd.f32 %v3185, %v3224
        %v3268 = vadd.f32 %v3186, %v3228
        %v3269 = vadd.f32 %v3187, %v3224
        %v3270 = vadd.f32 %v3188, %v3228
        %v3271 = vadd.f32 %v3189, %v3224
        %v3272 = vadd.f32 %v3190, %v3228
        %v3273 = vadd.f32 %v3191, %v3224
        %v3274 = vadd.f32 %v3192, %v3228
        %v3275 = vadd.f32 %v3193, %v3224
        %v3276 = vadd.f32 %v3194, %v3228
        %v3277 = vadd.f32 %v3195, %v3224
        %v3278 = vadd.f32 %v3196, %v3228
        %v3279 = vadd.f32 %v3197, %v3224
        %v3280 = vadd.f32 %v3198, %v3228
        %v3281 = vadd.f32 %v3199, %v3224
        %v3282 = vadd.f32 %v3200, %v3228
        %v3283 = vadd.f32 %v3201, %v3224
        %v3284 = vadd.f32 %v3202, %v3228
        %v3285 = vadd.f32 %v3203, %v3224
        %v3286 = vadd.f32 %v3204, %v3228
        %v3287 = vadd.f32 %v3205, %v3224
        %v3288 = vadd.f32 %v3206, %v3228
        %v3289 = vadd.f32 %v3207, %v3224
        %v3290 = vadd.f32 %v3208, %v3228
        %v3291 = vadd.f32 %v3209, %v3224
        %v3292 = vadd.f32 %v3210, %v3228
        %v3293 = vmul.f32 %v3229, %v1987
        %v3294 = vmul.f32 %v3230, %v1989
        %v3295 = vmul.f32 %v3231, %v1991
        %v3296 = vmul.f32 %v3232, %v1993
        %v3297 = vmul.f32 %v3233, %v1997
        %v3298 = vmul.f32 %v3234, %v1999
        %v3299 = vmul.f32 %v3235, %v2001
        %v3300 = vmul.f32 %v3236, %v2003
        %v3301 = vmul.f32 %v3237, %v2007
        %v3302 = vmul.f32 %v3238, %v2009
        %v3303 = vmul.f32 %v3239, %v2011
        %v3304 = vmul.f32 %v3240, %v2013
        %v3305 = vmul.f32 %v3241, %v2017
        %v3306 = vmul.f32 %v3242, %v2019
        %v3307 = vmul.f32 %v3243, %v2021
        %v3308 = vmul.f32 %v3244, %v2023
        %v3309 = vmul.f32 %v3245, %v2027
        %v3310 = vmul.f32 %v3246, %v2029
        %v3311 = vmul.f32 %v3247, %v2031
        %v3312 = vmul.f32 %v3248, %v2033
        %v3313 = vmul.f32 %v3249, %v2037
        %v3314 = vmul.f32 %v3250, %v2039
        %v3315 = vmul.f32 %v3251, %v2041
        %v3316 = vmul.f32 %v3252, %v2043
        %v3317 = vmul.f32 %v3253, %v2047
        %v3318 = vmul.f32 %v3254, %v2049
        %v3319 = vmul.f32 %v3255, %v2051
        %v3320 = vmul.f32 %v3256, %v2053
        %v3321 = vmul.f32 %v3257, %v2057
        %v3322 = vmul.f32 %v3258, %v2059
        %v3323 = vmul.f32 %v3259, %v2061
        %v3324 = vmul.f32 %v3260, %v2063
        %v3325 = vmul.f32 %v3261, %v2067
        %v3326 = vmul.f32 %v3262, %v2069
        %v3327 = vmul.f32 %v3263, %v2071
        %v3328 = vmul.f32 %v3264, %v2073
        %v3329 = vmul.f32 %v3265, %v2077
        %v3330 = vmul.f32 %v3266, %v2079
        %v3331 = vmul.f32 %v3267, %v2081
        %v3332 = vmul.f32 %v3268, %v2083
        %v3333 = vmul.f32 %v3269, %v2087
        %v3334 = vmul.f32 %v3270, %v2089
        %v3335 = vmul.f32 %v3271, %v2091
        %v3336 = vmul.f32 %v3272, %v2093
        %v3337 = vmul.f32 %v3273, %v2097
        %v3338 = vmul.f32 %v3274, %v2099
        %v3339 = vmul.f32 %v3275, %v2101
        %v3340 = vmul.f32 %v3276, %v2103
        %v3341 = vmul.f32 %v3277, %v2107
        %v3342 = vmul.f32 %v3278, %v2109
        %v3343 = vmul.f32 %v3279, %v2111
        %v3344 = vmul.f32 %v3280, %v2113
        %v3345 = vmul.f32 %v3281, %v2117
        %v3346 = vmul.f32 %v3282, %v2119
        %v3347 = vmul.f32 %v3283, %v2121
        %v3348 = vmul.f32 %v3284, %v2123
        %v3349 = vmul.f32 %v3285, %v2127
        %v3350 = vmul.f32 %v3286, %v2129
        %v3351 = vmul.f32 %v3287, %v2131
        %v3352 = vmul.f32 %v3288, %v2133
        %v3353 = vmul.f32 %v3289, %v2137
        %v3354 = vmul.f32 %v3290, %v2139
        %v3355 = vmul.f32 %v3291, %v2141
        %v3356 = vmul.f32 %v3292, %v2143
        %v3357 = vand.u32 2147483647, %v3293
        %v3358 = vand.u32 2147483647, %v3294
        %v3359 = vand.u32 2147483647, %v3295
        %v3360 = vand.u32 2147483647, %v3296
        %v3361 = vand.u32 2147483647, %v3297
        %v3362 = vand.u32 2147483647, %v3298
        %v3363 = vand.u32 2147483647, %v3299
        %v3364 = vand.u32 2147483647, %v3300
        %v3365 = vand.u32 2147483647, %v3301
        %v3366 = vand.u32 2147483647, %v3302
        %v3367 = vand.u32 2147483647, %v3303
        %v3368 = vand.u32 2147483647, %v3304
        %v3369 = vand.u32 2147483647, %v3305
        %v3370 = vand.u32 2147483647, %v3306
        %v3371 = vand.u32 2147483647, %v3307
        %v3372 = vand.u32 2147483647, %v3308
        %v3373 = vand.u32 2147483647, %v3309
        %v3374 = vand.u32 2147483647, %v3310
        %v3375 = vand.u32 2147483647, %v3311
        %v3376 = vand.u32 2147483647, %v3312
        %v3377 = vand.u32 2147483647, %v3313
        %v3378 = vand.u32 2147483647, %v3314
        %v3379 = vand.u32 2147483647, %v3315
        %v3380 = vand.u32 2147483647, %v3316
        %v3381 = vand.u32 2147483647, %v3317
        %v3382 = vand.u32 2147483647, %v3318
        %v3383 = vand.u32 2147483647, %v3319
        %v3384 = vand.u32 2147483647, %v3320
        %v3385 = vand.u32 2147483647, %v3321
        %v3386 = vand.u32 2147483647, %v3322
        %v3387 = vand.u32 2147483647, %v3323
        %v3388 = vand.u32 2147483647, %v3324
        %v3389 = vand.u32 2147483647, %v3325
        %v3390 = vand.u32 2147483647, %v3326
        %v3391 = vand.u32 2147483647, %v3327
        %v3392 = vand.u32 2147483647, %v3328
        %v3393 = vand.u32 2147483647, %v3329
        %v3394 = vand.u32 2147483647, %v3330
        %v3395 = vand.u32 2147483647, %v3331
        %v3396 = vand.u32 2147483647, %v3332
        %v3397 = vand.u32 2147483647, %v3333
        %v3398 = vand.u32 2147483647, %v3334
        %v3399 = vand.u32 2147483647, %v3335
        %v3400 = vand.u32 2147483647, %v3336
        %v3401 = vand.u32 2147483647, %v3337
        %v3402 = vand.u32 2147483647, %v3338
        %v3403 = vand.u32 2147483647, %v3339
        %v3404 = vand.u32 2147483647, %v3340
        %v3405 = vand.u32 2147483647, %v3341
        %v3406 = vand.u32 2147483647, %v3342
        %v3407 = vand.u32 2147483647, %v3343
        %v3408 = vand.u32 2147483647, %v3344
        %v3409 = vand.u32 2147483647, %v3345
        %v3410 = vand.u32 2147483647, %v3346
        %v3411 = vand.u32 2147483647, %v3347
        %v3412 = vand.u32 2147483647, %v3348
        %v3413 = vand.u32 2147483647, %v3349
        %v3414 = vand.u32 2147483647, %v3350
        %v3415 = vand.u32 2147483647, %v3351
        %v3416 = vand.u32 2147483647, %v3352
        %v3417 = vand.u32 2147483647, %v3353
        %v3418 = vand.u32 2147483647, %v3354
        %v3419 = vand.u32 2147483647, %v3355
        %v3420 = vand.u32 2147483647, %v3356
        %v3421 = vadd.f32 %v3357, 1.0
        %v3422 = vadd.f32 %v3358, 1.0
        %v3423 = vadd.f32 %v3359, 1.0
        %v3424 = vadd.f32 %v3360, 1.0
        %v3425 = vadd.f32 %v3361, 1.0
        %v3426 = vadd.f32 %v3362, 1.0
        %v3427 = vadd.f32 %v3363, 1.0
        %v3428 = vadd.f32 %v3364, 1.0
        %v3429 = vadd.f32 %v3365, 1.0
        %v3430 = vadd.f32 %v3366, 1.0
        %v3431 = vadd.f32 %v3367, 1.0
        %v3432 = vadd.f32 %v3368, 1.0
        %v3433 = vadd.f32 %v3369, 1.0
        %v3434 = vadd.f32 %v3370, 1.0
        %v3435 = vadd.f32 %v3371, 1.0
        %v3436 = vadd.f32 %v3372, 1.0
        %v3437 = vadd.f32 %v3373, 1.0
        %v3438 = vadd.f32 %v3374, 1.0
        %v3439 = vadd.f32 %v3375, 1.0
        %v3440 = vadd.f32 %v3376, 1.0
        %v3441 = vadd.f32 %v3377, 1.0
        %v3442 = vadd.f32 %v3378, 1.0
        %v3443 = vadd.f32 %v3379, 1.0
        %v3444 = vadd.f32 %v3380, 1.0
        %v3445 = vadd.f32 %v3381, 1.0
        %v3446 = vadd.f32 %v3382, 1.0
        %v3447 = vadd.f32 %v3383, 1.0
        %v3448 = vadd.f32 %v3384, 1.0
        %v3449 = vadd.f32 %v3385, 1.0
        %v3450 = vadd.f32 %v3386, 1.0
        %v3451 = vadd.f32 %v3387, 1.0
        %v3452 = vadd.f32 %v3388, 1.0
        %v3453 = vadd.f32 %v3389, 1.0
        %v3454 = vadd.f32 %v3390, 1.0
        %v3455 = vadd.f32 %v3391, 1.0
        %v3456 = vadd.f32 %v3392, 1.0
        %v3457 = vadd.f32 %v3393, 1.0
        %v3458 = vadd.f32 %v3394, 1.0
        %v3459 = vadd.f32 %v3395, 1.0
        %v3460 = vadd.f32 %v3396, 1.0
        %v3461 = vadd.f32 %v3397, 1.0
        %v3462 = vadd.f32 %v3398, 1.0
        %v3463 = vadd.f32 %v3399, 1.0
        %v3464 = vadd.f32 %v3400, 1.0
        %v3465 = vadd.f32 %v3401, 1.0
        %v3466 = vadd.f32 %v3402, 1.0
        %v3467 = vadd.f32 %v3403, 1.0
        %v3468 = vadd.f32 %v3404, 1.0
        %v3469 = vadd.f32 %v3405, 1.0
        %v3470 = vadd.f32 %v3406, 1.0
        %v3471 = vadd.f32 %v3407, 1.0
        %v3472 = vadd.f32 %v3408, 1.0
        %v3473 = vadd.f32 %v3409, 1.0
        %v3474 = vadd.f32 %v3410, 1.0
        %v3475 = vadd.f32 %v3411, 1.0
        %v3476 = vadd.f32 %v3412, 1.0
        %v3477 = vadd.f32 %v3413, 1.0
        %v3478 = vadd.f32 %v3414, 1.0
        %v3479 = vadd.f32 %v3415, 1.0
        %v3480 = vadd.f32 %v3416, 1.0
        %v3481 = vadd.f32 %v3417, 1.0
        %v3482 = vadd.f32 %v3418, 1.0
        %v3483 = vadd.f32 %v3419, 1.0
        %v3484 = vadd.f32 %v3420, 1.0
        %v3485 = vrcp.pop %v3421
        %v3486 = vrcp.pop %v3422
        %v3487 = vrcp.pop %v3423
        %v3488 = vrcp.pop %v3424
        %v3489 = vrcp.pop %v3425
        %v3490 = vrcp.pop %v3426
        %v3491 = vrcp.pop %v3427
        %v3492 = vrcp.pop %v3428
        %v3493 = vrcp.pop %v3429
        %v3494 = vrcp.pop %v3430
        %v3495 = vrcp.pop %v3431
        %v3496 = vrcp.pop %v3432
        %v3497 = vrcp.pop %v3433
        %v3498 = vrcp.pop %v3434
        %v3499 = vrcp.pop %v3435
        %v3500 = vrcp.pop %v3436
        %v3501 = vrcp.pop %v3437
        %v3502 = vrcp.pop %v3438
        %v3503 = vrcp.pop %v3439
        %v3504 = vrcp.pop %v3440
        %v3505 = vrcp.pop %v3441
        %v3506 = vrcp.pop %v3442
        %v3507 = vrcp.pop %v3443
        %v3508 = vrcp.pop %v3444
        %v3509 = vrcp.pop %v3445
        %v3510 = vrcp.pop %v3446
        %v3511 = vrcp.pop %v3447
        %v3512 = vrcp.pop %v3448
        %v3513 = vrcp.pop %v3449
        %v3514 = vrcp.pop %v3450
        %v3515 = vrcp.pop %v3451
        %v3516 = vrcp.pop %v3452
        %v3517 = vrcp.pop %v3453
        %v3518 = vrcp.pop %v3454
        %v3519 = vrcp.pop %v3455
        %v3520 = vrcp.pop %v3456
        %v3521 = vrcp.pop %v3457
        %v3522 = vrcp.pop %v3458
        %v3523 = vrcp.pop %v3459
        %v3524 = vrcp.pop %v3460
        %v3525 = vrcp.pop %v3461
        %v3526 = vrcp.pop %v3462
        %v3527 = vrcp.pop %v3463
        %v3528 = vrcp.pop %v3464
        %v3529 = vrcp.pop %v3465
        %v3530 = vrcp.pop %v3466
        %v3531 = vrcp.pop %v3467
        %v3532 = vrcp.pop %v3468
        %v3533 = vrcp.pop %v3469
        %v3534 = vrcp.pop %v3470
        %v3535 = vrcp.pop %v3471
        %v3536 = vrcp.pop %v3472
        %v3537 = vrcp.pop %v3473
        %v3538 = vrcp.pop %v3474
        %v3539 = vrcp.pop %v3475
        %v3540 = vrcp.pop %v3476
        %v3541 = vrcp.pop %v3477
        %v3542 = vrcp.pop %v3478
        %v3543 = vrcp.pop %v3479
        %v3544 = vrcp.pop %v3480
        %v3545 = vrcp.pop %v3481
        %v3546 = vrcp.pop %v3482
        %v3547 = vrcp.pop %v3483
        %v3548 = vrcp.pop %v3484
        %v3549 = vmul.f32 %v2772, %v3485
        %v3550 = vmul.f32 %v2773, %v3486
        %v3551 = vmul.f32 %v2774, %v3487
        %v3552 = vmul.f32 %v2775, %v3488
        %v3553 = vmul.f32 %v2776, %v3489
        %v3554 = vmul.f32 %v2777, %v3490
        %v3555 = vmul.f32 %v2778, %v3491
        %v3556 = vmul.f32 %v2779, %v3492
        %v3557 = vmul.f32 %v2780, %v3493
        %v3558 = vmul.f32 %v2781, %v3494
        %v3559 = vmul.f32 %v2782, %v3495
        %v3560 = vmul.f32 %v2783, %v3496
        %v3561 = vmul.f32 %v2784, %v3497
        %v3562 = vmul.f32 %v2785, %v3498
        %v3563 = vmul.f32 %v2786, %v3499
        %v3564 = vmul.f32 %v2787, %v3500
        %v3565 = vmul.f32 %v2788, %v3501
        %v3566 = vmul.f32 %v2789, %v3502
        %v3567 = vmul.f32 %v2790, %v3503
        %v3568 = vmul.f32 %v2791, %v3504
        %v3569 = vmul.f32 %v2792, %v3505
        %v3570 = vmul.f32 %v2793, %v3506
        %v3571 = vmul.f32 %v2794, %v3507
        %v3572 = vmul.f32 %v2795, %v3508
        %v3573 = vmul.f32 %v2796, %v3509
        %v3574 = vmul.f32 %v2797, %v3510
        %v3575 = vmul.f32 %v2798, %v3511
        %v3576 = vmul.f32 %v2799, %v3512
        %v3577 = vmul.f32 %v2800, %v3513
        %v3578 = vmul.f32 %v2801, %v3514
        %v3579 = vmul.f32 %v2802, %v3515
        %v3580 = vmul.f32 %v2803, %v3516
        %v3581 = vmul.f32 %v2804, %v3517
        %v3582 = vmul.f32 %v2805, %v3518
        %v3583 = vmul.f32 %v2806, %v3519
        %v3584 = vmul.f32 %v2807, %v3520
        %v3585 = vmul.f32 %v2808, %v3521
        %v3586 = vmul.f32 %v2809, %v3522
        %v3587 = vmul.f32 %v2810, %v3523
        %v3588 = vmul.f32 %v2811, %v3524
        %v3589 = vmul.f32 %v2812, %v3525
        %v3590 = vmul.f32 %v2813, %v3526
        %v3591 = vmul.f32 %v2814, %v3527
        %v3592 = vmul.f32 %v2815, %v3528
        %v3593 = vmul.f32 %v2816, %v3529
        %v3594 = vmul.f32 %v2817, %v3530
        %v3595 = vmul.f32 %v2818, %v3531
        %v3596 = vmul.f32 %v2819, %v3532
        %v3597 = vmul.f32 %v2820, %v3533
        %v3598 = vmul.f32 %v2821, %v3534
        %v3599 = vmul.f32 %v2822, %v3535
        %v3600 = vmul.f32 %v2823, %v3536
        %v3601 = vmul.f32 %v2824, %v3537
        %v3602 = vmul.f32 %v2825, %v3538
        %v3603 = vmul.f32 %v2826, %v3539
        %v3604 = vmul.f32 %v2827, %v3540
        %v3605 = vmul.f32 %v2828, %v3541
        %v3606 = vmul.f32 %v2829, %v3542
        %v3607 = vmul.f32 %v2830, %v3543
        %v3608 = vmul.f32 %v2831, %v3544
        %v3609 = vmul.f32 %v2832, %v3545
        %v3610 = vmul.f32 %v2833, %v3546
        %v3611 = vmul.f32 %v2834, %v3547
        %v3612 = vmul.f32 %v2835, %v3548
        %v3613 = vpack.c.bf16 %v3551, %v3549
        %v3614 = vpack.c.bf16 %v3552, %v3550
        %v3615 = vpack.c.bf16 %v3555, %v3553
        %v3616 = vpack.c.bf16 %v3556, %v3554
        %v3617 = vpack.c.bf16 %v3559, %v3557
        %v3618 = vpack.c.bf16 %v3560, %v3558
        %v3619 = vpack.c.bf16 %v3563, %v3561
        %v3620 = vpack.c.bf16 %v3564, %v3562
        %v3621 = vpack.c.bf16 %v3567, %v3565
        %v3622 = vpack.c.bf16 %v3568, %v3566
        %v3623 = vpack.c.bf16 %v3571, %v3569
        %v3624 = vpack.c.bf16 %v3572, %v3570
        %v3625 = vpack.c.bf16 %v3575, %v3573
        %v3626 = vpack.c.bf16 %v3576, %v3574
        %v3627 = vpack.c.bf16 %v3579, %v3577
        %v3628 = vpack.c.bf16 %v3580, %v3578
        %v3629 = vpack.c.bf16 %v3583, %v3581
        %v3630 = vpack.c.bf16 %v3584, %v3582
        %v3631 = vpack.c.bf16 %v3587, %v3585
        %v3632 = vpack.c.bf16 %v3588, %v3586
        %v3633 = vpack.c.bf16 %v3591, %v3589
        %v3634 = vpack.c.bf16 %v3592, %v3590
        %v3635 = vpack.c.bf16 %v3595, %v3593
        %v3636 = vpack.c.bf16 %v3596, %v3594
        %v3637 = vpack.c.bf16 %v3599, %v3597
        %v3638 = vpack.c.bf16 %v3600, %v3598
        %v3639 = vpack.c.bf16 %v3603, %v3601
        %v3640 = vpack.c.bf16 %v3604, %v3602
        %v3641 = vpack.c.bf16 %v3607, %v3605
        %v3642 = vpack.c.bf16 %v3608, %v3606
        %v3643 = vpack.c.bf16 %v3611, %v3609
        %v3644 = vpack.c.bf16 %v3612, %v3610
        %v3645 = vld [vmem:[#allocation10] sm:$0xf]
        %v3646 = vld [vmem:[#allocation10 + $0x4] sm:$0xf]
        %v3647 = vld [vmem:[#allocation10 + $0x8] sm:$0xf]
        %v3648 = vld [vmem:[#allocation10 + $0xc] sm:$0xf]
        %v3649 = vld [vmem:[#allocation10 + $0x10] sm:$0xf]
        %v3650 = vld [vmem:[#allocation10 + $0x14] sm:$0xf]
        %v3651 = vld [vmem:[#allocation10 + $0x18] sm:$0xf]
        %v3652 = vld [vmem:[#allocation10 + $0x1c] sm:$0xf]
        %v3653 = vld [vmem:[#allocation10 + $0x20] sm:$0xf]
        %v3654 = vld [vmem:[#allocation10 + $0x24] sm:$0xf]
        %v3655 = vld [vmem:[#allocation10 + $0x28] sm:$0xf]
        %v3656 = vld [vmem:[#allocation10 + $0x2c] sm:$0xf]
        %v3657 = vld [vmem:[#allocation10 + $0x30] sm:$0xf]
        %v3658 = vld [vmem:[#allocation10 + $0x34] sm:$0xf]
        %v3659 = vld [vmem:[#allocation10 + $0x38] sm:$0xf]
        %v3660 = vld [vmem:[#allocation10 + $0x3c] sm:$0xf]
        %v3661 = vld [vmem:[#allocation10 + $0x40] sm:$0xf]
        %v3662 = vld [vmem:[#allocation10 + $0x44] sm:$0xf]
        %v3663 = vld [vmem:[#allocation10 + $0x48] sm:$0xf]
        %v3664 = vld [vmem:[#allocation10 + $0x4c] sm:$0xf]
        %v3665 = vld [vmem:[#allocation10 + $0x50] sm:$0xf]
        %v3666 = vld [vmem:[#allocation10 + $0x54] sm:$0xf]
        %v3667 = vld [vmem:[#allocation10 + $0x58] sm:$0xf]
        %v3668 = vld [vmem:[#allocation10 + $0x5c] sm:$0xf]
        %v3669 = vld [vmem:[#allocation10 + $0x60] sm:$0xf]
        %v3670 = vld [vmem:[#allocation10 + $0x64] sm:$0xf]
        %v3671 = vld [vmem:[#allocation10 + $0x68] sm:$0xf]
        %v3672 = vld [vmem:[#allocation10 + $0x6c] sm:$0xf]
        %v3673 = vld [vmem:[#allocation10 + $0x70] sm:$0xf]
        %v3674 = vld [vmem:[#allocation10 + $0x74] sm:$0xf]
        %v3675 = vld [vmem:[#allocation10 + $0x78] sm:$0xf]
        %v3676 = vld [vmem:[#allocation10 + $0x7c] sm:$0xf]
        %v3677 = vld [vmem:[%s8] sm:$0x1]
        %v3679 = vlaneseq
        %v3680 = vshrl.u32 %v3679, 7
        %v3681 = vsub.s32 0, %v3680
        %v3682 = vrot.slane %v3677, %v3681
        %v3716 = vunpack.c.l.b16 %v3645
        %v3717 = vunpack.c.l.b16 %v3646
        %v3718 = vunpack.c.l.b16 %v3647
        %v3719 = vunpack.c.l.b16 %v3648
        %v3720 = vunpack.c.l.b16 %v3649
        %v3721 = vunpack.c.l.b16 %v3650
        %v3722 = vunpack.c.l.b16 %v3651
        %v3723 = vunpack.c.l.b16 %v3652
        %v3724 = vunpack.c.l.b16 %v3653
        %v3725 = vunpack.c.l.b16 %v3654
        %v3726 = vunpack.c.l.b16 %v3655
        %v3727 = vunpack.c.l.b16 %v3656
        %v3728 = vunpack.c.l.b16 %v3657
        %v3729 = vunpack.c.l.b16 %v3658
        %v3730 = vunpack.c.l.b16 %v3659
        %v3731 = vunpack.c.l.b16 %v3660
        %v3732 = vunpack.c.l.b16 %v3661
        %v3733 = vunpack.c.l.b16 %v3662
        %v3734 = vunpack.c.l.b16 %v3663
        %v3735 = vunpack.c.l.b16 %v3664
        %v3736 = vunpack.c.l.b16 %v3665
        %v3737 = vunpack.c.l.b16 %v3666
        %v3738 = vunpack.c.l.b16 %v3667
        %v3739 = vunpack.c.l.b16 %v3668
        %v3740 = vunpack.c.l.b16 %v3669
        %v3741 = vunpack.c.l.b16 %v3670
        %v3742 = vunpack.c.l.b16 %v3671
        %v3743 = vunpack.c.l.b16 %v3672
        %v3744 = vunpack.c.l.b16 %v3673
        %v3745 = vunpack.c.l.b16 %v3674
        %v3746 = vunpack.c.l.b16 %v3675
        %v3747 = vunpack.c.l.b16 %v3676
        %v3748 = vpack.c.b16 %v3717, %v3716
        %v3749 = vpack.c.b16 %v3719, %v3718
        %v3750 = vpack.c.b16 %v3721, %v3720
        %v3751 = vpack.c.b16 %v3723, %v3722
        %v3752 = vpack.c.b16 %v3725, %v3724
        %v3753 = vpack.c.b16 %v3727, %v3726
        %v3754 = vpack.c.b16 %v3729, %v3728
        %v3755 = vpack.c.b16 %v3731, %v3730
        %v3756 = vpack.c.b16 %v3733, %v3732
        %v3757 = vpack.c.b16 %v3735, %v3734
        %v3758 = vpack.c.b16 %v3737, %v3736
        %v3759 = vpack.c.b16 %v3739, %v3738
        %v3760 = vpack.c.b16 %v3741, %v3740
        %v3761 = vpack.c.b16 %v3743, %v3742
        %v3762 = vpack.c.b16 %v3745, %v3744
        %v3763 = vpack.c.b16 %v3747, %v3746
        %3780 = vmatprep.subr.bf16.mxu0 0
        %3781 = vmatpush1.bf16.msra.mxu0 %v3748
        %3782 = vmatprep.subr.bf16.mxu0 0
        %3783 = vmatpush1.bf16.msra.mxu0 %v3749
        %3784 = vmatprep.subr.bf16.mxu0 0
        %3785 = vmatpush1.bf16.msra.mxu0 %v3750
        %3786 = vmatprep.subr.bf16.mxu0 0
        %3787 = vmatpush1.bf16.msra.mxu0 %v3751
        %3788 = vmatprep.subr.bf16.mxu0 0
        %3789 = vmatpush1.bf16.msra.mxu0 %v3752
        %3790 = vmatprep.subr.bf16.mxu0 0
        %3791 = vmatpush1.bf16.msra.mxu0 %v3753
        %3792 = vmatprep.subr.bf16.mxu0 0
        %3793 = vmatpush1.bf16.msra.mxu0 %v3754
        %3794 = vmatprep.subr.bf16.mxu0 0
        %3795 = vmatpush1.bf16.msra.mxu0 %v3755
        %3796 = vmatprep.subr.bf16.mxu0 0
        %3797 = vmatpush1.bf16.msra.mxu0 %v3756
        %3798 = vmatprep.subr.bf16.mxu0 0
        %3799 = vmatpush1.bf16.msra.mxu0 %v3757
        %3800 = vmatprep.subr.bf16.mxu0 0
        %3801 = vmatpush1.bf16.msra.mxu0 %v3758
        %3802 = vmatprep.subr.bf16.mxu0 0
        %3803 = vmatpush1.bf16.msra.mxu0 %v3759
        %3804 = vmatprep.subr.bf16.mxu0 0
        %3805 = vmatpush1.bf16.msra.mxu0 %v3760
        %3806 = vmatprep.subr.bf16.mxu0 0
        %3807 = vmatpush1.bf16.msra.mxu0 %v3761
        %3808 = vmatprep.subr.bf16.mxu0 0
        %3809 = vmatpush1.bf16.msra.mxu0 %v3762
        %3810 = vmatprep.subr.bf16.mxu0 0
        %3811 = vmatpush1.bf16.msra.mxu0 %v3763
        %3812 = vmatprep.mubr.bf16.mxu0 %v3614
        %3813 = vmatmul.mubr.bf16.gmra.mrb[0].mxu0 %v3613
        %v3814 = vpop.f32.mrb[0].mxu0
        %v3815 = vadd.f32 %v3682, %v3814
        %v3816 = vpop.f32.mrb[0].mxu0
        %v3817 = vpop.f32.mrb[0].mxu0
        %v3818 = vadd.f32 %v3682, %v3817
        %v3819 = vpop.f32.mrb[0].mxu0
        %3820 = vmatprep.mubr.bf16.mxu0 %v3616
        %3821 = vmatmul.mubr.bf16.gmra.mrb[0].mxu0 %v3615
        %v3822 = vpop.f32.mrb[0].mxu0
        %v3823 = vadd.f32 %v3682, %v3822
        %v3824 = vpop.f32.mrb[0].mxu0
        %v3825 = vpop.f32.mrb[0].mxu0
        %v3826 = vadd.f32 %v3682, %v3825
        %v3827 = vpop.f32.mrb[0].mxu0
        %3828 = vmatprep.mubr.bf16.mxu0 %v3618
        %3829 = vmatmul.mubr.bf16.gmra.mrb[0].mxu0 %v3617
        %v3830 = vpop.f32.mrb[0].mxu0
        %v3831 = vadd.f32 %v3682, %v3830
        %v3832 = vpop.f32.mrb[0].mxu0
        %v3833 = vpop.f32.mrb[0].mxu0
        %v3834 = vadd.f32 %v3682, %v3833
        %v3835 = vpop.f32.mrb[0].mxu0
        %3836 = vmatprep.mubr.bf16.mxu0 %v3620
        %3837 = vmatmul.mubr.bf16.gmra.mrb[0].mxu0 %v3619
        %v3838 = vpop.f32.mrb[0].mxu0
        %v3839 = vadd.f32 %v3682, %v3838
        %v3840 = vpop.f32.mrb[0].mxu0
        %v3841 = vpop.f32.mrb[0].mxu0
        %v3842 = vadd.f32 %v3682, %v3841
        %v3843 = vpop.f32.mrb[0].mxu0
        %3844 = vmatprep.mubr.bf16.mxu0 %v3622
        %3845 = vmatmul.mubr.bf16.gmra.mrb[0].mxu0 %v3621
        %v3846 = vpop.f32.mrb[0].mxu0
        %v3847 = vadd.f32 %v3682, %v3846
        %v3848 = vpop.f32.mrb[0].mxu0
        %v3849 = vpop.f32.mrb[0].mxu0
        %v3850 = vadd.f32 %v3682, %v3849
        %v3851 = vpop.f32.mrb[0].mxu0
        %3852 = vmatprep.mubr.bf16.mxu0 %v3624
        %3853 = vmatmul.mubr.bf16.gmra.mrb[0].mxu0 %v3623
        %v3854 = vpop.f32.mrb[0].mxu0
        %v3855 = vadd.f32 %v3682, %v3854
        %v3856 = vpop.f32.mrb[0].mxu0
        %v3857 = vpop.f32.mrb[0].mxu0
        %v3858 = vadd.f32 %v3682, %v3857
        %v3859 = vpop.f32.mrb[0].mxu0
        %3860 = vmatprep.mubr.bf16.mxu0 %v3626
        %3861 = vmatmul.mubr.bf16.gmra.mrb[0].mxu0 %v3625
        %v3862 = vpop.f32.mrb[0].mxu0
        %v3863 = vadd.f32 %v3682, %v3862
        %v3864 = vpop.f32.mrb[0].mxu0
        %v3865 = vpop.f32.mrb[0].mxu0
        %v3866 = vadd.f32 %v3682, %v3865
        %v3867 = vpop.f32.mrb[0].mxu0
        %3868 = vmatprep.mubr.bf16.mxu0 %v3628
        %3869 = vmatmul.mubr.bf16.gmra.mrb[0].mxu0 %v3627
        %v3870 = vpop.f32.mrb[0].mxu0
        %v3871 = vadd.f32 %v3682, %v3870
        %v3872 = vpop.f32.mrb[0].mxu0
        %v3873 = vpop.f32.mrb[0].mxu0
        %v3874 = vadd.f32 %v3682, %v3873
        %v3875 = vpop.f32.mrb[0].mxu0
        %3876 = vmatprep.mubr.bf16.mxu0 %v3630
        %3877 = vmatmul.mubr.bf16.gmra.mrb[0].mxu0 %v3629
        %v3878 = vpop.f32.mrb[0].mxu0
        %v3879 = vadd.f32 %v3682, %v3878
        %v3880 = vpop.f32.mrb[0].mxu0
        %v3881 = vpop.f32.mrb[0].mxu0
        %v3882 = vadd.f32 %v3682, %v3881
        %v3883 = vpop.f32.mrb[0].mxu0
        %3884 = vmatprep.mubr.bf16.mxu0 %v3632
        %3885 = vmatmul.mubr.bf16.gmra.mrb[0].mxu0 %v3631
        %v3886 = vpop.f32.mrb[0].mxu0
        %v3887 = vadd.f32 %v3682, %v3886
        %v3888 = vpop.f32.mrb[0].mxu0
        %v3889 = vpop.f32.mrb[0].mxu0
        %v3890 = vadd.f32 %v3682, %v3889
        %v3891 = vpop.f32.mrb[0].mxu0
        %3892 = vmatprep.mubr.bf16.mxu0 %v3634
        %3893 = vmatmul.mubr.bf16.gmra.mrb[0].mxu0 %v3633
        %v3894 = vpop.f32.mrb[0].mxu0
        %v3895 = vadd.f32 %v3682, %v3894
        %v3896 = vpop.f32.mrb[0].mxu0
        %v3897 = vpop.f32.mrb[0].mxu0
        %v3898 = vadd.f32 %v3682, %v3897
        %v3899 = vpop.f32.mrb[0].mxu0
        %3900 = vmatprep.mubr.bf16.mxu0 %v3636
        %3901 = vmatmul.mubr.bf16.gmra.mrb[0].mxu0 %v3635
        %v3902 = vpop.f32.mrb[0].mxu0
        %v3903 = vadd.f32 %v3682, %v3902
        %v3904 = vpop.f32.mrb[0].mxu0
        %v3905 = vpop.f32.mrb[0].mxu0
        %v3906 = vadd.f32 %v3682, %v3905
        %v3907 = vpop.f32.mrb[0].mxu0
        %3908 = vmatprep.mubr.bf16.mxu0 %v3638
        %3909 = vmatmul.mubr.bf16.gmra.mrb[0].mxu0 %v3637
        %v3910 = vpop.f32.mrb[0].mxu0
        %v3911 = vadd.f32 %v3682, %v3910
        %v3912 = vpop.f32.mrb[0].mxu0
        %v3913 = vpop.f32.mrb[0].mxu0
        %v3914 = vadd.f32 %v3682, %v3913
        %v3915 = vpop.f32.mrb[0].mxu0
        %3916 = vmatprep.mubr.bf16.mxu0 %v3640
        %3917 = vmatmul.mubr.bf16.gmra.mrb[0].mxu0 %v3639
        %v3918 = vpop.f32.mrb[0].mxu0
        %v3919 = vadd.f32 %v3682, %v3918
        %v3920 = vpop.f32.mrb[0].mxu0
        %v3921 = vpop.f32.mrb[0].mxu0
        %v3922 = vadd.f32 %v3682, %v3921
        %v3923 = vpop.f32.mrb[0].mxu0
        %3924 = vmatprep.mubr.bf16.mxu0 %v3642
        %3925 = vmatmul.mubr.bf16.gmra.mrb[0].mxu0 %v3641
        %v3926 = vpop.f32.mrb[0].mxu0
        %v3927 = vadd.f32 %v3682, %v3926
        %v3928 = vpop.f32.mrb[0].mxu0
        %v3929 = vpop.f32.mrb[0].mxu0
        %v3930 = vadd.f32 %v3682, %v3929
        %v3931 = vpop.f32.mrb[0].mxu0
        %3932 = vmatprep.mubr.bf16.mxu0 %v3644
        %3933 = vmatmul.mubr.bf16.gmra.mrb[0].mxu0 %v3643
        %v3934 = vpop.f32.mrb[0].mxu0
        %v3935 = vadd.f32 %v3682, %v3934
        %v3936 = vpop.f32.mrb[0].mxu0
        %v3937 = vpop.f32.mrb[0].mxu0
        %v3938 = vadd.f32 %v3682, %v3937
        %v3939 = vpop.f32.mrb[0].mxu0
        %3940 = vdwg.mxu0
        %v3941 = vsub.f32 0.0, %v3815
        %v3942 = vsub.f32 0.0, %v3818
        %v3943 = vsub.f32 0.0, %v3823
        %v3944 = vsub.f32 0.0, %v3826
        %v3945 = vsub.f32 0.0, %v3831
        %v3946 = vsub.f32 0.0, %v3834
        %v3947 = vsub.f32 0.0, %v3839
        %v3948 = vsub.f32 0.0, %v3842
        %v3949 = vsub.f32 0.0, %v3847
        %v3950 = vsub.f32 0.0, %v3850
        %v3951 = vsub.f32 0.0, %v3855
        %v3952 = vsub.f32 0.0, %v3858
        %v3953 = vsub.f32 0.0, %v3863
        %v3954 = vsub.f32 0.0, %v3866
        %v3955 = vsub.f32 0.0, %v3871
        %v3956 = vsub.f32 0.0, %v3874
        %v3957 = vsub.f32 0.0, %v3879
        %v3958 = vsub.f32 0.0, %v3882
        %v3959 = vsub.f32 0.0, %v3887
        %v3960 = vsub.f32 0.0, %v3890
        %v3961 = vsub.f32 0.0, %v3895
        %v3962 = vsub.f32 0.0, %v3898
        %v3963 = vsub.f32 0.0, %v3903
        %v3964 = vsub.f32 0.0, %v3906
        %v3965 = vsub.f32 0.0, %v3911
        %v3966 = vsub.f32 0.0, %v3914
        %v3967 = vsub.f32 0.0, %v3919
        %v3968 = vsub.f32 0.0, %v3922
        %v3969 = vsub.f32 0.0, %v3927
        %v3970 = vsub.f32 0.0, %v3930
        %v3971 = vsub.f32 0.0, %v3935
        %v3972 = vsub.f32 0.0, %v3938
        %v3973 = vmul.f32 %v3941, 1.442695
        %v3974 = vpow.pop %v3973
        %v3975 = vmul.f32 %v3942, 1.442695
        %v3976 = vpow.pop %v3975
        %v3977 = vmul.f32 %v3943, 1.442695
        %v3978 = vpow.pop %v3977
        %v3979 = vmul.f32 %v3944, 1.442695
        %v3980 = vpow.pop %v3979
        %v3981 = vmul.f32 %v3945, 1.442695
        %v3982 = vpow.pop %v3981
        %v3983 = vmul.f32 %v3946, 1.442695
        %v3984 = vpow.pop %v3983
        %v3985 = vmul.f32 %v3947, 1.442695
        %v3986 = vpow.pop %v3985
        %v3987 = vmul.f32 %v3948, 1.442695
        %v3988 = vpow.pop %v3987
        %v3989 = vmul.f32 %v3949, 1.442695
        %v3990 = vpow.pop %v3989
        %v3991 = vmul.f32 %v3950, 1.442695
        %v3992 = vpow.pop %v3991
        %v3993 = vmul.f32 %v3951, 1.442695
        %v3994 = vpow.pop %v3993
        %v3995 = vmul.f32 %v3952, 1.442695
        %v3996 = vpow.pop %v3995
        %v3997 = vmul.f32 %v3953, 1.442695
        %v3998 = vpow.pop %v3997
        %v3999 = vmul.f32 %v3954, 1.442695
        %v4000 = vpow.pop %v3999
        %v4001 = vmul.f32 %v3955, 1.442695
        %v4002 = vpow.pop %v4001
        %v4003 = vmul.f32 %v3956, 1.442695
        %v4004 = vpow.pop %v4003
        %v4005 = vmul.f32 %v3957, 1.442695
        %v4006 = vpow.pop %v4005
        %v4007 = vmul.f32 %v3958, 1.442695
        %v4008 = vpow.pop %v4007
        %v4009 = vmul.f32 %v3959, 1.442695
        %v4010 = vpow.pop %v4009
        %v4011 = vmul.f32 %v3960, 1.442695
        %v4012 = vpow.pop %v4011
        %v4013 = vmul.f32 %v3961, 1.442695
        %v4014 = vpow.pop %v4013
        %v4015 = vmul.f32 %v3962, 1.442695
        %v4016 = vpow.pop %v4015
        %v4017 = vmul.f32 %v3963, 1.442695
        %v4018 = vpow.pop %v4017
        %v4019 = vmul.f32 %v3964, 1.442695
        %v4020 = vpow.pop %v4019
        %v4021 = vmul.f32 %v3965, 1.442695
        %v4022 = vpow.pop %v4021
        %v4023 = vmul.f32 %v3966, 1.442695
        %v4024 = vpow.pop %v4023
        %v4025 = vmul.f32 %v3967, 1.442695
        %v4026 = vpow.pop %v4025
        %v4027 = vmul.f32 %v3968, 1.442695
        %v4028 = vpow.pop %v4027
        %v4029 = vmul.f32 %v3969, 1.442695
        %v4030 = vpow.pop %v4029
        %v4031 = vmul.f32 %v3970, 1.442695
        %v4032 = vpow.pop %v4031
        %v4033 = vmul.f32 %v3971, 1.442695
        %v4034 = vpow.pop %v4033
        %v4035 = vmul.f32 %v3972, 1.442695
        %v4036 = vpow.pop %v4035
        %v4037 = vadd.f32 %v3974, 1.0
        %v4038 = vadd.f32 %v3976, 1.0
        %v4039 = vadd.f32 %v3978, 1.0
        %v4040 = vadd.f32 %v3980, 1.0
        %v4041 = vadd.f32 %v3982, 1.0
        %v4042 = vadd.f32 %v3984, 1.0
        %v4043 = vadd.f32 %v3986, 1.0
        %v4044 = vadd.f32 %v3988, 1.0
        %v4045 = vadd.f32 %v3990, 1.0
        %v4046 = vadd.f32 %v3992, 1.0
        %v4047 = vadd.f32 %v3994, 1.0
        %v4048 = vadd.f32 %v3996, 1.0
        %v4049 = vadd.f32 %v3998, 1.0
        %v4050 = vadd.f32 %v4000, 1.0
        %v4051 = vadd.f32 %v4002, 1.0
        %v4052 = vadd.f32 %v4004, 1.0
        %v4053 = vadd.f32 %v4006, 1.0
        %v4054 = vadd.f32 %v4008, 1.0
        %v4055 = vadd.f32 %v4010, 1.0
        %v4056 = vadd.f32 %v4012, 1.0
        %v4057 = vadd.f32 %v4014, 1.0
        %v4058 = vadd.f32 %v4016, 1.0
        %v4059 = vadd.f32 %v4018, 1.0
        %v4060 = vadd.f32 %v4020, 1.0
        %v4061 = vadd.f32 %v4022, 1.0
        %v4062 = vadd.f32 %v4024, 1.0
        %v4063 = vadd.f32 %v4026, 1.0
        %v4064 = vadd.f32 %v4028, 1.0
        %v4065 = vadd.f32 %v4030, 1.0
        %v4066 = vadd.f32 %v4032, 1.0
        %v4067 = vadd.f32 %v4034, 1.0
        %v4068 = vadd.f32 %v4036, 1.0
        %v4069 = vrcp.pop %v4037
        %v4070 = vmul.f32 1.0, %v4069
        %v4071 = vrcp.pop %v4038
        %v4072 = vmul.f32 1.0, %v4071
        %v4073 = vrcp.pop %v4039
        %v4074 = vmul.f32 1.0, %v4073
        %v4075 = vrcp.pop %v4040
        %v4076 = vmul.f32 1.0, %v4075
        %v4077 = vrcp.pop %v4041
        %v4078 = vmul.f32 1.0, %v4077
        %v4079 = vrcp.pop %v4042
        %v4080 = vmul.f32 1.0, %v4079
        %v4081 = vrcp.pop %v4043
        %v4082 = vmul.f32 1.0, %v4081
        %v4083 = vrcp.pop %v4044
        %v4084 = vmul.f32 1.0, %v4083
        %v4085 = vrcp.pop %v4045
        %v4086 = vmul.f32 1.0, %v4085
        %v4087 = vrcp.pop %v4046
        %v4088 = vmul.f32 1.0, %v4087
        %v4089 = vrcp.pop %v4047
        %v4090 = vmul.f32 1.0, %v4089
        %v4091 = vrcp.pop %v4048
        %v4092 = vmul.f32 1.0, %v4091
        %v4093 = vrcp.pop %v4049
        %v4094 = vmul.f32 1.0, %v4093
        %v4095 = vrcp.pop %v4050
        %v4096 = vmul.f32 1.0, %v4095
        %v4097 = vrcp.pop %v4051
        %v4098 = vmul.f32 1.0, %v4097
        %v4099 = vrcp.pop %v4052
        %v4100 = vmul.f32 1.0, %v4099
        %v4101 = vrcp.pop %v4053
        %v4102 = vmul.f32 1.0, %v4101
        %v4103 = vrcp.pop %v4054
        %v4104 = vmul.f32 1.0, %v4103
        %v4105 = vrcp.pop %v4055
        %v4106 = vmul.f32 1.0, %v4105
        %v4107 = vrcp.pop %v4056
        %v4108 = vmul.f32 1.0, %v4107
        %v4109 = vrcp.pop %v4057
        %v4110 = vmul.f32 1.0, %v4109
        %v4111 = vrcp.pop %v4058
        %v4112 = vmul.f32 1.0, %v4111
        %v4113 = vrcp.pop %v4059
        %v4114 = vmul.f32 1.0, %v4113
        %v4115 = vrcp.pop %v4060
        %v4116 = vmul.f32 1.0, %v4115
        %v4117 = vrcp.pop %v4061
        %v4118 = vmul.f32 1.0, %v4117
        %v4119 = vrcp.pop %v4062
        %v4120 = vmul.f32 1.0, %v4119
        %v4121 = vrcp.pop %v4063
        %v4122 = vmul.f32 1.0, %v4121
        %v4123 = vrcp.pop %v4064
        %v4124 = vmul.f32 1.0, %v4123
        %v4125 = vrcp.pop %v4065
        %v4126 = vmul.f32 1.0, %v4125
        %v4127 = vrcp.pop %v4066
        %v4128 = vmul.f32 1.0, %v4127
        %v4129 = vrcp.pop %v4067
        %v4130 = vmul.f32 1.0, %v4129
        %v4131 = vrcp.pop %v4068
        %v4132 = vmul.f32 1.0, %v4131
        %4133 = vst [vmem:[%s407] sm:$0xff] %v4070
        %4134 = vst [vmem:[%s407 + $0x8] sm:$0xff] %v4072
        %4135 = vst [vmem:[%s407 + $0x10] sm:$0xff] %v4074
        %4136 = vst [vmem:[%s407 + $0x18] sm:$0xff] %v4076
        %4137 = vst [vmem:[%s407 + $0x20] sm:$0xff] %v4078
        %4138 = vst [vmem:[%s407 + $0x28] sm:$0xff] %v4080
        %4139 = vst [vmem:[%s407 + $0x30] sm:$0xff] %v4082
        %4140 = vst [vmem:[%s407 + $0x38] sm:$0xff] %v4084
        %4141 = vst [vmem:[%s407 + $0x40] sm:$0xff] %v4086
        %4142 = vst [vmem:[%s407 + $0x48] sm:$0xff] %v4088
        %4143 = vst [vmem:[%s407 + $0x50] sm:$0xff] %v4090
        %4144 = vst [vmem:[%s407 + $0x58] sm:$0xff] %v4092
        %4145 = vst [vmem:[%s407 + $0x60] sm:$0xff] %v4094
        %4146 = vst [vmem:[%s407 + $0x68] sm:$0xff] %v4096
        %4147 = vst [vmem:[%s407 + $0x70] sm:$0xff] %v4098
        %4148 = vst [vmem:[%s407 + $0x78] sm:$0xff] %v4100
        %4149 = vst [vmem:[%s407 + $0x80] sm:$0xff] %v4102
        %4150 = vst [vmem:[%s407 + $0x88] sm:$0xff] %v4104
        %4151 = vst [vmem:[%s407 + $0x90] sm:$0xff] %v4106
        %4152 = vst [vmem:[%s407 + $0x98] sm:$0xff] %v4108
        %4153 = vst [vmem:[%s407 + $0xa0] sm:$0xff] %v4110
        %4154 = vst [vmem:[%s407 + $0xa8] sm:$0xff] %v4112
        %4155 = vst [vmem:[%s407 + $0xb0] sm:$0xff] %v4114
        %4156 = vst [vmem:[%s407 + $0xb8] sm:$0xff] %v4116
        %4157 = vst [vmem:[%s407 + $0xc0] sm:$0xff] %v4118
        %4158 = vst [vmem:[%s407 + $0xc8] sm:$0xff] %v4120
        %4159 = vst [vmem:[%s407 + $0xd0] sm:$0xff] %v4122
        %4160 = vst [vmem:[%s407 + $0xd8] sm:$0xff] %v4124
        %4161 = vst [vmem:[%s407 + $0xe0] sm:$0xff] %v4126
        %4162 = vst [vmem:[%s407 + $0xe8] sm:$0xff] %v4128
        %4163 = vst [vmem:[%s407 + $0xf0] sm:$0xff] %v4130
        %4164 = vst [vmem:[%s407 + $0xf8] sm:$0xff] %v4132
        %s4165 = sand.u32 %s230, 1
        %s4166 = scalar_lea.sflag [#allocation4], %s4165
        %s4167 = sand.u32 %s230, 1
        %s4168 = smul.addr %s4167, 256
        %s4169 = scalar_lea.vmem [#allocation11], %s4168
        // Predicated region
        $region77: #{tpu_custom_call.1} parent=55 // pred_check
          %p4170 = pneg %p240
        $region78: #{tpu_custom_call.1} parent=55 // pred_check_branch
          %4172 = sbr.rel (%p4170) target = $region80
        $region79: #{tpu_custom_call.1} parent=55 // pred_region
          %s4173 = smul.u32 32, %s28
          %s4175 = ssub.s32 4096, 4096
          %4176 = vsyncadd %s4166, %s4175
          %s4177 = smul.addr %s4173, 128
          %s4178 = scalar_lea.hbm %s9, %s4177
          %s4179 = sshll.u32 %s4169, 4
          %s4180 = int_to_ptr.vmem [resolvable:$true] %s4179
          %4185 = dma.vmem_to_hbm [thread:$0]  %s4180, 4096, %s4178, %s4166, 128, 128, 8
        $region80: #{tpu_custom_call.1} parent=55 // pred_fallthru
          _
      $region56: #{tpu_custom_call.1} parent=5 // pred_fallthru
        _
      %p4186 = scmp.le.s32.totalorder 2, %s23
      // Predicated region
      $region81: #{tpu_custom_call.1} parent=5 // pred_check
        %p4187 = pneg %p4186
      $region82: #{tpu_custom_call.1} parent=5 // pred_check_branch
        %4189 = sbr.rel (%p4187) target = $region84
      $region83: #{tpu_custom_call.1} parent=5 // pred_region
        %s4190 = ssub.s32 %s23, 2
        // Predicated region
        $region85: #{tpu_custom_call.1} parent=83 // pred_check
          %p4191 = pneg %p246
        $region86: #{tpu_custom_call.1} parent=83 // pred_check_branch
          %4193 = sbr.rel (%p4191) target = $region88
        $region87: #{tpu_custom_call.1} parent=83 // pred_region
          %s4194 = sand.u32 %s231, 1
          %s4195 = scalar_lea.sflag [#allocation4], %s4194
          %s4196 = sand.u32 %s231, 1
          %s4197 = smul.addr %s4196, 256
          %s4198 = scalar_lea.vmem [#allocation11], %s4197
          %4199 = dma.done %s4195, 4096
        $region88: #{tpu_custom_call.1} parent=83 // pred_fallthru
          _
      $region84: #{tpu_custom_call.1} parent=5 // pred_fallthru
        _
    $region6: #{tpu_custom_call.1} parent=1 // loop_footer
      %s27 = sadd.s32 1, %s23
    $region7: #{tpu_custom_call.1} parent=1 // loop_footer_branch
      %22 = sbr.rel target = $region3
    $region8: #{tpu_custom_call.1} parent=1 // loop_exit
      _
    %4200 = vsyncpa [#allocation3], 1
    %s4201 = scalar_lea.sflag [#allocation3], 1
    %4202 = vsyncpa %s4201, 1
    %4203 = vsyncpa [#allocation6], 1
    %4204 = vsyncpa [#allocation9], 1
    %4205 = vsyncpa [#allocation4], 1
    %s4206 = scalar_lea.sflag [#allocation4], 1
    %4207 = vsyncpa %s4206, 1

</llo_original>
